<compile_context>
chip_gen: v5e
topology: v5e:2x2
jax: 0.10.0
libtpu: 0.0.40
codegen_flags: <defaults>
</compile_context>

<pallas_src>
import functools

import jax
import jax.numpy as jnp
from jax.experimental import pallas as pl
from jax.experimental.pallas import tpu as pltpu


# ----------------------------------------------------------------------------
# Kernel: one grid step = (one batch tile, one FCBlock).  backcast / encoding
# are carried in VMEM scratch along the block axis.
# ----------------------------------------------------------------------------
def _make_kernel(num_layers, eps, compute_dtype, has_first_rest, has_mid):
    def kernel(*refs):
        it = iter(refs)
        x_ref = next(it)                 # (Bt, N, size_in)
        w_ref = next(it)                 # (Bt, N)
        w_first0 = next(it)              # (size_in, width)          block 0, layer 0
        w_first_rest = next(it) if has_first_rest else None   # (size_out, width)  blocks>=1, layer 0
        w_mid = next(it) if has_mid else None                  # (num_layers-1, width, width)
        b_trunk = next(it)               # (num_layers, 1, width)    f32
        w_back = next(it)                # (width, size_out)
        b_back = next(it)                # (1, size_out)             f32
        w_enc = next(it)                 # (width, size_out)
        b_enc = next(it)                 # (1, size_out)             f32
        o_ref = next(it)                 # (Bt, size_out)
        bc_s = next(it)                  # (M, size_out) f32   carried backcast
        enc_s = next(it)                 # (M, size_out) f32   running encoding sum
        h_s = next(it)                   # (M, width)    f32   layer-0 staging (branch merge)

        blk = pl.program_id(1)
        nblk = pl.num_programs(1)

        Bt, N, size_in = x_ref.shape
        M = Bt * N
        size_out = o_ref.shape[-1]

        # Weighted-mean bookkeeping stays in f32.  EUP reciprocal + one Newton step (~1 ulp).
        w = w_ref[...].astype(jnp.float32)[..., None]                      # (Bt, N, 1)
        w_sum = jnp.maximum(jnp.sum(w, axis=1, keepdims=True), eps)        # (Bt, 1, 1)
        r = pl.reciprocal(w_sum, approx=True)
        inv_wsum = r * (2.0 - w_sum * r)                                   # (Bt, 1, 1)

        @pl.when(blk == 0)
        def _():
            enc_s[...] = jnp.zeros_like(enc_s)

        # --- FCBlock trunk, layer 0 (block 0 consumes x; blocks >= 1 consume carried backcast)
        bias0 = b_trunk[0]                                                 # (1, width)

        @pl.when(blk == 0)
        def _():
            h0 = jnp.dot(x_ref[...].reshape(M, size_in).astype(compute_dtype),
                         w_first0[...], preferred_element_type=jnp.float32)
            h_s[...] = jnp.maximum(h0 + bias0, 0.0)

        if has_first_rest:
            @pl.when(blk != 0)
            def _():
                h0 = jnp.dot(bc_s[...].astype(compute_dtype),
                             w_first_rest[...], preferred_element_type=jnp.float32)
                h_s[...] = jnp.maximum(h0 + bias0, 0.0)

        # --- remaining trunk layers: Linear -> ReLU -> Dropout (eval identity)
        h = h_s[...]
        for l in range(1, num_layers):
            h = jnp.maximum(
                jnp.dot(h.astype(compute_dtype), w_mid[l - 1],
                        preferred_element_type=jnp.float32) + b_trunk[l], 0.0)

        # --- two heads: backcast and encoding
        hb = h.astype(compute_dtype)
        backcast = (jnp.dot(hb, w_back[...], preferred_element_type=jnp.float32)
                    + b_back[...])
        e = jnp.dot(hb, w_enc[...], preferred_element_type=jnp.float32) + b_enc[...]
        enc_s[...] = enc_s[...] + e

        # --- prototype mixing (blocks 0 .. nb-2) / final embedding (block nb-1)
        @pl.when(blk < nblk - 1)
        def _():
            enc3 = enc_s[...].reshape(Bt, N, size_out)
            # fold the /(blk+1) into the tiny (Bt,1,1) scale instead of a wide vector divide
            scale = inv_wsum / (blk + 1).astype(jnp.float32)               # (Bt, 1, 1)
            proto = jnp.sum(enc3 * w, axis=1, keepdims=True) * scale       # (Bt, 1, size_out)
            bc3 = backcast.reshape(Bt, N, size_out) - proto
            bc_s[...] = jnp.maximum(bc3, 0.0).reshape(M, size_out)

        @pl.when(blk == nblk - 1)
        def _():
            enc3 = enc_s[...].reshape(Bt, N, size_out)
            emb = jnp.sum(enc3 * w, axis=1, keepdims=True) * inv_wsum      # (Bt, 1, size_out)
            o_ref[...] = emb.reshape(Bt, size_out).astype(o_ref.dtype)

    return kernel


# ----------------------------------------------------------------------------
# Hardware query (safe fallbacks) + wrapper.
# ----------------------------------------------------------------------------
def _hw_info():
    """Returns (vmem_capacity_bytes, tensorcores_per_chip) with conservative fallbacks."""
    vmem_cap = 128 * 2 ** 20
    num_tc = 1
    try:
        info = pltpu.get_tpu_info()
        vmem_cap = int(getattr(info, "vmem_capacity_bytes", vmem_cap))
        for name in ("num_tensorcores", "tensorcores_per_chip", "num_cores"):
            v = getattr(info, name, None)
            if v:
                num_tc = int(v)
                break
    except Exception:
        pass
    if vmem_cap <= 64 * 2 ** 20:
        num_tc = max(num_tc, 2)          # v7x-like: 64 MiB VMEM per TC, 2 TCs per chip
    return vmem_cap, num_tc


def weighted_proto_encoder(x, weights, packed, *, num_blocks, num_layers,
                           eps=1e-6, compute_dtype=jnp.bfloat16, batch_tile=None):
    B, N, size_in = x.shape
    size_out = packed["w_enc"].shape[-1]
    layer_width = packed["w_enc"].shape[-2]
    has_first_rest = "w_first_rest" in packed
    has_mid = "w_mid" in packed

    vmem_cap, num_tc = _hw_info()

    def _arr_bytes(a):
        return int(a.size) * a.dtype.itemsize

    const_param_bytes = _arr_bytes(packed["w_first0"])
    per_blk_param_bytes = (
        (_arr_bytes(packed["w_first_rest"]) // (num_blocks - 1) if has_first_rest else 0)
        + (_arr_bytes(packed["w_mid"]) // num_blocks if has_mid else 0)
        + _arr_bytes(packed["b_trunk"]) // num_blocks
        + (_arr_bytes(packed["w_back"]) + _arr_bytes(packed["b_back"])
           + _arr_bytes(packed["w_enc"]) + _arr_bytes(packed["b_enc"])) // num_blocks)

    def _step_vmem(bt):
        m = bt * N
        io = 2 * (bt * N * size_in * x.dtype.itemsize + bt * N * 4) + 2 * bt * size_out * 4
        scratch = (2 * m * size_out + m * layer_width) * 4
        acts = 6 * m * max(layer_width, size_out, size_in) * 4
        return io + scratch + acts + 2 * per_blk_param_bytes + 2 * const_param_bytes

    # ---- batch tile: generation-aware (multi-TC wants >=2 steps/core; single-TC wants few
    #      large steps), then clamped to the VMEM budget and the (8,128) sublane rule.
    if batch_tile is None:
        if num_tc > 1:
            bt_rows = max(1, -(-128 // max(N, 1)))           # M = Bt*N >= ~128 rows
            bt_steps = B // (2 * num_tc)                      # >= 2 grid steps per core
            batch_tile = min(bt_rows, bt_steps) if bt_steps >= 1 else min(B, bt_rows)
        else:
            batch_tile = min(B, max(1, -(-1024 // max(N, 1))))  # M ~ 512-1024 / whole batch
        while batch_tile > 8 and _step_vmem(batch_tile) > 0.6 * vmem_cap:
            batch_tile //= 2
    Bt = max(1, int(batch_tile))
    if Bt < B:
        Bt = max(8, (Bt // 8) * 8)                            # 2-D blocks need sublane-multiple
    Bt = min(Bt, max(B, 1))

    B_pad = -(-B // Bt) * Bt
    if B_pad != B:
        pad = B_pad - B
        x = jnp.pad(x, ((0, pad), (0, 0), (0, 0)))
        weights = jnp.pad(weights, ((0, pad), (0, 0)))
    weights = weights.astype(jnp.float32)
    n_bsteps = B_pad // Bt

    # ---- parameter arrays, in kernel order
    param_arrays = [packed["w_first0"]]
    if has_first_rest:
        param_arrays.append(packed["w_first_rest"])
    if has_mid:
        param_arrays.append(packed["w_mid"])
    param_arrays += [packed["b_trunk"], packed["w_back"], packed["b_back"],
                     packed["w_enc"], packed["b_enc"]]

    # ---- BlockSpecs: batch-tiled activations + per-block streamed parameters
    in_specs = [
        pl.BlockSpec((Bt, N, size_in), lambda b, k: (b, 0, 0)),            # x
        pl.BlockSpec((Bt, N), lambda b, k: (b, 0)),                        # weights (dense 2-D)
        pl.BlockSpec((size_in, layer_width), lambda b, k: (0, 0)),         # w_first0 (constant)
    ]
    if has_first_rest:
        in_specs.append(pl.BlockSpec((None, size_out, layer_width),
                                     lambda b, k: (jnp.maximum(k - 1, 0), 0, 0)))
    if has_mid:
        in_specs.append(pl.BlockSpec((num_layers - 1, layer_width, layer_width),
                                     lambda b, k: (k, 0, 0)))
    in_specs += [
        pl.BlockSpec((num_layers, 1, layer_width), lambda b, k: (k, 0, 0)),  # b_trunk
        pl.BlockSpec((None, layer_width, size_out), lambda b, k: (k, 0, 0)),  # w_back
        pl.BlockSpec((None, 1, size_out), lambda b, k: (k, 0, 0)),            # b_back
        pl.BlockSpec((None, layer_width, size_out), lambda b, k: (k, 0, 0)),  # w_enc
        pl.BlockSpec((None, 1, size_out), lambda b, k: (k, 0, 0)),            # b_enc
    ]
    out_spec = pl.BlockSpec((Bt, size_out), lambda b, k: (b, 0))           # lane-dense 2-D slab

    kernel = _make_kernel(num_layers, eps, compute_dtype, has_first_rest, has_mid)

    # ---- cost estimate (matmul flops; params are re-streamed once per batch tile)
    dims = []
    for i in range(num_blocks):
        din0 = size_in if i == 0 else size_out
        dims.append((din0, layer_width))
        dims += [(layer_width, layer_width)] * (num_layers - 1)
        dims += [(layer_width, size_out)] * 2
    flops = 2 * B_pad * N * sum(d0 * d1 for d0, d1 in dims)
    total_param_bytes = sum(_arr_bytes(p) for p in param_arrays)
    bytes_accessed = int(x.size * x.dtype.itemsize + weights.size * 4
                         + B_pad * size_out * 4 + total_param_bytes * n_bsteps)
    cost = pl.CostEstimate(flops=flops, transcendentals=B_pad, bytes_accessed=bytes_accessed)

    # ---- VMEM budget: ~85% of physical capacity, floor at the 32 MiB default.
    vmem_limit = int(min(int(0.85 * vmem_cap),
                         max(32 * 2 ** 20, 2 * _step_vmem(Bt))))

    out = pl.pallas_call(
        kernel,
        out_shape=jax.ShapeDtypeStruct((B_pad, size_out), jnp.float32),
        grid_spec=pltpu.PrefetchScalarGridSpec(
            num_scalar_prefetch=0,
            grid=(n_bsteps, num_blocks),                     # block axis innermost
            in_specs=in_specs,
            out_specs=out_spec,
            scratch_shapes=[
                pltpu.VMEM((Bt * N, size_out), jnp.float32),     # carried backcast
                pltpu.VMEM((Bt * N, size_out), jnp.float32),     # running encoding
                pltpu.VMEM((Bt * N, layer_width), jnp.float32),  # layer-0 staging
            ]),
        compiler_params=pltpu.CompilerParams(
            dimension_semantics=("parallel", "arbitrary"),   # batch shards across v7x's 2 TCs
            vmem_limit_bytes=vmem_limit),
        cost_estimate=cost,
    )(x, weights, *param_arrays)
    return out[:B]                                           # == embedding.squeeze(-2)


# ----------------------------------------------------------------------------
# Deterministic packed-parameter construction + pure-JAX reference.
# ----------------------------------------------------------------------------
def make_packed_params(key, size_in, size_out, num_blocks, num_layers, layer_width,
                       compute_dtype=jnp.bfloat16):
    def dense(k, din, dout):
        k1, k2 = jax.random.split(k)
        w = jax.random.normal(k1, (din, dout), jnp.float32) / jnp.sqrt(float(din))
        b = 0.01 * jax.random.normal(k2, (1, dout), jnp.float32)
        return w, b

    keys = iter(jax.random.split(key, num_blocks * (num_layers + 2)))
    w_first0 = None
    w_first_rest, w_mid, b_trunk = [], [], []
    w_back, b_back, w_enc, b_enc = [], [], [], []
    for i in range(num_blocks):
        din0 = size_in if i == 0 else size_out
        w, b = dense(next(keys), din0, layer_width)
        if i == 0:
            w_first0 = w
        else:
            w_first_rest.append(w)
        b_trunk.append(b)
        for _ in range(num_layers - 1):
            w, b = dense(next(keys), layer_width, layer_width)
            w_mid.append(w)
            b_trunk.append(b)
        w, b = dense(next(keys), layer_width, size_out)
        w_back.append(w); b_back.append(b)
        w, b = dense(next(keys), layer_width, size_out)
        w_enc.append(w); b_enc.append(b)

    packed = {
        "w_first0": w_first0.astype(compute_dtype),             # (size_in, width)
        "b_trunk": jnp.stack(b_trunk),                          # (nb*nl, 1, width)  f32
        "w_back": jnp.stack(w_back).astype(compute_dtype),      # (nb, width, size_out)
        "b_back": jnp.stack(b_back),                            # (nb, 1, size_out)  f32
        "w_enc": jnp.stack(w_enc).astype(compute_dtype),        # (nb, width, size_out)
        "b_enc": jnp.stack(b_enc),                              # (nb, 1, size_out)  f32
    }
    if num_blocks > 1:
        packed["w_first_rest"] = jnp.stack(w_first_rest).astype(compute_dtype)
    if num_layers > 1:
        packed["w_mid"] = jnp.stack(w_mid).astype(compute_dtype)
    return packed


def reference(x, weights, packed, num_blocks, num_layers, eps=1e-6,
              compute_dtype=jnp.bfloat16):
    w = weights[..., None].astype(jnp.float32)                            # (B, N, 1)
    w_sum = jnp.maximum(w.sum(axis=1, keepdims=True), eps)                # (B, 1, 1)
    backcast = x.astype(jnp.float32)
    encoding = 0.0
    for i in range(num_blocks):
        h = backcast
        for l in range(num_layers):
            if i == 0 and l == 0:
                W = packed["w_first0"]
            elif l == 0:
                W = packed["w_first_rest"][i - 1]
            else:
                W = packed["w_mid"][i * (num_layers - 1) + (l - 1)]
            b = packed["b_trunk"][i * num_layers + l]
            h = jax.nn.relu(jnp.dot(h.astype(compute_dtype), W,
                                    preferred_element_type=jnp.float32) + b)
        hb = h.astype(compute_dtype)
        backcast = (jnp.dot(hb, packed["w_back"][i],
                            preferred_element_type=jnp.float32) + packed["b_back"][i])
        e = jnp.dot(hb, packed["w_enc"][i],
                    preferred_element_type=jnp.float32) + packed["b_enc"][i]
        encoding = encoding + e
        if i < num_blocks - 1:
            prototype = (encoding * w).sum(axis=-2, keepdims=True) / w_sum
            backcast = jax.nn.relu(backcast - prototype / (i + 1.0))
    embedding = (encoding * w).sum(axis=-2, keepdims=True) / w_sum
    return jnp.squeeze(embedding, axis=-2)


if __name__ == "__main__":
    # Small, module-consistent shapes.  Batch chosen so batch tiling is exercised on both
    # single-TC chips (whole batch in one step) and v7x (>= 2 steps per TensorCore).
    B, N = 64, 8                    # batch, number of effectors/prototypes
    size_in, size_out = 16, 32
    layer_width = 32
    num_blocks, num_layers = 3, 2
    eps = 1e-6
    compute_dtype = jnp.bfloat16    # MXU operand dtype (accumulation stays f32)

    key = jax.random.PRNGKey(0)
    kx, kw, kp = jax.random.split(key, 3)
    x = jax.random.normal(kx, (B, N, size_in), jnp.float32)
    weights = jax.random.uniform(kw, (B, N), jnp.float32)
    packed = make_packed_params(kp, size_in, size_out, num_blocks, num_layers,
                                layer_width, compute_dtype)

    run = functools.partial(weighted_proto_encoder,
                            num_blocks=num_blocks, num_layers=num_layers,
                            eps=eps, compute_dtype=compute_dtype)
    out = jax.block_until_ready(jax.jit(run)(x, weights, packed))

    ref = jax.block_until_ready(
        reference(x, weights, packed, num_blocks, num_layers, eps, compute_dtype))

    assert out.shape == (B, size_out), out.shape
    assert jnp.allclose(out, ref, rtol=2e-3, atol=2e-3), float(jnp.max(jnp.abs(out - ref)))
    print("KERNEL_OK")
</pallas_src>

<mosaic_0001>
module attributes {stable_mosaic.version = 11 : i64} {
  func.func @kernel(%arg0: i32, %arg1: i32, %arg2: memref<64x8x16xf32, #tpu.memory_space<vmem>>, %arg3: memref<64x8xf32, #tpu.memory_space<vmem>>, %arg4: memref<16x32xbf16, #tpu.memory_space<vmem>>, %arg5: memref<1x32x32xbf16, #tpu.memory_space<vmem>>, %arg6: memref<1x32x32xbf16, #tpu.memory_space<vmem>>, %arg7: memref<2x1x32xf32, #tpu.memory_space<vmem>>, %arg8: memref<1x32x32xbf16, #tpu.memory_space<vmem>>, %arg9: memref<1x1x32xf32, #tpu.memory_space<vmem>>, %arg10: memref<1x32x32xbf16, #tpu.memory_space<vmem>>, %arg11: memref<1x1x32xf32, #tpu.memory_space<vmem>>, %arg12: memref<64x32xf32, #tpu.memory_space<vmem>>, %arg13: memref<512x32xf32, #tpu.memory_space<vmem>>, %arg14: memref<512x32xf32, #tpu.memory_space<vmem>>, %arg15: memref<512x32xf32, #tpu.memory_space<vmem>>) attributes {dimension_semantics = [#tpu.dimension_semantics<parallel>, #tpu.dimension_semantics<arbitrary>], iteration_bounds = array<i64: 1, 3>, scalar_prefetch = 0 : i64, scratch_operands = 3 : i64, tpu.core_type = #tpu.core_type<tc>, window_params = [{transform_indices = @transform_0, window_bounds = array<i64: 64, 8, 16>}, {transform_indices = @transform_1, window_bounds = array<i64: 64, 8>}, {pipeline_mode = #tpu.pipeline_mode<synchronous>, transform_indices = @transform_2, window_bounds = array<i64: 16, 32>}, {transform_indices = @transform_3, window_bounds = array<i64: 1, 32, 32>}, {transform_indices = @transform_4, window_bounds = array<i64: 1, 32, 32>}, {transform_indices = @transform_5, window_bounds = array<i64: 2, 1, 32>}, {transform_indices = @transform_6, window_bounds = array<i64: 1, 32, 32>}, {transform_indices = @transform_7, window_bounds = array<i64: 1, 1, 32>}, {transform_indices = @transform_8, window_bounds = array<i64: 1, 32, 32>}, {transform_indices = @transform_9, window_bounds = array<i64: 1, 1, 32>}, {transform_indices = @transform_10, window_bounds = array<i64: 64, 32>}]} {
    %c0 = arith.constant 0 : index
    %c0_0 = arith.constant 0 : index
    %0 = vector.load %arg3[%c0, %c0_0] : memref<64x8xf32, #tpu.memory_space<vmem>>, vector<64x8xf32>
    %1 = vector.shape_cast %0 : vector<64x8xf32> to vector<64x8x1xf32>
    %cst = arith.constant dense<0.000000e+00> : vector<64x1xf32>
    %2 = vector.multi_reduction <add>, %1, %cst [1] : vector<64x8x1xf32> to vector<64x1xf32>
    %3 = vector.shape_cast %2 : vector<64x1xf32> to vector<64x1x1xf32>
    %cst_1 = arith.constant 9.99999997E-7 : f32
    %4 = vector.broadcast %cst_1 : f32 to vector<64x1x1xf32>
    %5 = arith.maximumf %3, %4 : vector<64x1x1xf32>
    %6 = tpu.reciprocal %5 {approx = true} : vector<64x1x1xf32> -> vector<64x1x1xf32>
    %7 = arith.mulf %5, %6 : vector<64x1x1xf32>
    %cst_2 = arith.constant 2.000000e+00 : f32
    %8 = vector.broadcast %cst_2 : f32 to vector<64x1x1xf32>
    %9 = arith.subf %8, %7 : vector<64x1x1xf32>
    %10 = arith.mulf %6, %9 : vector<64x1x1xf32>
    %c0_i32 = arith.constant 0 : i32
    %11 = arith.cmpi eq, %arg1, %c0_i32 : i32
    %12 = arith.extui %11 : i1 to i32
    %c0_i32_3 = arith.constant 0 : i32
    %13 = arith.cmpi ne, %12, %c0_i32_3 : i32
    scf.if %13 {
      %cst_41 = arith.constant 0.000000e+00 : f32
      %57 = vector.broadcast %cst_41 : f32 to vector<512x32xf32>
      %c0_42 = arith.constant 0 : index
      %c0_43 = arith.constant 0 : index
      %58 = vector.load %arg14[%c0_42, %c0_43] : memref<512x32xf32, #tpu.memory_space<vmem>>, vector<512x32xf32>
      tpu.vector_store %arg14[%c0_42, %c0_43], %57 {strides = array<i32>} : memref<512x32xf32, #tpu.memory_space<vmem>>, vector<512x32xf32>,
    } else {
    }
    %c0_4 = arith.constant 0 : index
    %c0_5 = arith.constant 0 : index
    %c0_6 = arith.constant 0 : index
    %14 = vector.load %arg7[%c0_4, %c0_5, %c0_6] : memref<2x1x32xf32, #tpu.memory_space<vmem>>, vector<1x1x32xf32>
    %15 = vector.shape_cast %14 : vector<1x1x32xf32> to vector<1x32xf32>
    %c0_i32_7 = arith.constant 0 : i32
    %16 = arith.cmpi eq, %arg1, %c0_i32_7 : i32
    %17 = arith.extui %16 : i1 to i32
    %c0_i32_8 = arith.constant 0 : i32
    %18 = arith.cmpi ne, %17, %c0_i32_8 : i32
    scf.if %18 {
      %c0_41 = arith.constant 0 : index
      %c0_42 = arith.constant 0 : index
      %c0_43 = arith.constant 0 : index
      %57 = vector.load %arg2[%c0_41, %c0_42, %c0_43] : memref<64x8x16xf32, #tpu.memory_space<vmem>>, vector<64x8x16xf32>
      %58 = vector.shape_cast %57 : vector<64x8x16xf32> to vector<512x16xf32>
      %59 = arith.truncf %58 : vector<512x16xf32> to vector<512x16xbf16>
      %c0_44 = arith.constant 0 : index
      %c0_45 = arith.constant 0 : index
      %60 = vector.load %arg4[%c0_44, %c0_45] : memref<16x32xbf16, #tpu.memory_space<vmem>>, vector<16x32xbf16>
      %cst_46 = arith.constant dense<0.000000e+00> : vector<512x32xf32>
      %61 = tpu.matmul %59, %60, %cst_46 {dimension_numbers = #tpu.dot_dimension_numbers<[1], [0], [0], [1], [0, 0, 1, 1], [], []>} : vector<512x16xbf16>, vector<16x32xbf16>, vector<512x32xf32> -> vector<512x32xf32>
      %62 = vector.broadcast %15 : vector<1x32xf32> to vector<512x32xf32>
      %63 = arith.addf %61, %62 : vector<512x32xf32>
      %cst_47 = arith.constant 0.000000e+00 : f32
      %64 = vector.broadcast %cst_47 : f32 to vector<512x32xf32>
      %65 = arith.maximumf %63, %64 : vector<512x32xf32>
      %c0_48 = arith.constant 0 : index
      %c0_49 = arith.constant 0 : index
      %66 = vector.load %arg15[%c0_48, %c0_49] : memref<512x32xf32, #tpu.memory_space<vmem>>, vector<512x32xf32>
      tpu.vector_store %arg15[%c0_48, %c0_49], %65 {strides = array<i32>} : memref<512x32xf32, #tpu.memory_space<vmem>>, vector<512x32xf32>,
    } else {
    }
    %c0_i32_9 = arith.constant 0 : i32
    %19 = arith.cmpi ne, %arg1, %c0_i32_9 : i32
    %20 = arith.extui %19 : i1 to i32
    %c0_i32_10 = arith.constant 0 : i32
    %21 = arith.cmpi ne, %20, %c0_i32_10 : i32
    scf.if %21 {
      %c0_41 = arith.constant 0 : index
      %c0_42 = arith.constant 0 : index
      %57 = vector.load %arg13[%c0_41, %c0_42] : memref<512x32xf32, #tpu.memory_space<vmem>>, vector<512x32xf32>
      %58 = arith.truncf %57 : vector<512x32xf32> to vector<512x32xbf16>
      %c0_43 = arith.constant 0 : index
      %c0_44 = arith.constant 0 : index
      %c0_45 = arith.constant 0 : index
      %59 = vector.load %arg5[%c0_43, %c0_44, %c0_45] : memref<1x32x32xbf16, #tpu.memory_space<vmem>>, vector<1x32x32xbf16>
      %60 = vector.shape_cast %59 : vector<1x32x32xbf16> to vector<32x32xbf16>
      %cst_46 = arith.constant dense<0.000000e+00> : vector<512x32xf32>
      %61 = tpu.matmul %58, %60, %cst_46 {dimension_numbers = #tpu.dot_dimension_numbers<[1], [0], [0], [1], [0, 0, 1, 1], [], []>} : vector<512x32xbf16>, vector<32x32xbf16>, vector<512x32xf32> -> vector<512x32xf32>
      %62 = vector.broadcast %15 : vector<1x32xf32> to vector<512x32xf32>
      %63 = arith.addf %61, %62 : vector<512x32xf32>
      %cst_47 = arith.constant 0.000000e+00 : f32
      %64 = vector.broadcast %cst_47 : f32 to vector<512x32xf32>
      %65 = arith.maximumf %63, %64 : vector<512x32xf32>
      %c0_48 = arith.constant 0 : index
      %c0_49 = arith.constant 0 : index
      %66 = vector.load %arg15[%c0_48, %c0_49] : memref<512x32xf32, #tpu.memory_space<vmem>>, vector<512x32xf32>
      tpu.vector_store %arg15[%c0_48, %c0_49], %65 {strides = array<i32>} : memref<512x32xf32, #tpu.memory_space<vmem>>, vector<512x32xf32>,
    } else {
    }
    %c0_11 = arith.constant 0 : index
    %c0_12 = arith.constant 0 : index
    %22 = vector.load %arg15[%c0_11, %c0_12] : memref<512x32xf32, #tpu.memory_space<vmem>>, vector<512x32xf32>
    %23 = arith.truncf %22 : vector<512x32xf32> to vector<512x32xbf16>
    %c0_13 = arith.constant 0 : index
    %c0_14 = arith.constant 0 : index
    %c0_15 = arith.constant 0 : index
    %24 = vector.load %arg6[%c0_13, %c0_14, %c0_15] : memref<1x32x32xbf16, #tpu.memory_space<vmem>>, vector<1x32x32xbf16>
    %25 = vector.shape_cast %24 : vector<1x32x32xbf16> to vector<32x32xbf16>
    %cst_16 = arith.constant dense<0.000000e+00> : vector<512x32xf32>
    %26 = tpu.matmul %23, %25, %cst_16 {dimension_numbers = #tpu.dot_dimension_numbers<[1], [0], [0], [1], [0, 0, 1, 1], [], []>} : vector<512x32xbf16>, vector<32x32xbf16>, vector<512x32xf32> -> vector<512x32xf32>
    %c1 = arith.constant 1 : index
    %c0_17 = arith.constant 0 : index
    %c0_18 = arith.constant 0 : index
    %27 = vector.load %arg7[%c1, %c0_17, %c0_18] : memref<2x1x32xf32, #tpu.memory_space<vmem>>, vector<1x1x32xf32>
    %28 = vector.shape_cast %27 : vector<1x1x32xf32> to vector<1x32xf32>
    %29 = vector.broadcast %28 : vector<1x32xf32> to vector<512x32xf32>
    %30 = arith.addf %26, %29 : vector<512x32xf32>
    %cst_19 = arith.constant 0.000000e+00 : f32
    %31 = vector.broadcast %cst_19 : f32 to vector<512x32xf32>
    %32 = arith.maximumf %30, %31 : vector<512x32xf32>
    %33 = arith.truncf %32 : vector<512x32xf32> to vector<512x32xbf16>
    %c0_20 = arith.constant 0 : index
    %c0_21 = arith.constant 0 : index
    %c0_22 = arith.constant 0 : index
    %34 = vector.load %arg8[%c0_20, %c0_21, %c0_22] : memref<1x32x32xbf16, #tpu.memory_space<vmem>>, vector<1x32x32xbf16>
    %35 = vector.shape_cast %34 : vector<1x32x32xbf16> to vector<32x32xbf16>
    %cst_23 = arith.constant dense<0.000000e+00> : vector<512x32xf32>
    %36 = tpu.matmul %33, %35, %cst_23 {dimension_numbers = #tpu.dot_dimension_numbers<[1], [0], [0], [1], [0, 0, 1, 1], [], []>} : vector<512x32xbf16>, vector<32x32xbf16>, vector<512x32xf32> -> vector<512x32xf32>
    %c0_24 = arith.constant 0 : index
    %c0_25 = arith.constant 0 : index
    %c0_26 = arith.constant 0 : index
    %37 = vector.load %arg9[%c0_24, %c0_25, %c0_26] : memref<1x1x32xf32, #tpu.memory_space<vmem>>, vector<1x1x32xf32>
    %38 = vector.shape_cast %37 : vector<1x1x32xf32> to vector<1x32xf32>
    %39 = vector.broadcast %38 : vector<1x32xf32> to vector<512x32xf32>
    %40 = arith.addf %36, %39 : vector<512x32xf32>
    %c0_27 = arith.constant 0 : index
    %c0_28 = arith.constant 0 : index
    %c0_29 = arith.constant 0 : index
    %41 = vector.load %arg10[%c0_27, %c0_28, %c0_29] : memref<1x32x32xbf16, #tpu.memory_space<vmem>>, vector<1x32x32xbf16>
    %42 = vector.shape_cast %41 : vector<1x32x32xbf16> to vector<32x32xbf16>
    %cst_30 = arith.constant dense<0.000000e+00> : vector<512x32xf32>
    %43 = tpu.matmul %33, %42, %cst_30 {dimension_numbers = #tpu.dot_dimension_numbers<[1], [0], [0], [1], [0, 0, 1, 1], [], []>} : vector<512x32xbf16>, vector<32x32xbf16>, vector<512x32xf32> -> vector<512x32xf32>
    %c0_31 = arith.constant 0 : index
    %c0_32 = arith.constant 0 : index
    %c0_33 = arith.constant 0 : index
    %44 = vector.load %arg11[%c0_31, %c0_32, %c0_33] : memref<1x1x32xf32, #tpu.memory_space<vmem>>, vector<1x1x32xf32>
    %45 = vector.shape_cast %44 : vector<1x1x32xf32> to vector<1x32xf32>
    %46 = vector.broadcast %45 : vector<1x32xf32> to vector<512x32xf32>
    %47 = arith.addf %43, %46 : vector<512x32xf32>
    %c0_34 = arith.constant 0 : index
    %c0_35 = arith.constant 0 : index
    %48 = vector.load %arg14[%c0_34, %c0_35] : memref<512x32xf32, #tpu.memory_space<vmem>>, vector<512x32xf32>
    %49 = arith.addf %48, %47 : vector<512x32xf32>
    %c0_36 = arith.constant 0 : index
    %c0_37 = arith.constant 0 : index
    %50 = vector.load %arg14[%c0_36, %c0_37] : memref<512x32xf32, #tpu.memory_space<vmem>>, vector<512x32xf32>
    tpu.vector_store %arg14[%c0_36, %c0_37], %49 {strides = array<i32>} : memref<512x32xf32, #tpu.memory_space<vmem>>, vector<512x32xf32>,
    %c2_i32 = arith.constant 2 : i32
    %51 = arith.cmpi slt, %arg1, %c2_i32 : i32
    %52 = arith.extui %51 : i1 to i32
    %c0_i32_38 = arith.constant 0 : i32
    %53 = arith.cmpi ne, %52, %c0_i32_38 : i32
    scf.if %53 {
      %c0_41 = arith.constant 0 : index
      %c0_42 = arith.constant 0 : index
      %57 = vector.load %arg14[%c0_41, %c0_42] : memref<512x32xf32, #tpu.memory_space<vmem>>, vector<512x32xf32>
      %58 = vector.shape_cast %57 : vector<512x32xf32> to vector<64x8x32xf32>
      %c1_i32 = arith.constant 1 : i32
      %59 = arith.addi %arg1, %c1_i32 : i32
      %60 = arith.sitofp %59 : i32 to f32
      %61 = vector.broadcast %60 : f32 to vector<64x1x1xf32>
      %62 = arith.divf %10, %61 : vector<64x1x1xf32>
      %63 = vector.broadcast %1 : vector<64x8x1xf32> to vector<64x8x32xf32>
      %64 = arith.mulf %58, %63 : vector<64x8x32xf32>
      %cst_43 = arith.constant dense<0.000000e+00> : vector<64x32xf32>
      %65 = vector.multi_reduction <add>, %64, %cst_43 [1] : vector<64x8x32xf32> to vector<64x32xf32>
      %66 = vector.shape_cast %65 : vector<64x32xf32> to vector<64x1x32xf32>
      %67 = vector.broadcast %62 : vector<64x1x1xf32> to vector<64x1x32xf32>
      %68 = arith.mulf %66, %67 : vector<64x1x32xf32>
      %69 = vector.shape_cast %40 : vector<512x32xf32> to vector<64x8x32xf32>
      %70 = vector.broadcast %68 : vector<64x1x32xf32> to vector<64x8x32xf32>
      %71 = arith.subf %69, %70 : vector<64x8x32xf32>
      %cst_44 = arith.constant 0.000000e+00 : f32
      %72 = vector.broadcast %cst_44 : f32 to vector<64x8x32xf32>
      %73 = arith.maximumf %71, %72 : vector<64x8x32xf32>
      %74 = vector.shape_cast %73 : vector<64x8x32xf32> to vector<512x32xf32>
      %c0_45 = arith.constant 0 : index
      %c0_46 = arith.constant 0 : index
      %75 = vector.load %arg13[%c0_45, %c0_46] : memref<512x32xf32, #tpu.memory_space<vmem>>, vector<512x32xf32>
      tpu.vector_store %arg13[%c0_45, %c0_46], %74 {strides = array<i32>} : memref<512x32xf32, #tpu.memory_space<vmem>>, vector<512x32xf32>,
    } else {
    }
    %c2_i32_39 = arith.constant 2 : i32
    %54 = arith.cmpi eq, %arg1, %c2_i32_39 : i32
    %55 = arith.extui %54 : i1 to i32
    %c0_i32_40 = arith.constant 0 : i32
    %56 = arith.cmpi ne, %55, %c0_i32_40 : i32
    scf.if %56 {
      %c0_41 = arith.constant 0 : index
      %c0_42 = arith.constant 0 : index
      %57 = vector.load %arg14[%c0_41, %c0_42] : memref<512x32xf32, #tpu.memory_space<vmem>>, vector<512x32xf32>
      %58 = vector.shape_cast %57 : vector<512x32xf32> to vector<64x8x32xf32>
      %59 = vector.broadcast %1 : vector<64x8x1xf32> to vector<64x8x32xf32>
      %60 = arith.mulf %58, %59 : vector<64x8x32xf32>
      %cst_43 = arith.constant dense<0.000000e+00> : vector<64x32xf32>
      %61 = vector.multi_reduction <add>, %60, %cst_43 [1] : vector<64x8x32xf32> to vector<64x32xf32>
      %62 = vector.shape_cast %61 : vector<64x32xf32> to vector<64x1x32xf32>
      %63 = vector.broadcast %10 : vector<64x1x1xf32> to vector<64x1x32xf32>
      %64 = arith.mulf %62, %63 : vector<64x1x32xf32>
      %65 = vector.shape_cast %64 : vector<64x1x32xf32> to vector<64x32xf32>
      %c0_44 = arith.constant 0 : index
      %c0_45 = arith.constant 0 : index
      %66 = vector.load %arg12[%c0_44, %c0_45] : memref<64x32xf32, #tpu.memory_space<vmem>>, vector<64x32xf32>
      tpu.vector_store %arg12[%c0_44, %c0_45], %65 {strides = array<i32>} : memref<64x32xf32, #tpu.memory_space<vmem>>, vector<64x32xf32>,
    } else {
    }
    return
  }
  func.func @transform_0(%arg0: i32, %arg1: i32) -> (i32, i32, i32) {
    %c0_i32 = arith.constant 0 : i32
    %c0_i32_0 = arith.constant 0 : i32
    %c0_i32_1 = arith.constant 0 : i32
    return %arg0, %c0_i32, %c0_i32_0 : i32, i32, i32
  }
  func.func @transform_1(%arg0: i32, %arg1: i32) -> (i32, i32) {
    %c0_i32 = arith.constant 0 : i32
    %c0_i32_0 = arith.constant 0 : i32
    return %arg0, %c0_i32 : i32, i32
  }
  func.func @transform_2(%arg0: i32, %arg1: i32) -> (i32, i32) {
    %c0_i32 = arith.constant 0 : i32
    %c0_i32_0 = arith.constant 0 : i32
    %c0_i32_1 = arith.constant 0 : i32
    return %c0_i32, %c0_i32_0 : i32, i32
  }
  func.func @transform_3(%arg0: i32, %arg1: i32) -> (i32, i32, i32) {
    %c1_i32 = arith.constant 1 : i32
    %0 = arith.subi %arg1, %c1_i32 : i32
    %c0_i32 = arith.constant 0 : i32
    %1 = arith.maxsi %0, %c0_i32 : i32
    %c0_i32_0 = arith.constant 0 : i32
    %c0_i32_1 = arith.constant 0 : i32
    %c0_i32_2 = arith.constant 0 : i32
    return %1, %c0_i32_0, %c0_i32_1 : i32, i32, i32
  }
  func.func @transform_4(%arg0: i32, %arg1: i32) -> (i32, i32, i32) {
    %c0_i32 = arith.constant 0 : i32
    %c0_i32_0 = arith.constant 0 : i32
    %c0_i32_1 = arith.constant 0 : i32
    return %arg1, %c0_i32, %c0_i32_0 : i32, i32, i32
  }
  func.func @transform_5(%arg0: i32, %arg1: i32) -> (i32, i32, i32) {
    %c0_i32 = arith.constant 0 : i32
    %c0_i32_0 = arith.constant 0 : i32
    %c0_i32_1 = arith.constant 0 : i32
    return %arg1, %c0_i32, %c0_i32_0 : i32, i32, i32
  }
  func.func @transform_6(%arg0: i32, %arg1: i32) -> (i32, i32, i32) {
    %c0_i32 = arith.constant 0 : i32
    %c0_i32_0 = arith.constant 0 : i32
    %c0_i32_1 = arith.constant 0 : i32
    return %arg1, %c0_i32, %c0_i32_0 : i32, i32, i32
  }
  func.func @transform_7(%arg0: i32, %arg1: i32) -> (i32, i32, i32) {
    %c0_i32 = arith.constant 0 : i32
    %c0_i32_0 = arith.constant 0 : i32
    %c0_i32_1 = arith.constant 0 : i32
    return %arg1, %c0_i32, %c0_i32_0 : i32, i32, i32
  }
  func.func @transform_8(%arg0: i32, %arg1: i32) -> (i32, i32, i32) {
    %c0_i32 = arith.constant 0 : i32
    %c0_i32_0 = arith.constant 0 : i32
    %c0_i32_1 = arith.constant 0 : i32
    return %arg1, %c0_i32, %c0_i32_0 : i32, i32, i32
  }
  func.func @transform_9(%arg0: i32, %arg1: i32) -> (i32, i32, i32) {
    %c0_i32 = arith.constant 0 : i32
    %c0_i32_0 = arith.constant 0 : i32
    %c0_i32_1 = arith.constant 0 : i32
    return %arg1, %c0_i32, %c0_i32_0 : i32, i32, i32
  }
  func.func @transform_10(%arg0: i32, %arg1: i32) -> (i32, i32) {
    %c0_i32 = arith.constant 0 : i32
    %c0_i32_0 = arith.constant 0 : i32
    return %arg0, %c0_i32 : i32, i32
  }
}

</mosaic_0001>

<llo_original>
// kernel: weighted_proto_encoder.1
$region0: #{weighted_proto_encoder.1}
  #allocation0 [shape = 'u32[]', space=smem, size = 0x4, offset = 0x4, fixed_abs, tag = 'smem constant byte address 0x4 - core index']
  #allocation1 [shape = 'u32[72,128]{1,0:T(1,128)}', space=vmem, size = 0x9000, scoped, tag = 'internal scratch']
  #allocation2 [shape = 'f32[512,32]{1,0:T(8,128)}', space=vmem, size = 0x40000, scoped, tag = 'scratch operand']
  #allocation3 [shape = 'f32[512,32]{1,0:T(8,128)}', space=vmem, size = 0x40000, scoped, tag = 'scratch operand']
  #allocation4 [shape = 'f32[512,32]{1,0:T(8,128)}', space=vmem, size = 0x40000, scoped, tag = 'scratch operand']
  %s0 = inlined_call_operand.vmem [shape: f32[64,8,16], index: 0, kind: input, shape index: {}]
  %s1 = inlined_call_operand.vmem [shape: f32[64,8], index: 1, kind: input, shape index: {}]
  %s2 = inlined_call_operand.vmem [shape: bf16[16,32], index: 2, kind: input, shape index: {}]
  %s3 = inlined_call_operand.vmem [shape: bf16[2,32,32], index: 3, kind: input, shape index: {}]
  %s4 = inlined_call_operand.vmem [shape: bf16[3,32,32], index: 4, kind: input, shape index: {}]
  %s5 = inlined_call_operand.vmem [shape: f32[6,1,32], index: 5, kind: input, shape index: {}]
  %s6 = inlined_call_operand.vmem [shape: bf16[3,32,32], index: 6, kind: input, shape index: {}]
  %s7 = inlined_call_operand.vmem [shape: f32[3,1,32], index: 7, kind: input, shape index: {}]
  %s8 = inlined_call_operand.vmem [shape: bf16[3,32,32], index: 8, kind: input, shape index: {}]
  %s9 = inlined_call_operand.vmem [shape: f32[3,1,32], index: 9, kind: input, shape index: {}]
  %s10 = inlined_call_operand.vmem [shape: f32[64,32], index: 10, kind: output, shape index: {}]
  %s11 = sld [smem:[#allocation0]]
  $region93: #{weighted_proto_encoder.1} parent=0
    _
  %s13 = ssub.s32 1, %s11
  %s14 = scalar_select 0, %s13, %s11
  loop: start=0, step=1, limit=5
  $region2: #{weighted_proto_encoder.1} parent=0 // loop_pre_header
    _
  $region3: #{weighted_proto_encoder.1} parent=0 // loop_header
    %s16 = sphi 0, %s20
    %p17 = scmp.ge.s32.totalorder %s16, 5
    %s23 = sphi 0, %s35
    %s24 = sphi 0, %s31
    %s25 = sphi 0, %s23
    %s26 = sphi 0, %s24
    %s27 = sphi 0, %s25
    %s28 = sphi 0, %s26
    %s38 = sphi 0, %s40
    %s41 = sphi 0, %s38
    %s42 = sphi 0, %s41
    %s58 = sphi 0, %s42
    %s64 = sphi 0, %s66
    %s67 = sphi 0, %s64
    %s68 = sphi 0, %s67
    %s84 = sphi 0, %s68
    %s88 = sphi 0, %s88
    %s90 = sphi 0, %s88
    %s91 = sphi 0, %s90
    %s105 = sphi 0, %s91
    %s117 = sphi 0, %s119
    %s120 = sphi 0, %s117
    %s121 = sphi 0, %s120
    %s137 = sphi 0, %s121
    %s143 = sphi 0, %s145
    %s146 = sphi 0, %s143
    %s147 = sphi 0, %s146
    %s163 = sphi 0, %s147
    %s169 = sphi 0, %s171
    %s172 = sphi 0, %s169
    %s173 = sphi 0, %s172
    %s189 = sphi 0, %s173
    %s195 = sphi 0, %s197
    %s198 = sphi 0, %s195
    %s199 = sphi 0, %s198
    %s215 = sphi 0, %s199
    %s221 = sphi 0, %s223
    %s224 = sphi 0, %s221
    %s225 = sphi 0, %s224
    %s241 = sphi 0, %s225
    %s247 = sphi 0, %s249
    %s250 = sphi 0, %s247
    %s251 = sphi 0, %s250
    %s267 = sphi 0, %s251
    %s273 = sphi 0, %s275
    %s276 = sphi 0, %s273
    %s277 = sphi 0, %s276
    %s293 = sphi 0, %s277
    %s299 = sphi 0, %s301
    %s302 = sphi 0, %s299
    %s303 = sphi 0, %s302
    %s319 = sphi 0, %s303
  $region4: #{weighted_proto_encoder.1} parent=0 // loop_header_branch
    %19 = sbr.rel (%p17) target = $region8
  $region5: #{weighted_proto_encoder.1} parent=0 // loop_body
    %s21 = ssub.s32 %s16, 1
    %s22 = ssub.s32 %s16, 2
    %s29 = sadd.s32 1, %s24
    %p30 = scmp.ge.s32.totalorder %s29, 3
    %s31 = scalar_select %p30, 0, %s29
    %s32 = sadd.s32 1, %s23
    %s33 = scalar_select %p30, %s32, %s23
    %p34 = scmp.ge.s32.totalorder %s33, 1
    %s35 = scalar_select %p34, 0, %s33
    %s36 = ssub.s32 %s23, %s35
    %p37 = scmp.eq.s32.totalorder %s36, 0
    %s39 = sadd.s32 %s38, 1
    %s40 = scalar_select %p37, %s38, %s39
    %p43 = pneg %p37
    %p44 = scmp.eq.s32.totalorder %s16, 2
    %p45 = por %p43, %p44
    %p46 = scmp.ne.s32.totalorder %s38, %s41
    %p47 = scmp.eq.s32.totalorder %s16, 0
    %p48 = por %p46, %p47
    %p49 = scmp.ne.s32.totalorder %s38, %s41
    %p50 = scmp.eq.s32.totalorder %s21, 2
    %p51 = por %p49, %p50
    %p52 = scmp.ne.s32.totalorder %s41, %s42
    %p53 = scmp.eq.s32.totalorder %s21, 0
    %p54 = por %p52, %p53
    %p55 = scmp.ne.s32.totalorder %s41, %s42
    %p56 = scmp.eq.s32.totalorder %s22, 2
    %p57 = por %p55, %p56
    %p59 = scmp.ne.s32.totalorder %s42, %s58
    %p60 = scmp.eq.s32.totalorder %s22, 0
    %p61 = por %p59, %p60
    %s62 = ssub.s32 %s23, %s35
    %p63 = scmp.eq.s32.totalorder %s62, 0
    %s65 = sadd.s32 %s64, 1
    %s66 = scalar_select %p63, %s64, %s65
    %p69 = pneg %p63
    %p70 = scmp.eq.s32.totalorder %s16, 2
    %p71 = por %p69, %p70
    %p72 = scmp.ne.s32.totalorder %s64, %s67
    %p73 = scmp.eq.s32.totalorder %s16, 0
    %p74 = por %p72, %p73
    %p75 = scmp.ne.s32.totalorder %s64, %s67
    %p76 = scmp.eq.s32.totalorder %s21, 2
    %p77 = por %p75, %p76
    %p78 = scmp.ne.s32.totalorder %s67, %s68
    %p79 = scmp.eq.s32.totalorder %s21, 0
    %p80 = por %p78, %p79
    %p81 = scmp.ne.s32.totalorder %s67, %s68
    %p82 = scmp.eq.s32.totalorder %s22, 2
    %p83 = por %p81, %p82
    %p85 = scmp.ne.s32.totalorder %s68, %s84
    %p86 = scmp.eq.s32.totalorder %s22, 0
    %p87 = por %p85, %p86
    %s89 = sadd.s32 %s88, 1
    %p92 = scmp.eq.s32.totalorder %s16, 2
    %p93 = scmp.ne.s32.totalorder %s88, %s90
    %p94 = scmp.eq.s32.totalorder %s16, 0
    %p95 = por %p93, %p94
    %p96 = scmp.ne.s32.totalorder %s88, %s90
    %p97 = scmp.eq.s32.totalorder %s21, 2
    %p98 = por %p96, %p97
    %p99 = scmp.ne.s32.totalorder %s90, %s91
    %p100 = scmp.eq.s32.totalorder %s21, 0
    %p101 = por %p99, %p100
    %p102 = scmp.ne.s32.totalorder %s90, %s91
    %p103 = scmp.eq.s32.totalorder %s22, 2
    %p104 = por %p102, %p103
    %p106 = scmp.ne.s32.totalorder %s91, %s105
    %p107 = scmp.eq.s32.totalorder %s22, 0
    %p108 = por %p106, %p107
    %s109 = ssub.s32 %s24, 1
    %p110 = scmp.gt.s32.totalorder %s109, 0
    %s111 = scalar_select %p110, %s109, 0
    %s112 = ssub.s32 %s31, 1
    %p113 = scmp.gt.s32.totalorder %s112, 0
    %s114 = scalar_select %p113, %s112, 0
    %s115 = ssub.s32 %s111, %s114
    %p116 = scmp.eq.s32.totalorder %s115, 0
    %s118 = sadd.s32 %s117, 1
    %s119 = scalar_select %p116, %s117, %s118
    %p122 = pneg %p116
    %p123 = scmp.eq.s32.totalorder %s16, 2
    %p124 = por %p122, %p123
    %p125 = scmp.ne.s32.totalorder %s117, %s120
    %p126 = scmp.eq.s32.totalorder %s16, 0
    %p127 = por %p125, %p126
    %p128 = scmp.ne.s32.totalorder %s117, %s120
    %p129 = scmp.eq.s32.totalorder %s21, 2
    %p130 = por %p128, %p129
    %p131 = scmp.ne.s32.totalorder %s120, %s121
    %p132 = scmp.eq.s32.totalorder %s21, 0
    %p133 = por %p131, %p132
    %p134 = scmp.ne.s32.totalorder %s120, %s121
    %p135 = scmp.eq.s32.totalorder %s22, 2
    %p136 = por %p134, %p135
    %p138 = scmp.ne.s32.totalorder %s121, %s137
    %p139 = scmp.eq.s32.totalorder %s22, 0
    %p140 = por %p138, %p139
    %s141 = ssub.s32 %s24, %s31
    %p142 = scmp.eq.s32.totalorder %s141, 0
    %s144 = sadd.s32 %s143, 1
    %s145 = scalar_select %p142, %s143, %s144
    %p148 = pneg %p142
    %p149 = scmp.eq.s32.totalorder %s16, 2
    %p150 = por %p148, %p149
    %p151 = scmp.ne.s32.totalorder %s143, %s146
    %p152 = scmp.eq.s32.totalorder %s16, 0
    %p153 = por %p151, %p152
    %p154 = scmp.ne.s32.totalorder %s143, %s146
    %p155 = scmp.eq.s32.totalorder %s21, 2
    %p156 = por %p154, %p155
    %p157 = scmp.ne.s32.totalorder %s146, %s147
    %p158 = scmp.eq.s32.totalorder %s21, 0
    %p159 = por %p157, %p158
    %p160 = scmp.ne.s32.totalorder %s146, %s147
    %p161 = scmp.eq.s32.totalorder %s22, 2
    %p162 = por %p160, %p161
    %p164 = scmp.ne.s32.totalorder %s147, %s163
    %p165 = scmp.eq.s32.totalorder %s22, 0
    %p166 = por %p164, %p165
    %s167 = ssub.s32 %s24, %s31
    %p168 = scmp.eq.s32.totalorder %s167, 0
    %s170 = sadd.s32 %s169, 1
    %s171 = scalar_select %p168, %s169, %s170
    %p174 = pneg %p168
    %p175 = scmp.eq.s32.totalorder %s16, 2
    %p176 = por %p174, %p175
    %p177 = scmp.ne.s32.totalorder %s169, %s172
    %p178 = scmp.eq.s32.totalorder %s16, 0
    %p179 = por %p177, %p178
    %p180 = scmp.ne.s32.totalorder %s169, %s172
    %p181 = scmp.eq.s32.totalorder %s21, 2
    %p182 = por %p180, %p181
    %p183 = scmp.ne.s32.totalorder %s172, %s173
    %p184 = scmp.eq.s32.totalorder %s21, 0
    %p185 = por %p183, %p184
    %p186 = scmp.ne.s32.totalorder %s172, %s173
    %p187 = scmp.eq.s32.totalorder %s22, 2
    %p188 = por %p186, %p187
    %p190 = scmp.ne.s32.totalorder %s173, %s189
    %p191 = scmp.eq.s32.totalorder %s22, 0
    %p192 = por %p190, %p191
    %s193 = ssub.s32 %s24, %s31
    %p194 = scmp.eq.s32.totalorder %s193, 0
    %s196 = sadd.s32 %s195, 1
    %s197 = scalar_select %p194, %s195, %s196
    %p200 = pneg %p194
    %p201 = scmp.eq.s32.totalorder %s16, 2
    %p202 = por %p200, %p201
    %p203 = scmp.ne.s32.totalorder %s195, %s198
    %p204 = scmp.eq.s32.totalorder %s16, 0
    %p205 = por %p203, %p204
    %p206 = scmp.ne.s32.totalorder %s195, %s198
    %p207 = scmp.eq.s32.totalorder %s21, 2
    %p208 = por %p206, %p207
    %p209 = scmp.ne.s32.totalorder %s198, %s199
    %p210 = scmp.eq.s32.totalorder %s21, 0
    %p211 = por %p209, %p210
    %p212 = scmp.ne.s32.totalorder %s198, %s199
    %p213 = scmp.eq.s32.totalorder %s22, 2
    %p214 = por %p212, %p213
    %p216 = scmp.ne.s32.totalorder %s199, %s215
    %p217 = scmp.eq.s32.totalorder %s22, 0
    %p218 = por %p216, %p217
    %s219 = ssub.s32 %s24, %s31
    %p220 = scmp.eq.s32.totalorder %s219, 0
    %s222 = sadd.s32 %s221, 1
    %s223 = scalar_select %p220, %s221, %s222
    %p226 = pneg %p220
    %p227 = scmp.eq.s32.totalorder %s16, 2
    %p228 = por %p226, %p227
    %p229 = scmp.ne.s32.totalorder %s221, %s224
    %p230 = scmp.eq.s32.totalorder %s16, 0
    %p231 = por %p229, %p230
    %p232 = scmp.ne.s32.totalorder %s221, %s224
    %p233 = scmp.eq.s32.totalorder %s21, 2
    %p234 = por %p232, %p233
    %p235 = scmp.ne.s32.totalorder %s224, %s225
    %p236 = scmp.eq.s32.totalorder %s21, 0
    %p237 = por %p235, %p236
    %p238 = scmp.ne.s32.totalorder %s224, %s225
    %p239 = scmp.eq.s32.totalorder %s22, 2
    %p240 = por %p238, %p239
    %p242 = scmp.ne.s32.totalorder %s225, %s241
    %p243 = scmp.eq.s32.totalorder %s22, 0
    %p244 = por %p242, %p243
    %s245 = ssub.s32 %s24, %s31
    %p246 = scmp.eq.s32.totalorder %s245, 0
    %s248 = sadd.s32 %s247, 1
    %s249 = scalar_select %p246, %s247, %s248
    %p252 = pneg %p246
    %p253 = scmp.eq.s32.totalorder %s16, 2
    %p254 = por %p252, %p253
    %p255 = scmp.ne.s32.totalorder %s247, %s250
    %p256 = scmp.eq.s32.totalorder %s16, 0
    %p257 = por %p255, %p256
    %p258 = scmp.ne.s32.totalorder %s247, %s250
    %p259 = scmp.eq.s32.totalorder %s21, 2
    %p260 = por %p258, %p259
    %p261 = scmp.ne.s32.totalorder %s250, %s251
    %p262 = scmp.eq.s32.totalorder %s21, 0
    %p263 = por %p261, %p262
    %p264 = scmp.ne.s32.totalorder %s250, %s251
    %p265 = scmp.eq.s32.totalorder %s22, 2
    %p266 = por %p264, %p265
    %p268 = scmp.ne.s32.totalorder %s251, %s267
    %p269 = scmp.eq.s32.totalorder %s22, 0
    %p270 = por %p268, %p269
    %s271 = ssub.s32 %s24, %s31
    %p272 = scmp.eq.s32.totalorder %s271, 0
    %s274 = sadd.s32 %s273, 1
    %s275 = scalar_select %p272, %s273, %s274
    %p278 = pneg %p272
    %p279 = scmp.eq.s32.totalorder %s16, 2
    %p280 = por %p278, %p279
    %p281 = scmp.ne.s32.totalorder %s273, %s276
    %p282 = scmp.eq.s32.totalorder %s16, 0
    %p283 = por %p281, %p282
    %p284 = scmp.ne.s32.totalorder %s273, %s276
    %p285 = scmp.eq.s32.totalorder %s21, 2
    %p286 = por %p284, %p285
    %p287 = scmp.ne.s32.totalorder %s276, %s277
    %p288 = scmp.eq.s32.totalorder %s21, 0
    %p289 = por %p287, %p288
    %p290 = scmp.ne.s32.totalorder %s276, %s277
    %p291 = scmp.eq.s32.totalorder %s22, 2
    %p292 = por %p290, %p291
    %p294 = scmp.ne.s32.totalorder %s277, %s293
    %p295 = scmp.eq.s32.totalorder %s22, 0
    %p296 = por %p294, %p295
    %s297 = ssub.s32 %s23, %s35
    %p298 = scmp.eq.s32.totalorder %s297, 0
    %s300 = sadd.s32 %s299, 1
    %s301 = scalar_select %p298, %s299, %s300
    %p304 = pneg %p298
    %p305 = scmp.eq.s32.totalorder %s16, 2
    %p306 = por %p304, %p305
    %p307 = scmp.ne.s32.totalorder %s299, %s302
    %p308 = scmp.eq.s32.totalorder %s16, 0
    %p309 = por %p307, %p308
    %p310 = scmp.ne.s32.totalorder %s299, %s302
    %p311 = scmp.eq.s32.totalorder %s21, 2
    %p312 = por %p310, %p311
    %p313 = scmp.ne.s32.totalorder %s302, %s303
    %p314 = scmp.eq.s32.totalorder %s21, 0
    %p315 = por %p313, %p314
    %p316 = scmp.ne.s32.totalorder %s302, %s303
    %p317 = scmp.eq.s32.totalorder %s22, 2
    %p318 = por %p316, %p317
    %p320 = scmp.ne.s32.totalorder %s303, %s319
    %p321 = scmp.eq.s32.totalorder %s22, 0
    %p322 = por %p320, %p321
    %p323 = scmp.le.s32.totalorder 1, %s16
    %p324 = scmp.lt.s32.totalorder %s16, 4
    %p325 = pnand %p323, %p324
    %p326 = pneg %p325
    // Predicated region
    $region9: #{weighted_proto_encoder.1} parent=5 // pred_check
      _
    $region10: #{weighted_proto_encoder.1} parent=5 // pred_check_branch
      %328 = sbr.rel (%p325) target = $region12
    $region11: #{weighted_proto_encoder.1} parent=5 // pred_region
      %s329 = ssub.s32 %s16, 1
      // Predicated region
      $region13: #{weighted_proto_encoder.1} parent=11 // pred_check
        %p330 = pneg %p54
      $region14: #{weighted_proto_encoder.1} parent=11 // pred_check_branch
        %332 = sbr.rel (%p330) target = $region16
      $region15: #{weighted_proto_encoder.1} parent=11 // pred_region
        %s333 = smul.u32 64, %s25
        %p334 = scmp.lt.s32.totalorder %s333, 63
        %s335 = scalar_select %p334, %s333, 63
        %s336 = smul.addr %s335, 8
        %s337 = scalar_lea.vmem %s0, %s336
        %s338 = smul.u32 64, %s25
      $region16: #{weighted_proto_encoder.1} parent=11 // pred_fallthru
        _
      // Predicated region
      $region17: #{weighted_proto_encoder.1} parent=11 // pred_check
        %p339 = pneg %p80
      $region18: #{weighted_proto_encoder.1} parent=11 // pred_check_branch
        %341 = sbr.rel (%p339) target = $region20
      $region19: #{weighted_proto_encoder.1} parent=11 // pred_region
        %s342 = smul.u32 8, %s25
        %p343 = scmp.lt.s32.totalorder %s342, 7
        %s344 = scalar_select %p343, %s342, 7
        %s345 = smul.addr %s344, 8
        %s346 = scalar_lea.vmem %s1, %s345
        %s347 = smul.u32 8, %s25
      $region20: #{weighted_proto_encoder.1} parent=11 // pred_fallthru
        _
      // Predicated region
      $region21: #{weighted_proto_encoder.1} parent=11 // pred_check
        %p348 = pneg %p101
      $region22: #{weighted_proto_encoder.1} parent=11 // pred_check_branch
        %350 = sbr.rel (%p348) target = $region24
      $region23: #{weighted_proto_encoder.1} parent=11 // pred_region
        _
      $region24: #{weighted_proto_encoder.1} parent=11 // pred_fallthru
        _
    $region12: #{weighted_proto_encoder.1} parent=5 // pred_fallthru
      _
    %p351 = scmp.lt.s32.totalorder %s16, 3
    // Predicated region
    $region25: #{weighted_proto_encoder.1} parent=5 // pred_check
      %p352 = pneg %p351
    $region26: #{weighted_proto_encoder.1} parent=5 // pred_check_branch
      %354 = sbr.rel (%p352) target = $region28
    $region27: #{weighted_proto_encoder.1} parent=5 // pred_region
      // Predicated region
      $region29: #{weighted_proto_encoder.1} parent=27 // pred_check
        %p355 = pneg %p127
      $region30: #{weighted_proto_encoder.1} parent=27 // pred_check_branch
        %357 = sbr.rel (%p355) target = $region32
      $region31: #{weighted_proto_encoder.1} parent=27 // pred_region
        %s358 = ssub.s32 %s24, 1
        %p359 = scmp.gt.s32.totalorder %s358, 0
        %s360 = scalar_select %p359, %s358, 0
        %p361 = scmp.lt.s32.totalorder %s360, 1
        %s362 = scalar_select %p361, %s360, 1
        %s363 = smul.addr %s362, 4
        %s364 = smul.addr %s363, 4
        %s365 = scalar_lea.vmem %s3, %s364
        %s366 = ssub.s32 %s24, 1
        %p367 = scmp.gt.s32.totalorder %s366, 0
        %s368 = scalar_select %p367, %s366, 0
      $region32: #{weighted_proto_encoder.1} parent=27 // pred_fallthru
        _
      // Predicated region
      $region33: #{weighted_proto_encoder.1} parent=27 // pred_check
        %p369 = pneg %p153
      $region34: #{weighted_proto_encoder.1} parent=27 // pred_check_branch
        %371 = sbr.rel (%p369) target = $region36
      $region35: #{weighted_proto_encoder.1} parent=27 // pred_region
        %p372 = scmp.lt.s32.totalorder %s24, 2
        %s373 = scalar_select %p372, %s24, 2
        %s374 = smul.addr %s373, 4
        %s375 = smul.addr %s374, 4
        %s376 = scalar_lea.vmem %s4, %s375
      $region36: #{weighted_proto_encoder.1} parent=27 // pred_fallthru
        _
      // Predicated region
      $region37: #{weighted_proto_encoder.1} parent=27 // pred_check
        %p377 = pneg %p179
      $region38: #{weighted_proto_encoder.1} parent=27 // pred_check_branch
        %379 = sbr.rel (%p377) target = $region40
      $region39: #{weighted_proto_encoder.1} parent=27 // pred_region
        %s380 = smul.u32 2, %s24
        %p381 = scmp.lt.s32.totalorder %s380, 5
        %s382 = scalar_select %p381, %s380, 5
        %s383 = scalar_lea.vmem %s5, %s382
        %s384 = smul.u32 2, %s24
      $region40: #{weighted_proto_encoder.1} parent=27 // pred_fallthru
        _
      // Predicated region
      $region41: #{weighted_proto_encoder.1} parent=27 // pred_check
        %p385 = pneg %p205
      $region42: #{weighted_proto_encoder.1} parent=27 // pred_check_branch
        %387 = sbr.rel (%p385) target = $region44
      $region43: #{weighted_proto_encoder.1} parent=27 // pred_region
        %p388 = scmp.lt.s32.totalorder %s24, 2
        %s389 = scalar_select %p388, %s24, 2
        %s390 = smul.addr %s389, 4
        %s391 = smul.addr %s390, 4
        %s392 = scalar_lea.vmem %s6, %s391
      $region44: #{weighted_proto_encoder.1} parent=27 // pred_fallthru
        _
      // Predicated region
      $region45: #{weighted_proto_encoder.1} parent=27 // pred_check
        %p393 = pneg %p231
      $region46: #{weighted_proto_encoder.1} parent=27 // pred_check_branch
        %395 = sbr.rel (%p393) target = $region48
      $region47: #{weighted_proto_encoder.1} parent=27 // pred_region
        %p396 = scmp.lt.s32.totalorder %s24, 2
        %s397 = scalar_select %p396, %s24, 2
        %s398 = scalar_lea.vmem %s7, %s397
      $region48: #{weighted_proto_encoder.1} parent=27 // pred_fallthru
        _
      // Predicated region
      $region49: #{weighted_proto_encoder.1} parent=27 // pred_check
        %p399 = pneg %p257
      $region50: #{weighted_proto_encoder.1} parent=27 // pred_check_branch
        %401 = sbr.rel (%p399) target = $region52
      $region51: #{weighted_proto_encoder.1} parent=27 // pred_region
        %p402 = scmp.lt.s32.totalorder %s24, 2
        %s403 = scalar_select %p402, %s24, 2
        %s404 = smul.addr %s403, 4
        %s405 = smul.addr %s404, 4
        %s406 = scalar_lea.vmem %s8, %s405
      $region52: #{weighted_proto_encoder.1} parent=27 // pred_fallthru
        _
      // Predicated region
      $region53: #{weighted_proto_encoder.1} parent=27 // pred_check
        %p407 = pneg %p283
      $region54: #{weighted_proto_encoder.1} parent=27 // pred_check_branch
        %409 = sbr.rel (%p407) target = $region56
      $region55: #{weighted_proto_encoder.1} parent=27 // pred_region
        %p410 = scmp.lt.s32.totalorder %s24, 2
        %s411 = scalar_select %p410, %s24, 2
        %s412 = scalar_lea.vmem %s9, %s411
      $region56: #{weighted_proto_encoder.1} parent=27 // pred_fallthru
        _
    $region28: #{weighted_proto_encoder.1} parent=5 // pred_fallthru
      _
    %p413 = scmp.le.s32.totalorder 1, %s16
    %p414 = scmp.lt.s32.totalorder %s16, 4
    %p415 = pnand %p413, %p414
    %p416 = pneg %p415
    // Predicated region
    $region57: #{weighted_proto_encoder.1} parent=5 // pred_check
      _
    $region58: #{weighted_proto_encoder.1} parent=5 // pred_check_branch
      %418 = sbr.rel (%p415) target = $region60
    $region59: #{weighted_proto_encoder.1} parent=5 // pred_region
      %s419 = ssub.s32 %s16, 1
      %s420 = smul.u32 64, %s25
      %p421 = scmp.lt.s32.totalorder %s420, 63
      %s422 = scalar_select %p421, %s420, 63
      %s423 = smul.addr %s422, 8
      %s424 = scalar_lea.vmem %s0, %s423
      %p425 = pneg %p54
      %p426 = pneg %p51
      %s427 = smul.u32 8, %s25
      %p428 = scmp.lt.s32.totalorder %s427, 7
      %s429 = scalar_select %p428, %s427, 7
      %s430 = smul.addr %s429, 8
      %s431 = scalar_lea.vmem %s1, %s430
      %p432 = pneg %p80
      %p433 = pneg %p77
      %p434 = pneg %p101
      %p435 = pneg %p98
      %s436 = ssub.s32 %s26, 1
      %p437 = scmp.gt.s32.totalorder %s436, 0
      %s438 = scalar_select %p437, %s436, 0
      %p439 = scmp.lt.s32.totalorder %s438, 1
      %s440 = scalar_select %p439, %s438, 1
      %s441 = smul.addr %s440, 4
      %s442 = smul.addr %s441, 4
      %s443 = scalar_lea.vmem %s3, %s442
      %p444 = pneg %p133
      %p445 = pneg %p130
      %p446 = scmp.lt.s32.totalorder %s26, 2
      %s447 = scalar_select %p446, %s26, 2
      %s448 = smul.addr %s447, 4
      %s449 = smul.addr %s448, 4
      %s450 = scalar_lea.vmem %s4, %s449
      %p451 = pneg %p159
      %p452 = pneg %p156
      %s453 = smul.u32 2, %s26
      %p454 = scmp.lt.s32.totalorder %s453, 5
      %s455 = scalar_select %p454, %s453, 5
      %s456 = scalar_lea.vmem %s5, %s455
      %p457 = pneg %p185
      %p458 = pneg %p182
      %p459 = scmp.lt.s32.totalorder %s26, 2
      %s460 = scalar_select %p459, %s26, 2
      %s461 = smul.addr %s460, 4
      %s462 = smul.addr %s461, 4
      %s463 = scalar_lea.vmem %s6, %s462
      %p464 = pneg %p211
      %p465 = pneg %p208
      %p466 = scmp.lt.s32.totalorder %s26, 2
      %s467 = scalar_select %p466, %s26, 2
      %s468 = scalar_lea.vmem %s7, %s467
      %p469 = pneg %p237
      %p470 = pneg %p234
      %p471 = scmp.lt.s32.totalorder %s26, 2
      %s472 = scalar_select %p471, %s26, 2
      %s473 = smul.addr %s472, 4
      %s474 = smul.addr %s473, 4
      %s475 = scalar_lea.vmem %s8, %s474
      %p476 = pneg %p263
      %p477 = pneg %p260
      %p478 = scmp.lt.s32.totalorder %s26, 2
      %s479 = scalar_select %p478, %s26, 2
      %s480 = scalar_lea.vmem %s9, %s479
      %p481 = pneg %p289
      %p482 = pneg %p286
      %p483 = pneg %p315
      %p484 = pneg %p312
      %s485 = smul.u32 8, %s25
      %p486 = scmp.lt.s32.totalorder %s485, 7
      %s487 = scalar_select %p486, %s485, 7
      %s488 = smul.addr %s487, 8
      %s489 = scalar_lea.vmem %s10, %s488
      %s490 = smul.u32 64, %s25
      %p491 = scmp.lt.s32.totalorder %s490, 63
      %s492 = scalar_select %p491, %s490, 63
      %s493 = smul.addr %s492, 8
      %s494 = scalar_lea.vmem %s0, %s493
      %s495 = smul.u32 64, %s25
      %s496 = smul.u32 8, %s25
      %p497 = scmp.lt.s32.totalorder %s496, 7
      %s498 = scalar_select %p497, %s496, 7
      %s499 = smul.addr %s498, 8
      %s500 = scalar_lea.vmem %s1, %s499
      %s501 = smul.u32 8, %s25
      %s502 = ssub.s32 %s26, 1
      %p503 = scmp.gt.s32.totalorder %s502, 0
      %s504 = scalar_select %p503, %s502, 0
      %p505 = scmp.lt.s32.totalorder %s504, 1
      %s506 = scalar_select %p505, %s504, 1
      %s507 = smul.addr %s506, 4
      %s508 = smul.addr %s507, 4
      %s509 = scalar_lea.vmem %s3, %s508
      %s510 = ssub.s32 %s26, 1
      %p511 = scmp.gt.s32.totalorder %s510, 0
      %s512 = scalar_select %p511, %s510, 0
      %p513 = scmp.lt.s32.totalorder %s26, 2
      %s514 = scalar_select %p513, %s26, 2
      %s515 = smul.addr %s514, 4
      %s516 = smul.addr %s515, 4
      %s517 = scalar_lea.vmem %s4, %s516
      %s518 = smul.u32 2, %s26
      %p519 = scmp.lt.s32.totalorder %s518, 5
      %s520 = scalar_select %p519, %s518, 5
      %s521 = scalar_lea.vmem %s5, %s520
      %s522 = smul.u32 2, %s26
      %p523 = scmp.lt.s32.totalorder %s26, 2
      %s524 = scalar_select %p523, %s26, 2
      %s525 = smul.addr %s524, 4
      %s526 = smul.addr %s525, 4
      %s527 = scalar_lea.vmem %s6, %s526
      %p528 = scmp.lt.s32.totalorder %s26, 2
      %s529 = scalar_select %p528, %s26, 2
      %s530 = scalar_lea.vmem %s7, %s529
      %p531 = scmp.lt.s32.totalorder %s26, 2
      %s532 = scalar_select %p531, %s26, 2
      %s533 = smul.addr %s532, 4
      %s534 = smul.addr %s533, 4
      %s535 = scalar_lea.vmem %s8, %s534
      %p536 = scmp.lt.s32.totalorder %s26, 2
      %s537 = scalar_select %p536, %s26, 2
      %s538 = scalar_lea.vmem %s9, %s537
      %s539 = smul.u32 8, %s25
      %p540 = scmp.lt.s32.totalorder %s539, 7
      %s541 = scalar_select %p540, %s539, 7
      %s542 = smul.addr %s541, 8
      %s543 = scalar_lea.vmem %s10, %s542
      %s544 = smul.u32 8, %s25
      %v546 = vld [vmem:[%s500] sm:$0xff]
      %v547 = vld [vmem:[%s500 + $0x8] sm:$0xff]
      %v548 = vld [vmem:[%s500 + $0x10] sm:$0xff]
      %v549 = vld [vmem:[%s500 + $0x18] sm:$0xff]
      %v550 = vld [vmem:[%s500 + $0x20] sm:$0xff]
      %v551 = vld [vmem:[%s500 + $0x28] sm:$0xff]
      %v552 = vld [vmem:[%s500 + $0x30] sm:$0xff]
      %v553 = vld [vmem:[%s500 + $0x38] sm:$0xff]
      %v554 = vperm.slane %v546, 0
      %v555 = vlaneseq
      %v556 = vshrl.u32 %v555, 7
      %558 = vset.pattern.permute.xlu0 %v556
      %559 = vperm.xlu0 %558, %v554
      %v560 = vpop.permute.xlu0 %559
      %v561 = vperm.slane %v546, 1
      %v562 = vlaneseq
      %v563 = vshrl.u32 %v562, 7
      %565 = vset.pattern.permute.xlu0 %v563
      %566 = vperm.xlu0 %565, %v561
      %v567 = vpop.permute.xlu0 %566
      %v568 = vperm.slane %v546, 2
      %v569 = vlaneseq
      %v570 = vshrl.u32 %v569, 7
      %572 = vset.pattern.permute.xlu0 %v570
      %573 = vperm.xlu0 %572, %v568
      %v574 = vpop.permute.xlu0 %573
      %v575 = vperm.slane %v546, 3
      %v576 = vlaneseq
      %v577 = vshrl.u32 %v576, 7
      %579 = vset.pattern.permute.xlu0 %v577
      %580 = vperm.xlu0 %579, %v575
      %v581 = vpop.permute.xlu0 %580
      %v582 = vperm.slane %v546, 4
      %v583 = vlaneseq
      %v584 = vshrl.u32 %v583, 7
      %586 = vset.pattern.permute.xlu0 %v584
      %587 = vperm.xlu0 %586, %v582
      %v588 = vpop.permute.xlu0 %587
      %v589 = vperm.slane %v546, 5
      %v590 = vlaneseq
      %v591 = vshrl.u32 %v590, 7
      %593 = vset.pattern.permute.xlu0 %v591
      %594 = vperm.xlu0 %593, %v589
      %v595 = vpop.permute.xlu0 %594
      %v596 = vperm.slane %v546, 6
      %v597 = vlaneseq
      %v598 = vshrl.u32 %v597, 7
      %600 = vset.pattern.permute.xlu0 %v598
      %601 = vperm.xlu0 %600, %v596
      %v602 = vpop.permute.xlu0 %601
      %v603 = vperm.slane %v546, 7
      %v604 = vlaneseq
      %v605 = vshrl.u32 %v604, 7
      %607 = vset.pattern.permute.xlu0 %v605
      %608 = vperm.xlu0 %607, %v603
      %v609 = vpop.permute.xlu0 %608
      %v610 = vperm.slane %v547, 0
      %v611 = vlaneseq
      %v612 = vshrl.u32 %v611, 7
      %614 = vset.pattern.permute.xlu0 %v612
      %615 = vperm.xlu0 %614, %v610
      %v616 = vpop.permute.xlu0 %615
      %v617 = vperm.slane %v547, 1
      %v618 = vlaneseq
      %v619 = vshrl.u32 %v618, 7
      %621 = vset.pattern.permute.xlu0 %v619
      %622 = vperm.xlu0 %621, %v617
      %v623 = vpop.permute.xlu0 %622
      %v624 = vperm.slane %v547, 2
      %v625 = vlaneseq
      %v626 = vshrl.u32 %v625, 7
      %628 = vset.pattern.permute.xlu0 %v626
      %629 = vperm.xlu0 %628, %v624
      %v630 = vpop.permute.xlu0 %629
      %v631 = vperm.slane %v547, 3
      %v632 = vlaneseq
      %v633 = vshrl.u32 %v632, 7
      %635 = vset.pattern.permute.xlu0 %v633
      %636 = vperm.xlu0 %635, %v631
      %v637 = vpop.permute.xlu0 %636
      %v638 = vperm.slane %v547, 4
      %v639 = vlaneseq
      %v640 = vshrl.u32 %v639, 7
      %642 = vset.pattern.permute.xlu0 %v640
      %643 = vperm.xlu0 %642, %v638
      %v644 = vpop.permute.xlu0 %643
      %v645 = vperm.slane %v547, 5
      %v646 = vlaneseq
      %v647 = vshrl.u32 %v646, 7
      %649 = vset.pattern.permute.xlu0 %v647
      %650 = vperm.xlu0 %649, %v645
      %v651 = vpop.permute.xlu0 %650
      %v652 = vperm.slane %v547, 6
      %v653 = vlaneseq
      %v654 = vshrl.u32 %v653, 7
      %656 = vset.pattern.permute.xlu0 %v654
      %657 = vperm.xlu0 %656, %v652
      %v658 = vpop.permute.xlu0 %657
      %v659 = vperm.slane %v547, 7
      %v660 = vlaneseq
      %v661 = vshrl.u32 %v660, 7
      %663 = vset.pattern.permute.xlu0 %v661
      %664 = vperm.xlu0 %663, %v659
      %v665 = vpop.permute.xlu0 %664
      %v666 = vperm.slane %v548, 0
      %v667 = vlaneseq
      %v668 = vshrl.u32 %v667, 7
      %670 = vset.pattern.permute.xlu0 %v668
      %671 = vperm.xlu0 %670, %v666
      %v672 = vpop.permute.xlu0 %671
      %v673 = vperm.slane %v548, 1
      %v674 = vlaneseq
      %v675 = vshrl.u32 %v674, 7
      %677 = vset.pattern.permute.xlu0 %v675
      %678 = vperm.xlu0 %677, %v673
      %v679 = vpop.permute.xlu0 %678
      %v680 = vperm.slane %v548, 2
      %v681 = vlaneseq
      %v682 = vshrl.u32 %v681, 7
      %684 = vset.pattern.permute.xlu0 %v682
      %685 = vperm.xlu0 %684, %v680
      %v686 = vpop.permute.xlu0 %685
      %v687 = vperm.slane %v548, 3
      %v688 = vlaneseq
      %v689 = vshrl.u32 %v688, 7
      %691 = vset.pattern.permute.xlu0 %v689
      %692 = vperm.xlu0 %691, %v687
      %v693 = vpop.permute.xlu0 %692
      %v694 = vperm.slane %v548, 4
      %v695 = vlaneseq
      %v696 = vshrl.u32 %v695, 7
      %698 = vset.pattern.permute.xlu0 %v696
      %699 = vperm.xlu0 %698, %v694
      %v700 = vpop.permute.xlu0 %699
      %v701 = vperm.slane %v548, 5
      %v702 = vlaneseq
      %v703 = vshrl.u32 %v702, 7
      %705 = vset.pattern.permute.xlu0 %v703
      %706 = vperm.xlu0 %705, %v701
      %v707 = vpop.permute.xlu0 %706
      %v708 = vperm.slane %v548, 6
      %v709 = vlaneseq
      %v710 = vshrl.u32 %v709, 7
      %712 = vset.pattern.permute.xlu0 %v710
      %713 = vperm.xlu0 %712, %v708
      %v714 = vpop.permute.xlu0 %713
      %v715 = vperm.slane %v548, 7
      %v716 = vlaneseq
      %v717 = vshrl.u32 %v716, 7
      %719 = vset.pattern.permute.xlu0 %v717
      %720 = vperm.xlu0 %719, %v715
      %v721 = vpop.permute.xlu0 %720
      %v722 = vperm.slane %v549, 0
      %v723 = vlaneseq
      %v724 = vshrl.u32 %v723, 7
      %726 = vset.pattern.permute.xlu0 %v724
      %727 = vperm.xlu0 %726, %v722
      %v728 = vpop.permute.xlu0 %727
      %v729 = vperm.slane %v549, 1
      %v730 = vlaneseq
      %v731 = vshrl.u32 %v730, 7
      %733 = vset.pattern.permute.xlu0 %v731
      %734 = vperm.xlu0 %733, %v729
      %v735 = vpop.permute.xlu0 %734
      %v736 = vperm.slane %v549, 2
      %v737 = vlaneseq
      %v738 = vshrl.u32 %v737, 7
      %740 = vset.pattern.permute.xlu0 %v738
      %741 = vperm.xlu0 %740, %v736
      %v742 = vpop.permute.xlu0 %741
      %v743 = vperm.slane %v549, 3
      %v744 = vlaneseq
      %v745 = vshrl.u32 %v744, 7
      %747 = vset.pattern.permute.xlu0 %v745
      %748 = vperm.xlu0 %747, %v743
      %v749 = vpop.permute.xlu0 %748
      %v750 = vperm.slane %v549, 4
      %v751 = vlaneseq
      %v752 = vshrl.u32 %v751, 7
      %754 = vset.pattern.permute.xlu0 %v752
      %755 = vperm.xlu0 %754, %v750
      %v756 = vpop.permute.xlu0 %755
      %v757 = vperm.slane %v549, 5
      %v758 = vlaneseq
      %v759 = vshrl.u32 %v758, 7
      %761 = vset.pattern.permute.xlu0 %v759
      %762 = vperm.xlu0 %761, %v757
      %v763 = vpop.permute.xlu0 %762
      %v764 = vperm.slane %v549, 6
      %v765 = vlaneseq
      %v766 = vshrl.u32 %v765, 7
      %768 = vset.pattern.permute.xlu0 %v766
      %769 = vperm.xlu0 %768, %v764
      %v770 = vpop.permute.xlu0 %769
      %v771 = vperm.slane %v549, 7
      %v772 = vlaneseq
      %v773 = vshrl.u32 %v772, 7
      %775 = vset.pattern.permute.xlu0 %v773
      %776 = vperm.xlu0 %775, %v771
      %v777 = vpop.permute.xlu0 %776
      %v778 = vperm.slane %v550, 0
      %v779 = vlaneseq
      %v780 = vshrl.u32 %v779, 7
      %782 = vset.pattern.permute.xlu0 %v780
      %783 = vperm.xlu0 %782, %v778
      %v784 = vpop.permute.xlu0 %783
      %v785 = vperm.slane %v550, 1
      %v786 = vlaneseq
      %v787 = vshrl.u32 %v786, 7
      %789 = vset.pattern.permute.xlu0 %v787
      %790 = vperm.xlu0 %789, %v785
      %v791 = vpop.permute.xlu0 %790
      %v792 = vperm.slane %v550, 2
      %v793 = vlaneseq
      %v794 = vshrl.u32 %v793, 7
      %796 = vset.pattern.permute.xlu0 %v794
      %797 = vperm.xlu0 %796, %v792
      %v798 = vpop.permute.xlu0 %797
      %v799 = vperm.slane %v550, 3
      %v800 = vlaneseq
      %v801 = vshrl.u32 %v800, 7
      %803 = vset.pattern.permute.xlu0 %v801
      %804 = vperm.xlu0 %803, %v799
      %v805 = vpop.permute.xlu0 %804
      %v806 = vperm.slane %v550, 4
      %v807 = vlaneseq
      %v808 = vshrl.u32 %v807, 7
      %810 = vset.pattern.permute.xlu0 %v808
      %811 = vperm.xlu0 %810, %v806
      %v812 = vpop.permute.xlu0 %811
      %v813 = vperm.slane %v550, 5
      %v814 = vlaneseq
      %v815 = vshrl.u32 %v814, 7
      %817 = vset.pattern.permute.xlu0 %v815
      %818 = vperm.xlu0 %817, %v813
      %v819 = vpop.permute.xlu0 %818
      %v820 = vperm.slane %v550, 6
      %v821 = vlaneseq
      %v822 = vshrl.u32 %v821, 7
      %824 = vset.pattern.permute.xlu0 %v822
      %825 = vperm.xlu0 %824, %v820
      %v826 = vpop.permute.xlu0 %825
      %v827 = vperm.slane %v550, 7
      %v828 = vlaneseq
      %v829 = vshrl.u32 %v828, 7
      %831 = vset.pattern.permute.xlu0 %v829
      %832 = vperm.xlu0 %831, %v827
      %v833 = vpop.permute.xlu0 %832
      %v834 = vperm.slane %v551, 0
      %v835 = vlaneseq
      %v836 = vshrl.u32 %v835, 7
      %838 = vset.pattern.permute.xlu0 %v836
      %839 = vperm.xlu0 %838, %v834
      %v840 = vpop.permute.xlu0 %839
      %v841 = vperm.slane %v551, 1
      %v842 = vlaneseq
      %v843 = vshrl.u32 %v842, 7
      %845 = vset.pattern.permute.xlu0 %v843
      %846 = vperm.xlu0 %845, %v841
      %v847 = vpop.permute.xlu0 %846
      %v848 = vperm.slane %v551, 2
      %v849 = vlaneseq
      %v850 = vshrl.u32 %v849, 7
      %852 = vset.pattern.permute.xlu0 %v850
      %853 = vperm.xlu0 %852, %v848
      %v854 = vpop.permute.xlu0 %853
      %v855 = vperm.slane %v551, 3
      %v856 = vlaneseq
      %v857 = vshrl.u32 %v856, 7
      %859 = vset.pattern.permute.xlu0 %v857
      %860 = vperm.xlu0 %859, %v855
      %v861 = vpop.permute.xlu0 %860
      %v862 = vperm.slane %v551, 4
      %v863 = vlaneseq
      %v864 = vshrl.u32 %v863, 7
      %866 = vset.pattern.permute.xlu0 %v864
      %867 = vperm.xlu0 %866, %v862
      %v868 = vpop.permute.xlu0 %867
      %v869 = vperm.slane %v551, 5
      %v870 = vlaneseq
      %v871 = vshrl.u32 %v870, 7
      %873 = vset.pattern.permute.xlu0 %v871
      %874 = vperm.xlu0 %873, %v869
      %v875 = vpop.permute.xlu0 %874
      %v876 = vperm.slane %v551, 6
      %v877 = vlaneseq
      %v878 = vshrl.u32 %v877, 7
      %880 = vset.pattern.permute.xlu0 %v878
      %881 = vperm.xlu0 %880, %v876
      %v882 = vpop.permute.xlu0 %881
      %v883 = vperm.slane %v551, 7
      %v884 = vlaneseq
      %v885 = vshrl.u32 %v884, 7
      %887 = vset.pattern.permute.xlu0 %v885
      %888 = vperm.xlu0 %887, %v883
      %v889 = vpop.permute.xlu0 %888
      %v890 = vperm.slane %v552, 0
      %v891 = vlaneseq
      %v892 = vshrl.u32 %v891, 7
      %894 = vset.pattern.permute.xlu0 %v892
      %895 = vperm.xlu0 %894, %v890
      %v896 = vpop.permute.xlu0 %895
      %v897 = vperm.slane %v552, 1
      %v898 = vlaneseq
      %v899 = vshrl.u32 %v898, 7
      %901 = vset.pattern.permute.xlu0 %v899
      %902 = vperm.xlu0 %901, %v897
      %v903 = vpop.permute.xlu0 %902
      %v904 = vperm.slane %v552, 2
      %v905 = vlaneseq
      %v906 = vshrl.u32 %v905, 7
      %908 = vset.pattern.permute.xlu0 %v906
      %909 = vperm.xlu0 %908, %v904
      %v910 = vpop.permute.xlu0 %909
      %v911 = vperm.slane %v552, 3
      %v912 = vlaneseq
      %v913 = vshrl.u32 %v912, 7
      %915 = vset.pattern.permute.xlu0 %v913
      %916 = vperm.xlu0 %915, %v911
      %v917 = vpop.permute.xlu0 %916
      %v918 = vperm.slane %v552, 4
      %v919 = vlaneseq
      %v920 = vshrl.u32 %v919, 7
      %922 = vset.pattern.permute.xlu0 %v920
      %923 = vperm.xlu0 %922, %v918
      %v924 = vpop.permute.xlu0 %923
      %v925 = vperm.slane %v552, 5
      %v926 = vlaneseq
      %v927 = vshrl.u32 %v926, 7
      %929 = vset.pattern.permute.xlu0 %v927
      %930 = vperm.xlu0 %929, %v925
      %v931 = vpop.permute.xlu0 %930
      %v932 = vperm.slane %v552, 6
      %v933 = vlaneseq
      %v934 = vshrl.u32 %v933, 7
      %936 = vset.pattern.permute.xlu0 %v934
      %937 = vperm.xlu0 %936, %v932
      %v938 = vpop.permute.xlu0 %937
      %v939 = vperm.slane %v552, 7
      %v940 = vlaneseq
      %v941 = vshrl.u32 %v940, 7
      %943 = vset.pattern.permute.xlu0 %v941
      %944 = vperm.xlu0 %943, %v939
      %v945 = vpop.permute.xlu0 %944
      %v946 = vperm.slane %v553, 0
      %v947 = vlaneseq
      %v948 = vshrl.u32 %v947, 7
      %950 = vset.pattern.permute.xlu0 %v948
      %951 = vperm.xlu0 %950, %v946
      %v952 = vpop.permute.xlu0 %951
      %v953 = vperm.slane %v553, 1
      %v954 = vlaneseq
      %v955 = vshrl.u32 %v954, 7
      %957 = vset.pattern.permute.xlu0 %v955
      %958 = vperm.xlu0 %957, %v953
      %v959 = vpop.permute.xlu0 %958
      %v960 = vperm.slane %v553, 2
      %v961 = vlaneseq
      %v962 = vshrl.u32 %v961, 7
      %964 = vset.pattern.permute.xlu0 %v962
      %965 = vperm.xlu0 %964, %v960
      %v966 = vpop.permute.xlu0 %965
      %v967 = vperm.slane %v553, 3
      %v968 = vlaneseq
      %v969 = vshrl.u32 %v968, 7
      %971 = vset.pattern.permute.xlu0 %v969
      %972 = vperm.xlu0 %971, %v967
      %v973 = vpop.permute.xlu0 %972
      %v974 = vperm.slane %v553, 4
      %v975 = vlaneseq
      %v976 = vshrl.u32 %v975, 7
      %978 = vset.pattern.permute.xlu0 %v976
      %979 = vperm.xlu0 %978, %v974
      %v980 = vpop.permute.xlu0 %979
      %v981 = vperm.slane %v553, 5
      %v982 = vlaneseq
      %v983 = vshrl.u32 %v982, 7
      %985 = vset.pattern.permute.xlu0 %v983
      %986 = vperm.xlu0 %985, %v981
      %v987 = vpop.permute.xlu0 %986
      %v988 = vperm.slane %v553, 6
      %v989 = vlaneseq
      %v990 = vshrl.u32 %v989, 7
      %992 = vset.pattern.permute.xlu0 %v990
      %993 = vperm.xlu0 %992, %v988
      %v994 = vpop.permute.xlu0 %993
      %v995 = vperm.slane %v553, 7
      %v996 = vlaneseq
      %v997 = vshrl.u32 %v996, 7
      %999 = vset.pattern.permute.xlu0 %v997
      %1000 = vperm.xlu0 %999, %v995
      %v1001 = vpop.permute.xlu0 %1000
      %v1002 = vrot.slane %v560, 4
      %v1003 = vadd.f32 %v560, %v1002
      %v1004 = vrot.slane %v1003, 2
      %v1005 = vadd.f32 %v1003, %v1004
      %v1006 = vrot.slane %v1005, 1
      %v1007 = vadd.f32 %v1005, %v1006
      %v1008 = vrot.slane %v567, 4
      %v1009 = vadd.f32 %v567, %v1008
      %v1010 = vrot.slane %v1009, 2
      %v1011 = vadd.f32 %v1009, %v1010
      %v1012 = vrot.slane %v1011, 1
      %v1013 = vadd.f32 %v1011, %v1012
      %v1014 = vrot.slane %v574, 4
      %v1015 = vadd.f32 %v574, %v1014
      %v1016 = vrot.slane %v1015, 2
      %v1017 = vadd.f32 %v1015, %v1016
      %v1018 = vrot.slane %v1017, 1
      %v1019 = vadd.f32 %v1017, %v1018
      %v1020 = vrot.slane %v581, 4
      %v1021 = vadd.f32 %v581, %v1020
      %v1022 = vrot.slane %v1021, 2
      %v1023 = vadd.f32 %v1021, %v1022
      %v1024 = vrot.slane %v1023, 1
      %v1025 = vadd.f32 %v1023, %v1024
      %v1026 = vrot.slane %v588, 4
      %v1027 = vadd.f32 %v588, %v1026
      %v1028 = vrot.slane %v1027, 2
      %v1029 = vadd.f32 %v1027, %v1028
      %v1030 = vrot.slane %v1029, 1
      %v1031 = vadd.f32 %v1029, %v1030
      %v1032 = vrot.slane %v595, 4
      %v1033 = vadd.f32 %v595, %v1032
      %v1034 = vrot.slane %v1033, 2
      %v1035 = vadd.f32 %v1033, %v1034
      %v1036 = vrot.slane %v1035, 1
      %v1037 = vadd.f32 %v1035, %v1036
      %v1038 = vrot.slane %v602, 4
      %v1039 = vadd.f32 %v602, %v1038
      %v1040 = vrot.slane %v1039, 2
      %v1041 = vadd.f32 %v1039, %v1040
      %v1042 = vrot.slane %v1041, 1
      %v1043 = vadd.f32 %v1041, %v1042
      %v1044 = vrot.slane %v609, 4
      %v1045 = vadd.f32 %v609, %v1044
      %v1046 = vrot.slane %v1045, 2
      %v1047 = vadd.f32 %v1045, %v1046
      %v1048 = vrot.slane %v1047, 1
      %v1049 = vadd.f32 %v1047, %v1048
      %v1050 = vrot.slane %v616, 4
      %v1051 = vadd.f32 %v616, %v1050
      %v1052 = vrot.slane %v1051, 2
      %v1053 = vadd.f32 %v1051, %v1052
      %v1054 = vrot.slane %v1053, 1
      %v1055 = vadd.f32 %v1053, %v1054
      %v1056 = vrot.slane %v623, 4
      %v1057 = vadd.f32 %v623, %v1056
      %v1058 = vrot.slane %v1057, 2
      %v1059 = vadd.f32 %v1057, %v1058
      %v1060 = vrot.slane %v1059, 1
      %v1061 = vadd.f32 %v1059, %v1060
      %v1062 = vrot.slane %v630, 4
      %v1063 = vadd.f32 %v630, %v1062
      %v1064 = vrot.slane %v1063, 2
      %v1065 = vadd.f32 %v1063, %v1064
      %v1066 = vrot.slane %v1065, 1
      %v1067 = vadd.f32 %v1065, %v1066
      %v1068 = vrot.slane %v637, 4
      %v1069 = vadd.f32 %v637, %v1068
      %v1070 = vrot.slane %v1069, 2
      %v1071 = vadd.f32 %v1069, %v1070
      %v1072 = vrot.slane %v1071, 1
      %v1073 = vadd.f32 %v1071, %v1072
      %v1074 = vrot.slane %v644, 4
      %v1075 = vadd.f32 %v644, %v1074
      %v1076 = vrot.slane %v1075, 2
      %v1077 = vadd.f32 %v1075, %v1076
      %v1078 = vrot.slane %v1077, 1
      %v1079 = vadd.f32 %v1077, %v1078
      %v1080 = vrot.slane %v651, 4
      %v1081 = vadd.f32 %v651, %v1080
      %v1082 = vrot.slane %v1081, 2
      %v1083 = vadd.f32 %v1081, %v1082
      %v1084 = vrot.slane %v1083, 1
      %v1085 = vadd.f32 %v1083, %v1084
      %v1086 = vrot.slane %v658, 4
      %v1087 = vadd.f32 %v658, %v1086
      %v1088 = vrot.slane %v1087, 2
      %v1089 = vadd.f32 %v1087, %v1088
      %v1090 = vrot.slane %v1089, 1
      %v1091 = vadd.f32 %v1089, %v1090
      %v1092 = vrot.slane %v665, 4
      %v1093 = vadd.f32 %v665, %v1092
      %v1094 = vrot.slane %v1093, 2
      %v1095 = vadd.f32 %v1093, %v1094
      %v1096 = vrot.slane %v1095, 1
      %v1097 = vadd.f32 %v1095, %v1096
      %v1098 = vrot.slane %v672, 4
      %v1099 = vadd.f32 %v672, %v1098
      %v1100 = vrot.slane %v1099, 2
      %v1101 = vadd.f32 %v1099, %v1100
      %v1102 = vrot.slane %v1101, 1
      %v1103 = vadd.f32 %v1101, %v1102
      %v1104 = vrot.slane %v679, 4
      %v1105 = vadd.f32 %v679, %v1104
      %v1106 = vrot.slane %v1105, 2
      %v1107 = vadd.f32 %v1105, %v1106
      %v1108 = vrot.slane %v1107, 1
      %v1109 = vadd.f32 %v1107, %v1108
      %v1110 = vrot.slane %v686, 4
      %v1111 = vadd.f32 %v686, %v1110
      %v1112 = vrot.slane %v1111, 2
      %v1113 = vadd.f32 %v1111, %v1112
      %v1114 = vrot.slane %v1113, 1
      %v1115 = vadd.f32 %v1113, %v1114
      %v1116 = vrot.slane %v693, 4
      %v1117 = vadd.f32 %v693, %v1116
      %v1118 = vrot.slane %v1117, 2
      %v1119 = vadd.f32 %v1117, %v1118
      %v1120 = vrot.slane %v1119, 1
      %v1121 = vadd.f32 %v1119, %v1120
      %v1122 = vrot.slane %v700, 4
      %v1123 = vadd.f32 %v700, %v1122
      %v1124 = vrot.slane %v1123, 2
      %v1125 = vadd.f32 %v1123, %v1124
      %v1126 = vrot.slane %v1125, 1
      %v1127 = vadd.f32 %v1125, %v1126
      %v1128 = vrot.slane %v707, 4
      %v1129 = vadd.f32 %v707, %v1128
      %v1130 = vrot.slane %v1129, 2
      %v1131 = vadd.f32 %v1129, %v1130
      %v1132 = vrot.slane %v1131, 1
      %v1133 = vadd.f32 %v1131, %v1132
      %v1134 = vrot.slane %v714, 4
      %v1135 = vadd.f32 %v714, %v1134
      %v1136 = vrot.slane %v1135, 2
      %v1137 = vadd.f32 %v1135, %v1136
      %v1138 = vrot.slane %v1137, 1
      %v1139 = vadd.f32 %v1137, %v1138
      %v1140 = vrot.slane %v721, 4
      %v1141 = vadd.f32 %v721, %v1140
      %v1142 = vrot.slane %v1141, 2
      %v1143 = vadd.f32 %v1141, %v1142
      %v1144 = vrot.slane %v1143, 1
      %v1145 = vadd.f32 %v1143, %v1144
      %v1146 = vrot.slane %v728, 4
      %v1147 = vadd.f32 %v728, %v1146
      %v1148 = vrot.slane %v1147, 2
      %v1149 = vadd.f32 %v1147, %v1148
      %v1150 = vrot.slane %v1149, 1
      %v1151 = vadd.f32 %v1149, %v1150
      %v1152 = vrot.slane %v735, 4
      %v1153 = vadd.f32 %v735, %v1152
      %v1154 = vrot.slane %v1153, 2
      %v1155 = vadd.f32 %v1153, %v1154
      %v1156 = vrot.slane %v1155, 1
      %v1157 = vadd.f32 %v1155, %v1156
      %v1158 = vrot.slane %v742, 4
      %v1159 = vadd.f32 %v742, %v1158
      %v1160 = vrot.slane %v1159, 2
      %v1161 = vadd.f32 %v1159, %v1160
      %v1162 = vrot.slane %v1161, 1
      %v1163 = vadd.f32 %v1161, %v1162
      %v1164 = vrot.slane %v749, 4
      %v1165 = vadd.f32 %v749, %v1164
      %v1166 = vrot.slane %v1165, 2
      %v1167 = vadd.f32 %v1165, %v1166
      %v1168 = vrot.slane %v1167, 1
      %v1169 = vadd.f32 %v1167, %v1168
      %v1170 = vrot.slane %v756, 4
      %v1171 = vadd.f32 %v756, %v1170
      %v1172 = vrot.slane %v1171, 2
      %v1173 = vadd.f32 %v1171, %v1172
      %v1174 = vrot.slane %v1173, 1
      %v1175 = vadd.f32 %v1173, %v1174
      %v1176 = vrot.slane %v763, 4
      %v1177 = vadd.f32 %v763, %v1176
      %v1178 = vrot.slane %v1177, 2
      %v1179 = vadd.f32 %v1177, %v1178
      %v1180 = vrot.slane %v1179, 1
      %v1181 = vadd.f32 %v1179, %v1180
      %v1182 = vrot.slane %v770, 4
      %v1183 = vadd.f32 %v770, %v1182
      %v1184 = vrot.slane %v1183, 2
      %v1185 = vadd.f32 %v1183, %v1184
      %v1186 = vrot.slane %v1185, 1
      %v1187 = vadd.f32 %v1185, %v1186
      %v1188 = vrot.slane %v777, 4
      %v1189 = vadd.f32 %v777, %v1188
      %v1190 = vrot.slane %v1189, 2
      %v1191 = vadd.f32 %v1189, %v1190
      %v1192 = vrot.slane %v1191, 1
      %v1193 = vadd.f32 %v1191, %v1192
      %v1194 = vrot.slane %v784, 4
      %v1195 = vadd.f32 %v784, %v1194
      %v1196 = vrot.slane %v1195, 2
      %v1197 = vadd.f32 %v1195, %v1196
      %v1198 = vrot.slane %v1197, 1
      %v1199 = vadd.f32 %v1197, %v1198
      %v1200 = vrot.slane %v791, 4
      %v1201 = vadd.f32 %v791, %v1200
      %v1202 = vrot.slane %v1201, 2
      %v1203 = vadd.f32 %v1201, %v1202
      %v1204 = vrot.slane %v1203, 1
      %v1205 = vadd.f32 %v1203, %v1204
      %v1206 = vrot.slane %v798, 4
      %v1207 = vadd.f32 %v798, %v1206
      %v1208 = vrot.slane %v1207, 2
      %v1209 = vadd.f32 %v1207, %v1208
      %v1210 = vrot.slane %v1209, 1
      %v1211 = vadd.f32 %v1209, %v1210
      %v1212 = vrot.slane %v805, 4
      %v1213 = vadd.f32 %v805, %v1212
      %v1214 = vrot.slane %v1213, 2
      %v1215 = vadd.f32 %v1213, %v1214
      %v1216 = vrot.slane %v1215, 1
      %v1217 = vadd.f32 %v1215, %v1216
      %v1218 = vrot.slane %v812, 4
      %v1219 = vadd.f32 %v812, %v1218
      %v1220 = vrot.slane %v1219, 2
      %v1221 = vadd.f32 %v1219, %v1220
      %v1222 = vrot.slane %v1221, 1
      %v1223 = vadd.f32 %v1221, %v1222
      %v1224 = vrot.slane %v819, 4
      %v1225 = vadd.f32 %v819, %v1224
      %v1226 = vrot.slane %v1225, 2
      %v1227 = vadd.f32 %v1225, %v1226
      %v1228 = vrot.slane %v1227, 1
      %v1229 = vadd.f32 %v1227, %v1228
      %v1230 = vrot.slane %v826, 4
      %v1231 = vadd.f32 %v826, %v1230
      %v1232 = vrot.slane %v1231, 2
      %v1233 = vadd.f32 %v1231, %v1232
      %v1234 = vrot.slane %v1233, 1
      %v1235 = vadd.f32 %v1233, %v1234
      %v1236 = vrot.slane %v833, 4
      %v1237 = vadd.f32 %v833, %v1236
      %v1238 = vrot.slane %v1237, 2
      %v1239 = vadd.f32 %v1237, %v1238
      %v1240 = vrot.slane %v1239, 1
      %v1241 = vadd.f32 %v1239, %v1240
      %v1242 = vrot.slane %v840, 4
      %v1243 = vadd.f32 %v840, %v1242
      %v1244 = vrot.slane %v1243, 2
      %v1245 = vadd.f32 %v1243, %v1244
      %v1246 = vrot.slane %v1245, 1
      %v1247 = vadd.f32 %v1245, %v1246
      %v1248 = vrot.slane %v847, 4
      %v1249 = vadd.f32 %v847, %v1248
      %v1250 = vrot.slane %v1249, 2
      %v1251 = vadd.f32 %v1249, %v1250
      %v1252 = vrot.slane %v1251, 1
      %v1253 = vadd.f32 %v1251, %v1252
      %v1254 = vrot.slane %v854, 4
      %v1255 = vadd.f32 %v854, %v1254
      %v1256 = vrot.slane %v1255, 2
      %v1257 = vadd.f32 %v1255, %v1256
      %v1258 = vrot.slane %v1257, 1
      %v1259 = vadd.f32 %v1257, %v1258
      %v1260 = vrot.slane %v861, 4
      %v1261 = vadd.f32 %v861, %v1260
      %v1262 = vrot.slane %v1261, 2
      %v1263 = vadd.f32 %v1261, %v1262
      %v1264 = vrot.slane %v1263, 1
      %v1265 = vadd.f32 %v1263, %v1264
      %v1266 = vrot.slane %v868, 4
      %v1267 = vadd.f32 %v868, %v1266
      %v1268 = vrot.slane %v1267, 2
      %v1269 = vadd.f32 %v1267, %v1268
      %v1270 = vrot.slane %v1269, 1
      %v1271 = vadd.f32 %v1269, %v1270
      %v1272 = vrot.slane %v875, 4
      %v1273 = vadd.f32 %v875, %v1272
      %v1274 = vrot.slane %v1273, 2
      %v1275 = vadd.f32 %v1273, %v1274
      %v1276 = vrot.slane %v1275, 1
      %v1277 = vadd.f32 %v1275, %v1276
      %v1278 = vrot.slane %v882, 4
      %v1279 = vadd.f32 %v882, %v1278
      %v1280 = vrot.slane %v1279, 2
      %v1281 = vadd.f32 %v1279, %v1280
      %v1282 = vrot.slane %v1281, 1
      %v1283 = vadd.f32 %v1281, %v1282
      %v1284 = vrot.slane %v889, 4
      %v1285 = vadd.f32 %v889, %v1284
      %v1286 = vrot.slane %v1285, 2
      %v1287 = vadd.f32 %v1285, %v1286
      %v1288 = vrot.slane %v1287, 1
      %v1289 = vadd.f32 %v1287, %v1288
      %v1290 = vrot.slane %v896, 4
      %v1291 = vadd.f32 %v896, %v1290
      %v1292 = vrot.slane %v1291, 2
      %v1293 = vadd.f32 %v1291, %v1292
      %v1294 = vrot.slane %v1293, 1
      %v1295 = vadd.f32 %v1293, %v1294
      %v1296 = vrot.slane %v903, 4
      %v1297 = vadd.f32 %v903, %v1296
      %v1298 = vrot.slane %v1297, 2
      %v1299 = vadd.f32 %v1297, %v1298
      %v1300 = vrot.slane %v1299, 1
      %v1301 = vadd.f32 %v1299, %v1300
      %v1302 = vrot.slane %v910, 4
      %v1303 = vadd.f32 %v910, %v1302
      %v1304 = vrot.slane %v1303, 2
      %v1305 = vadd.f32 %v1303, %v1304
      %v1306 = vrot.slane %v1305, 1
      %v1307 = vadd.f32 %v1305, %v1306
      %v1308 = vrot.slane %v917, 4
      %v1309 = vadd.f32 %v917, %v1308
      %v1310 = vrot.slane %v1309, 2
      %v1311 = vadd.f32 %v1309, %v1310
      %v1312 = vrot.slane %v1311, 1
      %v1313 = vadd.f32 %v1311, %v1312
      %v1314 = vrot.slane %v924, 4
      %v1315 = vadd.f32 %v924, %v1314
      %v1316 = vrot.slane %v1315, 2
      %v1317 = vadd.f32 %v1315, %v1316
      %v1318 = vrot.slane %v1317, 1
      %v1319 = vadd.f32 %v1317, %v1318
      %v1320 = vrot.slane %v931, 4
      %v1321 = vadd.f32 %v931, %v1320
      %v1322 = vrot.slane %v1321, 2
      %v1323 = vadd.f32 %v1321, %v1322
      %v1324 = vrot.slane %v1323, 1
      %v1325 = vadd.f32 %v1323, %v1324
      %v1326 = vrot.slane %v938, 4
      %v1327 = vadd.f32 %v938, %v1326
      %v1328 = vrot.slane %v1327, 2
      %v1329 = vadd.f32 %v1327, %v1328
      %v1330 = vrot.slane %v1329, 1
      %v1331 = vadd.f32 %v1329, %v1330
      %v1332 = vrot.slane %v945, 4
      %v1333 = vadd.f32 %v945, %v1332
      %v1334 = vrot.slane %v1333, 2
      %v1335 = vadd.f32 %v1333, %v1334
      %v1336 = vrot.slane %v1335, 1
      %v1337 = vadd.f32 %v1335, %v1336
      %v1338 = vrot.slane %v952, 4
      %v1339 = vadd.f32 %v952, %v1338
      %v1340 = vrot.slane %v1339, 2
      %v1341 = vadd.f32 %v1339, %v1340
      %v1342 = vrot.slane %v1341, 1
      %v1343 = vadd.f32 %v1341, %v1342
      %v1344 = vrot.slane %v959, 4
      %v1345 = vadd.f32 %v959, %v1344
      %v1346 = vrot.slane %v1345, 2
      %v1347 = vadd.f32 %v1345, %v1346
      %v1348 = vrot.slane %v1347, 1
      %v1349 = vadd.f32 %v1347, %v1348
      %v1350 = vrot.slane %v966, 4
      %v1351 = vadd.f32 %v966, %v1350
      %v1352 = vrot.slane %v1351, 2
      %v1353 = vadd.f32 %v1351, %v1352
      %v1354 = vrot.slane %v1353, 1
      %v1355 = vadd.f32 %v1353, %v1354
      %v1356 = vrot.slane %v973, 4
      %v1357 = vadd.f32 %v973, %v1356
      %v1358 = vrot.slane %v1357, 2
      %v1359 = vadd.f32 %v1357, %v1358
      %v1360 = vrot.slane %v1359, 1
      %v1361 = vadd.f32 %v1359, %v1360
      %v1362 = vrot.slane %v980, 4
      %v1363 = vadd.f32 %v980, %v1362
      %v1364 = vrot.slane %v1363, 2
      %v1365 = vadd.f32 %v1363, %v1364
      %v1366 = vrot.slane %v1365, 1
      %v1367 = vadd.f32 %v1365, %v1366
      %v1368 = vrot.slane %v987, 4
      %v1369 = vadd.f32 %v987, %v1368
      %v1370 = vrot.slane %v1369, 2
      %v1371 = vadd.f32 %v1369, %v1370
      %v1372 = vrot.slane %v1371, 1
      %v1373 = vadd.f32 %v1371, %v1372
      %v1374 = vrot.slane %v994, 4
      %v1375 = vadd.f32 %v994, %v1374
      %v1376 = vrot.slane %v1375, 2
      %v1377 = vadd.f32 %v1375, %v1376
      %v1378 = vrot.slane %v1377, 1
      %v1379 = vadd.f32 %v1377, %v1378
      %v1380 = vrot.slane %v1001, 4
      %v1381 = vadd.f32 %v1001, %v1380
      %v1382 = vrot.slane %v1381, 2
      %v1383 = vadd.f32 %v1381, %v1382
      %v1384 = vrot.slane %v1383, 1
      %v1385 = vadd.f32 %v1383, %v1384
      %v1386 = vmax.f32 %v1007, 1e-06
      %v1387 = vmax.f32 %v1013, 1e-06
      %v1388 = vmax.f32 %v1019, 1e-06
      %v1389 = vmax.f32 %v1025, 1e-06
      %v1390 = vmax.f32 %v1031, 1e-06
      %v1391 = vmax.f32 %v1037, 1e-06
      %v1392 = vmax.f32 %v1043, 1e-06
      %v1393 = vmax.f32 %v1049, 1e-06
      %v1394 = vmax.f32 %v1055, 1e-06
      %v1395 = vmax.f32 %v1061, 1e-06
      %v1396 = vmax.f32 %v1067, 1e-06
      %v1397 = vmax.f32 %v1073, 1e-06
      %v1398 = vmax.f32 %v1079, 1e-06
      %v1399 = vmax.f32 %v1085, 1e-06
      %v1400 = vmax.f32 %v1091, 1e-06
      %v1401 = vmax.f32 %v1097, 1e-06
      %v1402 = vmax.f32 %v1103, 1e-06
      %v1403 = vmax.f32 %v1109, 1e-06
      %v1404 = vmax.f32 %v1115, 1e-06
      %v1405 = vmax.f32 %v1121, 1e-06
      %v1406 = vmax.f32 %v1127, 1e-06
      %v1407 = vmax.f32 %v1133, 1e-06
      %v1408 = vmax.f32 %v1139, 1e-06
      %v1409 = vmax.f32 %v1145, 1e-06
      %v1410 = vmax.f32 %v1151, 1e-06
      %v1411 = vmax.f32 %v1157, 1e-06
      %v1412 = vmax.f32 %v1163, 1e-06
      %v1413 = vmax.f32 %v1169, 1e-06
      %v1414 = vmax.f32 %v1175, 1e-06
      %v1415 = vmax.f32 %v1181, 1e-06
      %v1416 = vmax.f32 %v1187, 1e-06
      %v1417 = vmax.f32 %v1193, 1e-06
      %v1418 = vmax.f32 %v1199, 1e-06
      %v1419 = vmax.f32 %v1205, 1e-06
      %v1420 = vmax.f32 %v1211, 1e-06
      %v1421 = vmax.f32 %v1217, 1e-06
      %v1422 = vmax.f32 %v1223, 1e-06
      %v1423 = vmax.f32 %v1229, 1e-06
      %v1424 = vmax.f32 %v1235, 1e-06
      %v1425 = vmax.f32 %v1241, 1e-06
      %v1426 = vmax.f32 %v1247, 1e-06
      %v1427 = vmax.f32 %v1253, 1e-06
      %v1428 = vmax.f32 %v1259, 1e-06
      %v1429 = vmax.f32 %v1265, 1e-06
      %v1430 = vmax.f32 %v1271, 1e-06
      %v1431 = vmax.f32 %v1277, 1e-06
      %v1432 = vmax.f32 %v1283, 1e-06
      %v1433 = vmax.f32 %v1289, 1e-06
      %v1434 = vmax.f32 %v1295, 1e-06
      %v1435 = vmax.f32 %v1301, 1e-06
      %v1436 = vmax.f32 %v1307, 1e-06
      %v1437 = vmax.f32 %v1313, 1e-06
      %v1438 = vmax.f32 %v1319, 1e-06
      %v1439 = vmax.f32 %v1325, 1e-06
      %v1440 = vmax.f32 %v1331, 1e-06
      %v1441 = vmax.f32 %v1337, 1e-06
      %v1442 = vmax.f32 %v1343, 1e-06
      %v1443 = vmax.f32 %v1349, 1e-06
      %v1444 = vmax.f32 %v1355, 1e-06
      %v1445 = vmax.f32 %v1361, 1e-06
      %v1446 = vmax.f32 %v1367, 1e-06
      %v1447 = vmax.f32 %v1373, 1e-06
      %v1448 = vmax.f32 %v1379, 1e-06
      %v1449 = vmax.f32 %v1385, 1e-06
      %v1450 = vrcp.pop %v1386
      %v1451 = vrcp.pop %v1387
      %v1452 = vrcp.pop %v1388
      %v1453 = vrcp.pop %v1389
      %v1454 = vrcp.pop %v1390
      %v1455 = vrcp.pop %v1391
      %v1456 = vrcp.pop %v1392
      %v1457 = vrcp.pop %v1393
      %v1458 = vrcp.pop %v1394
      %v1459 = vrcp.pop %v1395
      %v1460 = vrcp.pop %v1396
      %v1461 = vrcp.pop %v1397
      %v1462 = vrcp.pop %v1398
      %v1463 = vrcp.pop %v1399
      %v1464 = vrcp.pop %v1400
      %v1465 = vrcp.pop %v1401
      %v1466 = vrcp.pop %v1402
      %v1467 = vrcp.pop %v1403
      %v1468 = vrcp.pop %v1404
      %v1469 = vrcp.pop %v1405
      %v1470 = vrcp.pop %v1406
      %v1471 = vrcp.pop %v1407
      %v1472 = vrcp.pop %v1408
      %v1473 = vrcp.pop %v1409
      %v1474 = vrcp.pop %v1410
      %v1475 = vrcp.pop %v1411
      %v1476 = vrcp.pop %v1412
      %v1477 = vrcp.pop %v1413
      %v1478 = vrcp.pop %v1414
      %v1479 = vrcp.pop %v1415
      %v1480 = vrcp.pop %v1416
      %v1481 = vrcp.pop %v1417
      %v1482 = vrcp.pop %v1418
      %v1483 = vrcp.pop %v1419
      %v1484 = vrcp.pop %v1420
      %v1485 = vrcp.pop %v1421
      %v1486 = vrcp.pop %v1422
      %v1487 = vrcp.pop %v1423
      %v1488 = vrcp.pop %v1424
      %v1489 = vrcp.pop %v1425
      %v1490 = vrcp.pop %v1426
      %v1491 = vrcp.pop %v1427
      %v1492 = vrcp.pop %v1428
      %v1493 = vrcp.pop %v1429
      %v1494 = vrcp.pop %v1430
      %v1495 = vrcp.pop %v1431
      %v1496 = vrcp.pop %v1432
      %v1497 = vrcp.pop %v1433
      %v1498 = vrcp.pop %v1434
      %v1499 = vrcp.pop %v1435
      %v1500 = vrcp.pop %v1436
      %v1501 = vrcp.pop %v1437
      %v1502 = vrcp.pop %v1438
      %v1503 = vrcp.pop %v1439
      %v1504 = vrcp.pop %v1440
      %v1505 = vrcp.pop %v1441
      %v1506 = vrcp.pop %v1442
      %v1507 = vrcp.pop %v1443
      %v1508 = vrcp.pop %v1444
      %v1509 = vrcp.pop %v1445
      %v1510 = vrcp.pop %v1446
      %v1511 = vrcp.pop %v1447
      %v1512 = vrcp.pop %v1448
      %v1513 = vrcp.pop %v1449
      %v1514 = vmul.f32 %v1386, %v1450
      %v1515 = vmul.f32 %v1387, %v1451
      %v1516 = vmul.f32 %v1388, %v1452
      %v1517 = vmul.f32 %v1389, %v1453
      %v1518 = vmul.f32 %v1390, %v1454
      %v1519 = vmul.f32 %v1391, %v1455
      %v1520 = vmul.f32 %v1392, %v1456
      %v1521 = vmul.f32 %v1393, %v1457
      %v1522 = vmul.f32 %v1394, %v1458
      %v1523 = vmul.f32 %v1395, %v1459
      %v1524 = vmul.f32 %v1396, %v1460
      %v1525 = vmul.f32 %v1397, %v1461
      %v1526 = vmul.f32 %v1398, %v1462
      %v1527 = vmul.f32 %v1399, %v1463
      %v1528 = vmul.f32 %v1400, %v1464
      %v1529 = vmul.f32 %v1401, %v1465
      %v1530 = vmul.f32 %v1402, %v1466
      %v1531 = vmul.f32 %v1403, %v1467
      %v1532 = vmul.f32 %v1404, %v1468
      %v1533 = vmul.f32 %v1405, %v1469
      %v1534 = vmul.f32 %v1406, %v1470
      %v1535 = vmul.f32 %v1407, %v1471
      %v1536 = vmul.f32 %v1408, %v1472
      %v1537 = vmul.f32 %v1409, %v1473
      %v1538 = vmul.f32 %v1410, %v1474
      %v1539 = vmul.f32 %v1411, %v1475
      %v1540 = vmul.f32 %v1412, %v1476
      %v1541 = vmul.f32 %v1413, %v1477
      %v1542 = vmul.f32 %v1414, %v1478
      %v1543 = vmul.f32 %v1415, %v1479
      %v1544 = vmul.f32 %v1416, %v1480
      %v1545 = vmul.f32 %v1417, %v1481
      %v1546 = vmul.f32 %v1418, %v1482
      %v1547 = vmul.f32 %v1419, %v1483
      %v1548 = vmul.f32 %v1420, %v1484
      %v1549 = vmul.f32 %v1421, %v1485
      %v1550 = vmul.f32 %v1422, %v1486
      %v1551 = vmul.f32 %v1423, %v1487
      %v1552 = vmul.f32 %v1424, %v1488
      %v1553 = vmul.f32 %v1425, %v1489
      %v1554 = vmul.f32 %v1426, %v1490
      %v1555 = vmul.f32 %v1427, %v1491
      %v1556 = vmul.f32 %v1428, %v1492
      %v1557 = vmul.f32 %v1429, %v1493
      %v1558 = vmul.f32 %v1430, %v1494
      %v1559 = vmul.f32 %v1431, %v1495
      %v1560 = vmul.f32 %v1432, %v1496
      %v1561 = vmul.f32 %v1433, %v1497
      %v1562 = vmul.f32 %v1434, %v1498
      %v1563 = vmul.f32 %v1435, %v1499
      %v1564 = vmul.f32 %v1436, %v1500
      %v1565 = vmul.f32 %v1437, %v1501
      %v1566 = vmul.f32 %v1438, %v1502
      %v1567 = vmul.f32 %v1439, %v1503
      %v1568 = vmul.f32 %v1440, %v1504
      %v1569 = vmul.f32 %v1441, %v1505
      %v1570 = vmul.f32 %v1442, %v1506
      %v1571 = vmul.f32 %v1443, %v1507
      %v1572 = vmul.f32 %v1444, %v1508
      %v1573 = vmul.f32 %v1445, %v1509
      %v1574 = vmul.f32 %v1446, %v1510
      %v1575 = vmul.f32 %v1447, %v1511
      %v1576 = vmul.f32 %v1448, %v1512
      %v1577 = vmul.f32 %v1449, %v1513
      %v1578 = vsub.f32 2.0, %v1514
      %v1579 = vsub.f32 2.0, %v1515
      %v1580 = vsub.f32 2.0, %v1516
      %v1581 = vsub.f32 2.0, %v1517
      %v1582 = vsub.f32 2.0, %v1518
      %v1583 = vsub.f32 2.0, %v1519
      %v1584 = vsub.f32 2.0, %v1520
      %v1585 = vsub.f32 2.0, %v1521
      %v1586 = vsub.f32 2.0, %v1522
      %v1587 = vsub.f32 2.0, %v1523
      %v1588 = vsub.f32 2.0, %v1524
      %v1589 = vsub.f32 2.0, %v1525
      %v1590 = vsub.f32 2.0, %v1526
      %v1591 = vsub.f32 2.0, %v1527
      %v1592 = vsub.f32 2.0, %v1528
      %v1593 = vsub.f32 2.0, %v1529
      %v1594 = vsub.f32 2.0, %v1530
      %v1595 = vsub.f32 2.0, %v1531
      %v1596 = vsub.f32 2.0, %v1532
      %v1597 = vsub.f32 2.0, %v1533
      %v1598 = vsub.f32 2.0, %v1534
      %v1599 = vsub.f32 2.0, %v1535
      %v1600 = vsub.f32 2.0, %v1536
      %v1601 = vsub.f32 2.0, %v1537
      %v1602 = vsub.f32 2.0, %v1538
      %v1603 = vsub.f32 2.0, %v1539
      %v1604 = vsub.f32 2.0, %v1540
      %v1605 = vsub.f32 2.0, %v1541
      %v1606 = vsub.f32 2.0, %v1542
      %v1607 = vsub.f32 2.0, %v1543
      %v1608 = vsub.f32 2.0, %v1544
      %v1609 = vsub.f32 2.0, %v1545
      %v1610 = vsub.f32 2.0, %v1546
      %v1611 = vsub.f32 2.0, %v1547
      %v1612 = vsub.f32 2.0, %v1548
      %v1613 = vsub.f32 2.0, %v1549
      %v1614 = vsub.f32 2.0, %v1550
      %v1615 = vsub.f32 2.0, %v1551
      %v1616 = vsub.f32 2.0, %v1552
      %v1617 = vsub.f32 2.0, %v1553
      %v1618 = vsub.f32 2.0, %v1554
      %v1619 = vsub.f32 2.0, %v1555
      %v1620 = vsub.f32 2.0, %v1556
      %v1621 = vsub.f32 2.0, %v1557
      %v1622 = vsub.f32 2.0, %v1558
      %v1623 = vsub.f32 2.0, %v1559
      %v1624 = vsub.f32 2.0, %v1560
      %v1625 = vsub.f32 2.0, %v1561
      %v1626 = vsub.f32 2.0, %v1562
      %v1627 = vsub.f32 2.0, %v1563
      %v1628 = vsub.f32 2.0, %v1564
      %v1629 = vsub.f32 2.0, %v1565
      %v1630 = vsub.f32 2.0, %v1566
      %v1631 = vsub.f32 2.0, %v1567
      %v1632 = vsub.f32 2.0, %v1568
      %v1633 = vsub.f32 2.0, %v1569
      %v1634 = vsub.f32 2.0, %v1570
      %v1635 = vsub.f32 2.0, %v1571
      %v1636 = vsub.f32 2.0, %v1572
      %v1637 = vsub.f32 2.0, %v1573
      %v1638 = vsub.f32 2.0, %v1574
      %v1639 = vsub.f32 2.0, %v1575
      %v1640 = vsub.f32 2.0, %v1576
      %v1641 = vsub.f32 2.0, %v1577
      %v1642 = vmul.f32 %v1450, %v1578
      %v1643 = vmul.f32 %v1451, %v1579
      %v1644 = vmul.f32 %v1452, %v1580
      %v1645 = vmul.f32 %v1453, %v1581
      %v1646 = vmul.f32 %v1454, %v1582
      %v1647 = vmul.f32 %v1455, %v1583
      %v1648 = vmul.f32 %v1456, %v1584
      %v1649 = vmul.f32 %v1457, %v1585
      %v1650 = vmul.f32 %v1458, %v1586
      %v1651 = vmul.f32 %v1459, %v1587
      %v1652 = vmul.f32 %v1460, %v1588
      %v1653 = vmul.f32 %v1461, %v1589
      %v1654 = vmul.f32 %v1462, %v1590
      %v1655 = vmul.f32 %v1463, %v1591
      %v1656 = vmul.f32 %v1464, %v1592
      %v1657 = vmul.f32 %v1465, %v1593
      %v1658 = vmul.f32 %v1466, %v1594
      %v1659 = vmul.f32 %v1467, %v1595
      %v1660 = vmul.f32 %v1468, %v1596
      %v1661 = vmul.f32 %v1469, %v1597
      %v1662 = vmul.f32 %v1470, %v1598
      %v1663 = vmul.f32 %v1471, %v1599
      %v1664 = vmul.f32 %v1472, %v1600
      %v1665 = vmul.f32 %v1473, %v1601
      %v1666 = vmul.f32 %v1474, %v1602
      %v1667 = vmul.f32 %v1475, %v1603
      %v1668 = vmul.f32 %v1476, %v1604
      %v1669 = vmul.f32 %v1477, %v1605
      %v1670 = vmul.f32 %v1478, %v1606
      %v1671 = vmul.f32 %v1479, %v1607
      %v1672 = vmul.f32 %v1480, %v1608
      %v1673 = vmul.f32 %v1481, %v1609
      %v1674 = vmul.f32 %v1482, %v1610
      %v1675 = vmul.f32 %v1483, %v1611
      %v1676 = vmul.f32 %v1484, %v1612
      %v1677 = vmul.f32 %v1485, %v1613
      %v1678 = vmul.f32 %v1486, %v1614
      %v1679 = vmul.f32 %v1487, %v1615
      %v1680 = vmul.f32 %v1488, %v1616
      %v1681 = vmul.f32 %v1489, %v1617
      %v1682 = vmul.f32 %v1490, %v1618
      %v1683 = vmul.f32 %v1491, %v1619
      %v1684 = vmul.f32 %v1492, %v1620
      %v1685 = vmul.f32 %v1493, %v1621
      %v1686 = vmul.f32 %v1494, %v1622
      %v1687 = vmul.f32 %v1495, %v1623
      %v1688 = vmul.f32 %v1496, %v1624
      %v1689 = vmul.f32 %v1497, %v1625
      %v1690 = vmul.f32 %v1498, %v1626
      %v1691 = vmul.f32 %v1499, %v1627
      %v1692 = vmul.f32 %v1500, %v1628
      %v1693 = vmul.f32 %v1501, %v1629
      %v1694 = vmul.f32 %v1502, %v1630
      %v1695 = vmul.f32 %v1503, %v1631
      %v1696 = vmul.f32 %v1504, %v1632
      %v1697 = vmul.f32 %v1505, %v1633
      %v1698 = vmul.f32 %v1506, %v1634
      %v1699 = vmul.f32 %v1507, %v1635
      %v1700 = vmul.f32 %v1508, %v1636
      %v1701 = vmul.f32 %v1509, %v1637
      %v1702 = vmul.f32 %v1510, %v1638
      %v1703 = vmul.f32 %v1511, %v1639
      %v1704 = vmul.f32 %v1512, %v1640
      %v1705 = vmul.f32 %v1513, %v1641
      %p1706 = scmp.eq.s32.totalorder %s26, 0
      // Predicated region
      $region61: #{weighted_proto_encoder.1} parent=59 // pred_check
        %p1707 = pneg %p1706
      $region62: #{weighted_proto_encoder.1} parent=59 // pred_check_branch
        %1709 = sbr.rel (%p1707) target = $region64
      $region63: #{weighted_proto_encoder.1} parent=59 // pred_region
        %vm1710 = vcmask 261120
        %1711 = vst.msk [vmem:[#allocation3] sm:$0xff] %vm1710, 0.0
        %1712 = vst.msk [vmem:[#allocation3 + $0x8] sm:$0xff] %vm1710, 0.0
        %1713 = vst.msk [vmem:[#allocation3 + $0x10] sm:$0xff] %vm1710, 0.0
        %1714 = vst.msk [vmem:[#allocation3 + $0x18] sm:$0xff] %vm1710, 0.0
        %1715 = vst.msk [vmem:[#allocation3 + $0x20] sm:$0xff] %vm1710, 0.0
        %1716 = vst.msk [vmem:[#allocation3 + $0x28] sm:$0xff] %vm1710, 0.0
        %1717 = vst.msk [vmem:[#allocation3 + $0x30] sm:$0xff] %vm1710, 0.0
        %1718 = vst.msk [vmem:[#allocation3 + $0x38] sm:$0xff] %vm1710, 0.0
        %1719 = vst.msk [vmem:[#allocation3 + $0x40] sm:$0xff] %vm1710, 0.0
        %1720 = vst.msk [vmem:[#allocation3 + $0x48] sm:$0xff] %vm1710, 0.0
        %1721 = vst.msk [vmem:[#allocation3 + $0x50] sm:$0xff] %vm1710, 0.0
        %1722 = vst.msk [vmem:[#allocation3 + $0x58] sm:$0xff] %vm1710, 0.0
        %1723 = vst.msk [vmem:[#allocation3 + $0x60] sm:$0xff] %vm1710, 0.0
        %1724 = vst.msk [vmem:[#allocation3 + $0x68] sm:$0xff] %vm1710, 0.0
        %1725 = vst.msk [vmem:[#allocation3 + $0x70] sm:$0xff] %vm1710, 0.0
        %1726 = vst.msk [vmem:[#allocation3 + $0x78] sm:$0xff] %vm1710, 0.0
        %1727 = vst.msk [vmem:[#allocation3 + $0x80] sm:$0xff] %vm1710, 0.0
        %1728 = vst.msk [vmem:[#allocation3 + $0x88] sm:$0xff] %vm1710, 0.0
        %1729 = vst.msk [vmem:[#allocation3 + $0x90] sm:$0xff] %vm1710, 0.0
        %1730 = vst.msk [vmem:[#allocation3 + $0x98] sm:$0xff] %vm1710, 0.0
        %1731 = vst.msk [vmem:[#allocation3 + $0xa0] sm:$0xff] %vm1710, 0.0
        %1732 = vst.msk [vmem:[#allocation3 + $0xa8] sm:$0xff] %vm1710, 0.0
        %1733 = vst.msk [vmem:[#allocation3 + $0xb0] sm:$0xff] %vm1710, 0.0
        %1734 = vst.msk [vmem:[#allocation3 + $0xb8] sm:$0xff] %vm1710, 0.0
        %1735 = vst.msk [vmem:[#allocation3 + $0xc0] sm:$0xff] %vm1710, 0.0
        %1736 = vst.msk [vmem:[#allocation3 + $0xc8] sm:$0xff] %vm1710, 0.0
        %1737 = vst.msk [vmem:[#allocation3 + $0xd0] sm:$0xff] %vm1710, 0.0
        %1738 = vst.msk [vmem:[#allocation3 + $0xd8] sm:$0xff] %vm1710, 0.0
        %1739 = vst.msk [vmem:[#allocation3 + $0xe0] sm:$0xff] %vm1710, 0.0
        %1740 = vst.msk [vmem:[#allocation3 + $0xe8] sm:$0xff] %vm1710, 0.0
        %1741 = vst.msk [vmem:[#allocation3 + $0xf0] sm:$0xff] %vm1710, 0.0
        %1742 = vst.msk [vmem:[#allocation3 + $0xf8] sm:$0xff] %vm1710, 0.0
        %1743 = vst.msk [vmem:[#allocation3 + $0x100] sm:$0xff] %vm1710, 0.0
        %1744 = vst.msk [vmem:[#allocation3 + $0x108] sm:$0xff] %vm1710, 0.0
        %1745 = vst.msk [vmem:[#allocation3 + $0x110] sm:$0xff] %vm1710, 0.0
        %1746 = vst.msk [vmem:[#allocation3 + $0x118] sm:$0xff] %vm1710, 0.0
        %1747 = vst.msk [vmem:[#allocation3 + $0x120] sm:$0xff] %vm1710, 0.0
        %1748 = vst.msk [vmem:[#allocation3 + $0x128] sm:$0xff] %vm1710, 0.0
        %1749 = vst.msk [vmem:[#allocation3 + $0x130] sm:$0xff] %vm1710, 0.0
        %1750 = vst.msk [vmem:[#allocation3 + $0x138] sm:$0xff] %vm1710, 0.0
        %1751 = vst.msk [vmem:[#allocation3 + $0x140] sm:$0xff] %vm1710, 0.0
        %1752 = vst.msk [vmem:[#allocation3 + $0x148] sm:$0xff] %vm1710, 0.0
        %1753 = vst.msk [vmem:[#allocation3 + $0x150] sm:$0xff] %vm1710, 0.0
        %1754 = vst.msk [vmem:[#allocation3 + $0x158] sm:$0xff] %vm1710, 0.0
        %1755 = vst.msk [vmem:[#allocation3 + $0x160] sm:$0xff] %vm1710, 0.0
        %1756 = vst.msk [vmem:[#allocation3 + $0x168] sm:$0xff] %vm1710, 0.0
        %1757 = vst.msk [vmem:[#allocation3 + $0x170] sm:$0xff] %vm1710, 0.0
        %1758 = vst.msk [vmem:[#allocation3 + $0x178] sm:$0xff] %vm1710, 0.0
        %1759 = vst.msk [vmem:[#allocation3 + $0x180] sm:$0xff] %vm1710, 0.0
        %1760 = vst.msk [vmem:[#allocation3 + $0x188] sm:$0xff] %vm1710, 0.0
        %1761 = vst.msk [vmem:[#allocation3 + $0x190] sm:$0xff] %vm1710, 0.0
        %1762 = vst.msk [vmem:[#allocation3 + $0x198] sm:$0xff] %vm1710, 0.0
        %1763 = vst.msk [vmem:[#allocation3 + $0x1a0] sm:$0xff] %vm1710, 0.0
        %1764 = vst.msk [vmem:[#allocation3 + $0x1a8] sm:$0xff] %vm1710, 0.0
        %1765 = vst.msk [vmem:[#allocation3 + $0x1b0] sm:$0xff] %vm1710, 0.0
        %1766 = vst.msk [vmem:[#allocation3 + $0x1b8] sm:$0xff] %vm1710, 0.0
        %1767 = vst.msk [vmem:[#allocation3 + $0x1c0] sm:$0xff] %vm1710, 0.0
        %1768 = vst.msk [vmem:[#allocation3 + $0x1c8] sm:$0xff] %vm1710, 0.0
        %1769 = vst.msk [vmem:[#allocation3 + $0x1d0] sm:$0xff] %vm1710, 0.0
        %1770 = vst.msk [vmem:[#allocation3 + $0x1d8] sm:$0xff] %vm1710, 0.0
        %1771 = vst.msk [vmem:[#allocation3 + $0x1e0] sm:$0xff] %vm1710, 0.0
        %1772 = vst.msk [vmem:[#allocation3 + $0x1e8] sm:$0xff] %vm1710, 0.0
        %1773 = vst.msk [vmem:[#allocation3 + $0x1f0] sm:$0xff] %vm1710, 0.0
        %1774 = vst.msk [vmem:[#allocation3 + $0x1f8] sm:$0xff] %vm1710, 0.0
      $region64: #{weighted_proto_encoder.1} parent=59 // pred_fallthru
        _
      %v1775 = vld [vmem:[%s521] sm:$0x1]
      // Predicated region
      $region65: #{weighted_proto_encoder.1} parent=59 // pred_check
        %p1776 = pneg %p1706
      $region66: #{weighted_proto_encoder.1} parent=59 // pred_check_branch
        %1778 = sbr.rel (%p1776) target = $region68
      $region67: #{weighted_proto_encoder.1} parent=59 // pred_region
        %v1779 = vld [vmem:[%s494] sm:$0xff]
        %v1780 = vld [vmem:[%s494 + $0x8] sm:$0xff]
        %v1781 = vld [vmem:[%s494 + $0x10] sm:$0xff]
        %v1782 = vld [vmem:[%s494 + $0x18] sm:$0xff]
        %v1783 = vld [vmem:[%s494 + $0x20] sm:$0xff]
        %v1784 = vld [vmem:[%s494 + $0x28] sm:$0xff]
        %v1785 = vld [vmem:[%s494 + $0x30] sm:$0xff]
        %v1786 = vld [vmem:[%s494 + $0x38] sm:$0xff]
        %v1787 = vld [vmem:[%s494 + $0x40] sm:$0xff]
        %v1788 = vld [vmem:[%s494 + $0x48] sm:$0xff]
        %v1789 = vld [vmem:[%s494 + $0x50] sm:$0xff]
        %v1790 = vld [vmem:[%s494 + $0x58] sm:$0xff]
        %v1791 = vld [vmem:[%s494 + $0x60] sm:$0xff]
        %v1792 = vld [vmem:[%s494 + $0x68] sm:$0xff]
        %v1793 = vld [vmem:[%s494 + $0x70] sm:$0xff]
        %v1794 = vld [vmem:[%s494 + $0x78] sm:$0xff]
        %v1795 = vld [vmem:[%s494 + $0x80] sm:$0xff]
        %v1796 = vld [vmem:[%s494 + $0x88] sm:$0xff]
        %v1797 = vld [vmem:[%s494 + $0x90] sm:$0xff]
        %v1798 = vld [vmem:[%s494 + $0x98] sm:$0xff]
        %v1799 = vld [vmem:[%s494 + $0xa0] sm:$0xff]
        %v1800 = vld [vmem:[%s494 + $0xa8] sm:$0xff]
        %v1801 = vld [vmem:[%s494 + $0xb0] sm:$0xff]
        %v1802 = vld [vmem:[%s494 + $0xb8] sm:$0xff]
        %v1803 = vld [vmem:[%s494 + $0xc0] sm:$0xff]
        %v1804 = vld [vmem:[%s494 + $0xc8] sm:$0xff]
        %v1805 = vld [vmem:[%s494 + $0xd0] sm:$0xff]
        %v1806 = vld [vmem:[%s494 + $0xd8] sm:$0xff]
        %v1807 = vld [vmem:[%s494 + $0xe0] sm:$0xff]
        %v1808 = vld [vmem:[%s494 + $0xe8] sm:$0xff]
        %v1809 = vld [vmem:[%s494 + $0xf0] sm:$0xff]
        %v1810 = vld [vmem:[%s494 + $0xf8] sm:$0xff]
        %v1811 = vld [vmem:[%s494 + $0x100] sm:$0xff]
        %v1812 = vld [vmem:[%s494 + $0x108] sm:$0xff]
        %v1813 = vld [vmem:[%s494 + $0x110] sm:$0xff]
        %v1814 = vld [vmem:[%s494 + $0x118] sm:$0xff]
        %v1815 = vld [vmem:[%s494 + $0x120] sm:$0xff]
        %v1816 = vld [vmem:[%s494 + $0x128] sm:$0xff]
        %v1817 = vld [vmem:[%s494 + $0x130] sm:$0xff]
        %v1818 = vld [vmem:[%s494 + $0x138] sm:$0xff]
        %v1819 = vld [vmem:[%s494 + $0x140] sm:$0xff]
        %v1820 = vld [vmem:[%s494 + $0x148] sm:$0xff]
        %v1821 = vld [vmem:[%s494 + $0x150] sm:$0xff]
        %v1822 = vld [vmem:[%s494 + $0x158] sm:$0xff]
        %v1823 = vld [vmem:[%s494 + $0x160] sm:$0xff]
        %v1824 = vld [vmem:[%s494 + $0x168] sm:$0xff]
        %v1825 = vld [vmem:[%s494 + $0x170] sm:$0xff]
        %v1826 = vld [vmem:[%s494 + $0x178] sm:$0xff]
        %v1827 = vld [vmem:[%s494 + $0x180] sm:$0xff]
        %v1828 = vld [vmem:[%s494 + $0x188] sm:$0xff]
        %v1829 = vld [vmem:[%s494 + $0x190] sm:$0xff]
        %v1830 = vld [vmem:[%s494 + $0x198] sm:$0xff]
        %v1831 = vld [vmem:[%s494 + $0x1a0] sm:$0xff]
        %v1832 = vld [vmem:[%s494 + $0x1a8] sm:$0xff]
        %v1833 = vld [vmem:[%s494 + $0x1b0] sm:$0xff]
        %v1834 = vld [vmem:[%s494 + $0x1b8] sm:$0xff]
        %v1835 = vld [vmem:[%s494 + $0x1c0] sm:$0xff]
        %v1836 = vld [vmem:[%s494 + $0x1c8] sm:$0xff]
        %v1837 = vld [vmem:[%s494 + $0x1d0] sm:$0xff]
        %v1838 = vld [vmem:[%s494 + $0x1d8] sm:$0xff]
        %v1839 = vld [vmem:[%s494 + $0x1e0] sm:$0xff]
        %v1840 = vld [vmem:[%s494 + $0x1e8] sm:$0xff]
        %v1841 = vld [vmem:[%s494 + $0x1f0] sm:$0xff]
        %v1842 = vld [vmem:[%s494 + $0x1f8] sm:$0xff]
        %v1843 = vpack.c.bf16 %v1780, %v1779
        %v1844 = vpack.c.bf16 %v1782, %v1781
        %v1845 = vpack.c.bf16 %v1784, %v1783
        %v1846 = vpack.c.bf16 %v1786, %v1785
        %v1847 = vpack.c.bf16 %v1788, %v1787
        %v1848 = vpack.c.bf16 %v1790, %v1789
        %v1849 = vpack.c.bf16 %v1792, %v1791
        %v1850 = vpack.c.bf16 %v1794, %v1793
        %v1851 = vpack.c.bf16 %v1796, %v1795
        %v1852 = vpack.c.bf16 %v1798, %v1797
        %v1853 = vpack.c.bf16 %v1800, %v1799
        %v1854 = vpack.c.bf16 %v1802, %v1801
        %v1855 = vpack.c.bf16 %v1804, %v1803
        %v1856 = vpack.c.bf16 %v1806, %v1805
        %v1857 = vpack.c.bf16 %v1808, %v1807
        %v1858 = vpack.c.bf16 %v1810, %v1809
        %v1859 = vpack.c.bf16 %v1812, %v1811
        %v1860 = vpack.c.bf16 %v1814, %v1813
        %v1861 = vpack.c.bf16 %v1816, %v1815
        %v1862 = vpack.c.bf16 %v1818, %v1817
        %v1863 = vpack.c.bf16 %v1820, %v1819
        %v1864 = vpack.c.bf16 %v1822, %v1821
        %v1865 = vpack.c.bf16 %v1824, %v1823
        %v1866 = vpack.c.bf16 %v1826, %v1825
        %v1867 = vpack.c.bf16 %v1828, %v1827
        %v1868 = vpack.c.bf16 %v1830, %v1829
        %v1869 = vpack.c.bf16 %v1832, %v1831
        %v1870 = vpack.c.bf16 %v1834, %v1833
        %v1871 = vpack.c.bf16 %v1836, %v1835
        %v1872 = vpack.c.bf16 %v1838, %v1837
        %v1873 = vpack.c.bf16 %v1840, %v1839
        %v1874 = vpack.c.bf16 %v1842, %v1841
        %v1875 = vld [vmem:[%s2] sm:$0xf]
        %v1876 = vld [vmem:[%s2 + $0x4] sm:$0xf]
        %v1878 = vperm.slane %v1775, 0
        %v1882 = vunpack.c.l.b16 %v1875
        %v1883 = vunpack.c.l.b16 %v1876
        %v1884 = vpack.c.b16 %v1883, %v1882
        %vm1886 = vcmask 130048
        %v1888 = vsel %vm1886, %v1843, 0
        %v1891 = vsel %vm1886, %v1844, 0
        %v1894 = vsel %vm1886, %v1845, 0
        %v1897 = vsel %vm1886, %v1846, 0
        %v1900 = vsel %vm1886, %v1847, 0
        %v1903 = vsel %vm1886, %v1848, 0
        %v1906 = vsel %vm1886, %v1849, 0
        %v1909 = vsel %vm1886, %v1850, 0
        %v1912 = vsel %vm1886, %v1851, 0
        %v1915 = vsel %vm1886, %v1852, 0
        %v1918 = vsel %vm1886, %v1853, 0
        %v1921 = vsel %vm1886, %v1854, 0
        %v1924 = vsel %vm1886, %v1855, 0
        %v1927 = vsel %vm1886, %v1856, 0
        %v1930 = vsel %vm1886, %v1857, 0
        %v1933 = vsel %vm1886, %v1858, 0
        %v1936 = vsel %vm1886, %v1859, 0
        %v1939 = vsel %vm1886, %v1860, 0
        %v1942 = vsel %vm1886, %v1861, 0
        %v1945 = vsel %vm1886, %v1862, 0
        %v1948 = vsel %vm1886, %v1863, 0
        %v1951 = vsel %vm1886, %v1864, 0
        %v1954 = vsel %vm1886, %v1865, 0
        %v1957 = vsel %vm1886, %v1866, 0
        %v1960 = vsel %vm1886, %v1867, 0
        %v1963 = vsel %vm1886, %v1868, 0
        %v1966 = vsel %vm1886, %v1869, 0
        %v1969 = vsel %vm1886, %v1870, 0
        %v1972 = vsel %vm1886, %v1871, 0
        %v1975 = vsel %vm1886, %v1872, 0
        %v1978 = vsel %vm1886, %v1873, 0
        %v1981 = vsel %vm1886, %v1874, 0
        %1983 = vmatpush.bf16.msra.mxu0 0
        %1984 = vmatpush.bf16.msra.mxu0 0
        %1985 = vmatpush.bf16.msra.mxu0 0
        %1986 = vmatpush.bf16.msra.mxu0 0
        %1987 = vmatpush.bf16.msra.mxu0 0
        %1988 = vmatpush.bf16.msra.mxu0 0
        %1989 = vmatpush.bf16.msra.mxu0 0
        %1990 = vmatpush.bf16.msra.mxu0 %v1884
        %1991 = vmatmul.bf16.gmra.mxu0 %v1888
        %v1992 = vpop.f32.mrf.mxu0
        %v1993 = vadd.f32 %v1878, %v1992
        %v1994 = vpop.f32.mrf.mxu0
        %v1995 = vadd.f32 %v1878, %v1994
        %1996 = vmatmul.bf16.gmra.mxu0 %v1891
        %v1997 = vpop.f32.mrf.mxu0
        %v1998 = vadd.f32 %v1878, %v1997
        %v1999 = vpop.f32.mrf.mxu0
        %v2000 = vadd.f32 %v1878, %v1999
        %2001 = vmatmul.bf16.gmra.mxu0 %v1894
        %v2002 = vpop.f32.mrf.mxu0
        %v2003 = vadd.f32 %v1878, %v2002
        %v2004 = vpop.f32.mrf.mxu0
        %v2005 = vadd.f32 %v1878, %v2004
        %2006 = vmatmul.bf16.gmra.mxu0 %v1897
        %v2007 = vpop.f32.mrf.mxu0
        %v2008 = vadd.f32 %v1878, %v2007
        %v2009 = vpop.f32.mrf.mxu0
        %v2010 = vadd.f32 %v1878, %v2009
        %2011 = vmatmul.bf16.gmra.mxu0 %v1900
        %v2012 = vpop.f32.mrf.mxu0
        %v2013 = vadd.f32 %v1878, %v2012
        %v2014 = vpop.f32.mrf.mxu0
        %v2015 = vadd.f32 %v1878, %v2014
        %2016 = vmatmul.bf16.gmra.mxu0 %v1903
        %v2017 = vpop.f32.mrf.mxu0
        %v2018 = vadd.f32 %v1878, %v2017
        %v2019 = vpop.f32.mrf.mxu0
        %v2020 = vadd.f32 %v1878, %v2019
        %2021 = vmatmul.bf16.gmra.mxu0 %v1906
        %v2022 = vpop.f32.mrf.mxu0
        %v2023 = vadd.f32 %v1878, %v2022
        %v2024 = vpop.f32.mrf.mxu0
        %v2025 = vadd.f32 %v1878, %v2024
        %2026 = vmatmul.bf16.gmra.mxu0 %v1909
        %v2027 = vpop.f32.mrf.mxu0
        %v2028 = vadd.f32 %v1878, %v2027
        %v2029 = vpop.f32.mrf.mxu0
        %v2030 = vadd.f32 %v1878, %v2029
        %2031 = vmatmul.bf16.gmra.mxu0 %v1912
        %v2032 = vpop.f32.mrf.mxu0
        %v2033 = vadd.f32 %v1878, %v2032
        %v2034 = vpop.f32.mrf.mxu0
        %v2035 = vadd.f32 %v1878, %v2034
        %2036 = vmatmul.bf16.gmra.mxu0 %v1915
        %v2037 = vpop.f32.mrf.mxu0
        %v2038 = vadd.f32 %v1878, %v2037
        %v2039 = vpop.f32.mrf.mxu0
        %v2040 = vadd.f32 %v1878, %v2039
        %2041 = vmatmul.bf16.gmra.mxu0 %v1918
        %v2042 = vpop.f32.mrf.mxu0
        %v2043 = vadd.f32 %v1878, %v2042
        %v2044 = vpop.f32.mrf.mxu0
        %v2045 = vadd.f32 %v1878, %v2044
        %2046 = vmatmul.bf16.gmra.mxu0 %v1921
        %v2047 = vpop.f32.mrf.mxu0
        %v2048 = vadd.f32 %v1878, %v2047
        %v2049 = vpop.f32.mrf.mxu0
        %v2050 = vadd.f32 %v1878, %v2049
        %2051 = vmatmul.bf16.gmra.mxu0 %v1924
        %v2052 = vpop.f32.mrf.mxu0
        %v2053 = vadd.f32 %v1878, %v2052
        %v2054 = vpop.f32.mrf.mxu0
        %v2055 = vadd.f32 %v1878, %v2054
        %2056 = vmatmul.bf16.gmra.mxu0 %v1927
        %v2057 = vpop.f32.mrf.mxu0
        %v2058 = vadd.f32 %v1878, %v2057
        %v2059 = vpop.f32.mrf.mxu0
        %v2060 = vadd.f32 %v1878, %v2059
        %2061 = vmatmul.bf16.gmra.mxu0 %v1930
        %v2062 = vpop.f32.mrf.mxu0
        %v2063 = vadd.f32 %v1878, %v2062
        %v2064 = vpop.f32.mrf.mxu0
        %v2065 = vadd.f32 %v1878, %v2064
        %2066 = vmatmul.bf16.gmra.mxu0 %v1933
        %v2067 = vpop.f32.mrf.mxu0
        %v2068 = vadd.f32 %v1878, %v2067
        %v2069 = vpop.f32.mrf.mxu0
        %v2070 = vadd.f32 %v1878, %v2069
        %2071 = vmatmul.bf16.gmra.mxu0 %v1936
        %v2072 = vpop.f32.mrf.mxu0
        %v2073 = vadd.f32 %v1878, %v2072
        %v2074 = vpop.f32.mrf.mxu0
        %v2075 = vadd.f32 %v1878, %v2074
        %2076 = vmatmul.bf16.gmra.mxu0 %v1939
        %v2077 = vpop.f32.mrf.mxu0
        %v2078 = vadd.f32 %v1878, %v2077
        %v2079 = vpop.f32.mrf.mxu0
        %v2080 = vadd.f32 %v1878, %v2079
        %2081 = vmatmul.bf16.gmra.mxu0 %v1942
        %v2082 = vpop.f32.mrf.mxu0
        %v2083 = vadd.f32 %v1878, %v2082
        %v2084 = vpop.f32.mrf.mxu0
        %v2085 = vadd.f32 %v1878, %v2084
        %2086 = vmatmul.bf16.gmra.mxu0 %v1945
        %v2087 = vpop.f32.mrf.mxu0
        %v2088 = vadd.f32 %v1878, %v2087
        %v2089 = vpop.f32.mrf.mxu0
        %v2090 = vadd.f32 %v1878, %v2089
        %2091 = vmatmul.bf16.gmra.mxu0 %v1948
        %v2092 = vpop.f32.mrf.mxu0
        %v2093 = vadd.f32 %v1878, %v2092
        %v2094 = vpop.f32.mrf.mxu0
        %v2095 = vadd.f32 %v1878, %v2094
        %2096 = vmatmul.bf16.gmra.mxu0 %v1951
        %v2097 = vpop.f32.mrf.mxu0
        %v2098 = vadd.f32 %v1878, %v2097
        %v2099 = vpop.f32.mrf.mxu0
        %v2100 = vadd.f32 %v1878, %v2099
        %2101 = vmatmul.bf16.gmra.mxu0 %v1954
        %v2102 = vpop.f32.mrf.mxu0
        %v2103 = vadd.f32 %v1878, %v2102
        %v2104 = vpop.f32.mrf.mxu0
        %v2105 = vadd.f32 %v1878, %v2104
        %2106 = vmatmul.bf16.gmra.mxu0 %v1957
        %v2107 = vpop.f32.mrf.mxu0
        %v2108 = vadd.f32 %v1878, %v2107
        %v2109 = vpop.f32.mrf.mxu0
        %v2110 = vadd.f32 %v1878, %v2109
        %2111 = vmatmul.bf16.gmra.mxu0 %v1960
        %v2112 = vpop.f32.mrf.mxu0
        %v2113 = vadd.f32 %v1878, %v2112
        %v2114 = vpop.f32.mrf.mxu0
        %v2115 = vadd.f32 %v1878, %v2114
        %2116 = vmatmul.bf16.gmra.mxu0 %v1963
        %v2117 = vpop.f32.mrf.mxu0
        %v2118 = vadd.f32 %v1878, %v2117
        %v2119 = vpop.f32.mrf.mxu0
        %v2120 = vadd.f32 %v1878, %v2119
        %2121 = vmatmul.bf16.gmra.mxu0 %v1966
        %v2122 = vpop.f32.mrf.mxu0
        %v2123 = vadd.f32 %v1878, %v2122
        %v2124 = vpop.f32.mrf.mxu0
        %v2125 = vadd.f32 %v1878, %v2124
        %2126 = vmatmul.bf16.gmra.mxu0 %v1969
        %v2127 = vpop.f32.mrf.mxu0
        %v2128 = vadd.f32 %v1878, %v2127
        %v2129 = vpop.f32.mrf.mxu0
        %v2130 = vadd.f32 %v1878, %v2129
        %2131 = vmatmul.bf16.gmra.mxu0 %v1972
        %v2132 = vpop.f32.mrf.mxu0
        %v2133 = vadd.f32 %v1878, %v2132
        %v2134 = vpop.f32.mrf.mxu0
        %v2135 = vadd.f32 %v1878, %v2134
        %2136 = vmatmul.bf16.gmra.mxu0 %v1975
        %v2137 = vpop.f32.mrf.mxu0
        %v2138 = vadd.f32 %v1878, %v2137
        %v2139 = vpop.f32.mrf.mxu0
        %v2140 = vadd.f32 %v1878, %v2139
        %2141 = vmatmul.bf16.gmra.mxu0 %v1978
        %v2142 = vpop.f32.mrf.mxu0
        %v2143 = vadd.f32 %v1878, %v2142
        %v2144 = vpop.f32.mrf.mxu0
        %v2145 = vadd.f32 %v1878, %v2144
        %2146 = vmatmul.bf16.gmra.mxu0 %v1981
        %v2147 = vpop.f32.mrf.mxu0
        %v2148 = vadd.f32 %v1878, %v2147
        %v2149 = vpop.f32.mrf.mxu0
        %v2150 = vadd.f32 %v1878, %v2149
        %2151 = vdwg.mxu0
        %v2152 = vmax.f32 %v1993, 0.0
        %v2153 = vmax.f32 %v1995, 0.0
        %v2154 = vmax.f32 %v1998, 0.0
        %v2155 = vmax.f32 %v2000, 0.0
        %v2156 = vmax.f32 %v2003, 0.0
        %v2157 = vmax.f32 %v2005, 0.0
        %v2158 = vmax.f32 %v2008, 0.0
        %v2159 = vmax.f32 %v2010, 0.0
        %v2160 = vmax.f32 %v2013, 0.0
        %v2161 = vmax.f32 %v2015, 0.0
        %v2162 = vmax.f32 %v2018, 0.0
        %v2163 = vmax.f32 %v2020, 0.0
        %v2164 = vmax.f32 %v2023, 0.0
        %v2165 = vmax.f32 %v2025, 0.0
        %v2166 = vmax.f32 %v2028, 0.0
        %v2167 = vmax.f32 %v2030, 0.0
        %v2168 = vmax.f32 %v2033, 0.0
        %v2169 = vmax.f32 %v2035, 0.0
        %v2170 = vmax.f32 %v2038, 0.0
        %v2171 = vmax.f32 %v2040, 0.0
        %v2172 = vmax.f32 %v2043, 0.0
        %v2173 = vmax.f32 %v2045, 0.0
        %v2174 = vmax.f32 %v2048, 0.0
        %v2175 = vmax.f32 %v2050, 0.0
        %v2176 = vmax.f32 %v2053, 0.0
        %v2177 = vmax.f32 %v2055, 0.0
        %v2178 = vmax.f32 %v2058, 0.0
        %v2179 = vmax.f32 %v2060, 0.0
        %v2180 = vmax.f32 %v2063, 0.0
        %v2181 = vmax.f32 %v2065, 0.0
        %v2182 = vmax.f32 %v2068, 0.0
        %v2183 = vmax.f32 %v2070, 0.0
        %v2184 = vmax.f32 %v2073, 0.0
        %v2185 = vmax.f32 %v2075, 0.0
        %v2186 = vmax.f32 %v2078, 0.0
        %v2187 = vmax.f32 %v2080, 0.0
        %v2188 = vmax.f32 %v2083, 0.0
        %v2189 = vmax.f32 %v2085, 0.0
        %v2190 = vmax.f32 %v2088, 0.0
        %v2191 = vmax.f32 %v2090, 0.0
        %v2192 = vmax.f32 %v2093, 0.0
        %v2193 = vmax.f32 %v2095, 0.0
        %v2194 = vmax.f32 %v2098, 0.0
        %v2195 = vmax.f32 %v2100, 0.0
        %v2196 = vmax.f32 %v2103, 0.0
        %v2197 = vmax.f32 %v2105, 0.0
        %v2198 = vmax.f32 %v2108, 0.0
        %v2199 = vmax.f32 %v2110, 0.0
        %v2200 = vmax.f32 %v2113, 0.0
        %v2201 = vmax.f32 %v2115, 0.0
        %v2202 = vmax.f32 %v2118, 0.0
        %v2203 = vmax.f32 %v2120, 0.0
        %v2204 = vmax.f32 %v2123, 0.0
        %v2205 = vmax.f32 %v2125, 0.0
        %v2206 = vmax.f32 %v2128, 0.0
        %v2207 = vmax.f32 %v2130, 0.0
        %v2208 = vmax.f32 %v2133, 0.0
        %v2209 = vmax.f32 %v2135, 0.0
        %v2210 = vmax.f32 %v2138, 0.0
        %v2211 = vmax.f32 %v2140, 0.0
        %v2212 = vmax.f32 %v2143, 0.0
        %v2213 = vmax.f32 %v2145, 0.0
        %v2214 = vmax.f32 %v2148, 0.0
        %v2215 = vmax.f32 %v2150, 0.0
        %vm2216 = vcmask 261120
        %2217 = vst.msk [vmem:[#allocation4] sm:$0xff] %vm2216, %v2152
        %2218 = vst.msk [vmem:[#allocation4 + $0x8] sm:$0xff] %vm2216, %v2153
        %2219 = vst.msk [vmem:[#allocation4 + $0x10] sm:$0xff] %vm2216, %v2154
        %2220 = vst.msk [vmem:[#allocation4 + $0x18] sm:$0xff] %vm2216, %v2155
        %2221 = vst.msk [vmem:[#allocation4 + $0x20] sm:$0xff] %vm2216, %v2156
        %2222 = vst.msk [vmem:[#allocation4 + $0x28] sm:$0xff] %vm2216, %v2157
        %2223 = vst.msk [vmem:[#allocation4 + $0x30] sm:$0xff] %vm2216, %v2158
        %2224 = vst.msk [vmem:[#allocation4 + $0x38] sm:$0xff] %vm2216, %v2159
        %2225 = vst.msk [vmem:[#allocation4 + $0x40] sm:$0xff] %vm2216, %v2160
        %2226 = vst.msk [vmem:[#allocation4 + $0x48] sm:$0xff] %vm2216, %v2161
        %2227 = vst.msk [vmem:[#allocation4 + $0x50] sm:$0xff] %vm2216, %v2162
        %2228 = vst.msk [vmem:[#allocation4 + $0x58] sm:$0xff] %vm2216, %v2163
        %2229 = vst.msk [vmem:[#allocation4 + $0x60] sm:$0xff] %vm2216, %v2164
        %2230 = vst.msk [vmem:[#allocation4 + $0x68] sm:$0xff] %vm2216, %v2165
        %2231 = vst.msk [vmem:[#allocation4 + $0x70] sm:$0xff] %vm2216, %v2166
        %2232 = vst.msk [vmem:[#allocation4 + $0x78] sm:$0xff] %vm2216, %v2167
        %2233 = vst.msk [vmem:[#allocation4 + $0x80] sm:$0xff] %vm2216, %v2168
        %2234 = vst.msk [vmem:[#allocation4 + $0x88] sm:$0xff] %vm2216, %v2169
        %2235 = vst.msk [vmem:[#allocation4 + $0x90] sm:$0xff] %vm2216, %v2170
        %2236 = vst.msk [vmem:[#allocation4 + $0x98] sm:$0xff] %vm2216, %v2171
        %2237 = vst.msk [vmem:[#allocation4 + $0xa0] sm:$0xff] %vm2216, %v2172
        %2238 = vst.msk [vmem:[#allocation4 + $0xa8] sm:$0xff] %vm2216, %v2173
        %2239 = vst.msk [vmem:[#allocation4 + $0xb0] sm:$0xff] %vm2216, %v2174
        %2240 = vst.msk [vmem:[#allocation4 + $0xb8] sm:$0xff] %vm2216, %v2175
        %2241 = vst.msk [vmem:[#allocation4 + $0xc0] sm:$0xff] %vm2216, %v2176
        %2242 = vst.msk [vmem:[#allocation4 + $0xc8] sm:$0xff] %vm2216, %v2177
        %2243 = vst.msk [vmem:[#allocation4 + $0xd0] sm:$0xff] %vm2216, %v2178
        %2244 = vst.msk [vmem:[#allocation4 + $0xd8] sm:$0xff] %vm2216, %v2179
        %2245 = vst.msk [vmem:[#allocation4 + $0xe0] sm:$0xff] %vm2216, %v2180
        %2246 = vst.msk [vmem:[#allocation4 + $0xe8] sm:$0xff] %vm2216, %v2181
        %2247 = vst.msk [vmem:[#allocation4 + $0xf0] sm:$0xff] %vm2216, %v2182
        %2248 = vst.msk [vmem:[#allocation4 + $0xf8] sm:$0xff] %vm2216, %v2183
        %2249 = vst.msk [vmem:[#allocation4 + $0x100] sm:$0xff] %vm2216, %v2184
        %2250 = vst.msk [vmem:[#allocation4 + $0x108] sm:$0xff] %vm2216, %v2185
        %2251 = vst.msk [vmem:[#allocation4 + $0x110] sm:$0xff] %vm2216, %v2186
        %2252 = vst.msk [vmem:[#allocation4 + $0x118] sm:$0xff] %vm2216, %v2187
        %2253 = vst.msk [vmem:[#allocation4 + $0x120] sm:$0xff] %vm2216, %v2188
        %2254 = vst.msk [vmem:[#allocation4 + $0x128] sm:$0xff] %vm2216, %v2189
        %2255 = vst.msk [vmem:[#allocation4 + $0x130] sm:$0xff] %vm2216, %v2190
        %2256 = vst.msk [vmem:[#allocation4 + $0x138] sm:$0xff] %vm2216, %v2191
        %2257 = vst.msk [vmem:[#allocation4 + $0x140] sm:$0xff] %vm2216, %v2192
        %2258 = vst.msk [vmem:[#allocation4 + $0x148] sm:$0xff] %vm2216, %v2193
        %2259 = vst.msk [vmem:[#allocation4 + $0x150] sm:$0xff] %vm2216, %v2194
        %2260 = vst.msk [vmem:[#allocation4 + $0x158] sm:$0xff] %vm2216, %v2195
        %2261 = vst.msk [vmem:[#allocation4 + $0x160] sm:$0xff] %vm2216, %v2196
        %2262 = vst.msk [vmem:[#allocation4 + $0x168] sm:$0xff] %vm2216, %v2197
        %2263 = vst.msk [vmem:[#allocation4 + $0x170] sm:$0xff] %vm2216, %v2198
        %2264 = vst.msk [vmem:[#allocation4 + $0x178] sm:$0xff] %vm2216, %v2199
        %2265 = vst.msk [vmem:[#allocation4 + $0x180] sm:$0xff] %vm2216, %v2200
        %2266 = vst.msk [vmem:[#allocation4 + $0x188] sm:$0xff] %vm2216, %v2201
        %2267 = vst.msk [vmem:[#allocation4 + $0x190] sm:$0xff] %vm2216, %v2202
        %2268 = vst.msk [vmem:[#allocation4 + $0x198] sm:$0xff] %vm2216, %v2203
        %2269 = vst.msk [vmem:[#allocation4 + $0x1a0] sm:$0xff] %vm2216, %v2204
        %2270 = vst.msk [vmem:[#allocation4 + $0x1a8] sm:$0xff] %vm2216, %v2205
        %2271 = vst.msk [vmem:[#allocation4 + $0x1b0] sm:$0xff] %vm2216, %v2206
        %2272 = vst.msk [vmem:[#allocation4 + $0x1b8] sm:$0xff] %vm2216, %v2207
        %2273 = vst.msk [vmem:[#allocation4 + $0x1c0] sm:$0xff] %vm2216, %v2208
        %2274 = vst.msk [vmem:[#allocation4 + $0x1c8] sm:$0xff] %vm2216, %v2209
        %2275 = vst.msk [vmem:[#allocation4 + $0x1d0] sm:$0xff] %vm2216, %v2210
        %2276 = vst.msk [vmem:[#allocation4 + $0x1d8] sm:$0xff] %vm2216, %v2211
        %2277 = vst.msk [vmem:[#allocation4 + $0x1e0] sm:$0xff] %vm2216, %v2212
        %2278 = vst.msk [vmem:[#allocation4 + $0x1e8] sm:$0xff] %vm2216, %v2213
        %2279 = vst.msk [vmem:[#allocation4 + $0x1f0] sm:$0xff] %vm2216, %v2214
        %2280 = vst.msk [vmem:[#allocation4 + $0x1f8] sm:$0xff] %vm2216, %v2215
      $region68: #{weighted_proto_encoder.1} parent=59 // pred_fallthru
        _
      %p2281 = scmp.ne.s32.totalorder %s26, 0
      // Predicated region
      $region69: #{weighted_proto_encoder.1} parent=59 // pred_check
        %p2282 = pneg %p2281
      $region70: #{weighted_proto_encoder.1} parent=59 // pred_check_branch
        %2284 = sbr.rel (%p2282) target = $region72
      $region71: #{weighted_proto_encoder.1} parent=59 // pred_region
        %v2285 = vld [vmem:[#allocation2] sm:$0xff]
        %v2286 = vld [vmem:[#allocation2 + $0x8] sm:$0xff]
        %v2287 = vld [vmem:[#allocation2 + $0x10] sm:$0xff]
        %v2288 = vld [vmem:[#allocation2 + $0x18] sm:$0xff]
        %v2289 = vld [vmem:[#allocation2 + $0x20] sm:$0xff]
        %v2290 = vld [vmem:[#allocation2 + $0x28] sm:$0xff]
        %v2291 = vld [vmem:[#allocation2 + $0x30] sm:$0xff]
        %v2292 = vld [vmem:[#allocation2 + $0x38] sm:$0xff]
        %v2293 = vld [vmem:[#allocation2 + $0x40] sm:$0xff]
        %v2294 = vld [vmem:[#allocation2 + $0x48] sm:$0xff]
        %v2295 = vld [vmem:[#allocation2 + $0x50] sm:$0xff]
        %v2296 = vld [vmem:[#allocation2 + $0x58] sm:$0xff]
        %v2297 = vld [vmem:[#allocation2 + $0x60] sm:$0xff]
        %v2298 = vld [vmem:[#allocation2 + $0x68] sm:$0xff]
        %v2299 = vld [vmem:[#allocation2 + $0x70] sm:$0xff]
        %v2300 = vld [vmem:[#allocation2 + $0x78] sm:$0xff]
        %v2301 = vld [vmem:[#allocation2 + $0x80] sm:$0xff]
        %v2302 = vld [vmem:[#allocation2 + $0x88] sm:$0xff]
        %v2303 = vld [vmem:[#allocation2 + $0x90] sm:$0xff]
        %v2304 = vld [vmem:[#allocation2 + $0x98] sm:$0xff]
        %v2305 = vld [vmem:[#allocation2 + $0xa0] sm:$0xff]
        %v2306 = vld [vmem:[#allocation2 + $0xa8] sm:$0xff]
        %v2307 = vld [vmem:[#allocation2 + $0xb0] sm:$0xff]
        %v2308 = vld [vmem:[#allocation2 + $0xb8] sm:$0xff]
        %v2309 = vld [vmem:[#allocation2 + $0xc0] sm:$0xff]
        %v2310 = vld [vmem:[#allocation2 + $0xc8] sm:$0xff]
        %v2311 = vld [vmem:[#allocation2 + $0xd0] sm:$0xff]
        %v2312 = vld [vmem:[#allocation2 + $0xd8] sm:$0xff]
        %v2313 = vld [vmem:[#allocation2 + $0xe0] sm:$0xff]
        %v2314 = vld [vmem:[#allocation2 + $0xe8] sm:$0xff]
        %v2315 = vld [vmem:[#allocation2 + $0xf0] sm:$0xff]
        %v2316 = vld [vmem:[#allocation2 + $0xf8] sm:$0xff]
        %v2317 = vld [vmem:[#allocation2 + $0x100] sm:$0xff]
        %v2318 = vld [vmem:[#allocation2 + $0x108] sm:$0xff]
        %v2319 = vld [vmem:[#allocation2 + $0x110] sm:$0xff]
        %v2320 = vld [vmem:[#allocation2 + $0x118] sm:$0xff]
        %v2321 = vld [vmem:[#allocation2 + $0x120] sm:$0xff]
        %v2322 = vld [vmem:[#allocation2 + $0x128] sm:$0xff]
        %v2323 = vld [vmem:[#allocation2 + $0x130] sm:$0xff]
        %v2324 = vld [vmem:[#allocation2 + $0x138] sm:$0xff]
        %v2325 = vld [vmem:[#allocation2 + $0x140] sm:$0xff]
        %v2326 = vld [vmem:[#allocation2 + $0x148] sm:$0xff]
        %v2327 = vld [vmem:[#allocation2 + $0x150] sm:$0xff]
        %v2328 = vld [vmem:[#allocation2 + $0x158] sm:$0xff]
        %v2329 = vld [vmem:[#allocation2 + $0x160] sm:$0xff]
        %v2330 = vld [vmem:[#allocation2 + $0x168] sm:$0xff]
        %v2331 = vld [vmem:[#allocation2 + $0x170] sm:$0xff]
        %v2332 = vld [vmem:[#allocation2 + $0x178] sm:$0xff]
        %v2333 = vld [vmem:[#allocation2 + $0x180] sm:$0xff]
        %v2334 = vld [vmem:[#allocation2 + $0x188] sm:$0xff]
        %v2335 = vld [vmem:[#allocation2 + $0x190] sm:$0xff]
        %v2336 = vld [vmem:[#allocation2 + $0x198] sm:$0xff]
        %v2337 = vld [vmem:[#allocation2 + $0x1a0] sm:$0xff]
        %v2338 = vld [vmem:[#allocation2 + $0x1a8] sm:$0xff]
        %v2339 = vld [vmem:[#allocation2 + $0x1b0] sm:$0xff]
        %v2340 = vld [vmem:[#allocation2 + $0x1b8] sm:$0xff]
        %v2341 = vld [vmem:[#allocation2 + $0x1c0] sm:$0xff]
        %v2342 = vld [vmem:[#allocation2 + $0x1c8] sm:$0xff]
        %v2343 = vld [vmem:[#allocation2 + $0x1d0] sm:$0xff]
        %v2344 = vld [vmem:[#allocation2 + $0x1d8] sm:$0xff]
        %v2345 = vld [vmem:[#allocation2 + $0x1e0] sm:$0xff]
        %v2346 = vld [vmem:[#allocation2 + $0x1e8] sm:$0xff]
        %v2347 = vld [vmem:[#allocation2 + $0x1f0] sm:$0xff]
        %v2348 = vld [vmem:[#allocation2 + $0x1f8] sm:$0xff]
        %v2349 = vpack.c.bf16 %v2286, %v2285
        %v2350 = vpack.c.bf16 %v2288, %v2287
        %v2351 = vpack.c.bf16 %v2290, %v2289
        %v2352 = vpack.c.bf16 %v2292, %v2291
        %v2353 = vpack.c.bf16 %v2294, %v2293
        %v2354 = vpack.c.bf16 %v2296, %v2295
        %v2355 = vpack.c.bf16 %v2298, %v2297
        %v2356 = vpack.c.bf16 %v2300, %v2299
        %v2357 = vpack.c.bf16 %v2302, %v2301
        %v2358 = vpack.c.bf16 %v2304, %v2303
        %v2359 = vpack.c.bf16 %v2306, %v2305
        %v2360 = vpack.c.bf16 %v2308, %v2307
        %v2361 = vpack.c.bf16 %v2310, %v2309
        %v2362 = vpack.c.bf16 %v2312, %v2311
        %v2363 = vpack.c.bf16 %v2314, %v2313
        %v2364 = vpack.c.bf16 %v2316, %v2315
        %v2365 = vpack.c.bf16 %v2318, %v2317
        %v2366 = vpack.c.bf16 %v2320, %v2319
        %v2367 = vpack.c.bf16 %v2322, %v2321
        %v2368 = vpack.c.bf16 %v2324, %v2323
        %v2369 = vpack.c.bf16 %v2326, %v2325
        %v2370 = vpack.c.bf16 %v2328, %v2327
        %v2371 = vpack.c.bf16 %v2330, %v2329
        %v2372 = vpack.c.bf16 %v2332, %v2331
        %v2373 = vpack.c.bf16 %v2334, %v2333
        %v2374 = vpack.c.bf16 %v2336, %v2335
        %v2375 = vpack.c.bf16 %v2338, %v2337
        %v2376 = vpack.c.bf16 %v2340, %v2339
        %v2377 = vpack.c.bf16 %v2342, %v2341
        %v2378 = vpack.c.bf16 %v2344, %v2343
        %v2379 = vpack.c.bf16 %v2346, %v2345
        %v2380 = vpack.c.bf16 %v2348, %v2347
        %v2381 = vld [vmem:[%s509] sm:$0xf]
        %v2382 = vld [vmem:[%s509 + $0x4] sm:$0xf]
        %v2383 = vld [vmem:[%s509 + $0x8] sm:$0xf]
        %v2384 = vld [vmem:[%s509 + $0xc] sm:$0xf]
        %v2386 = vperm.slane %v1775, 0
        %v2392 = vunpack.c.l.b16 %v2381
        %v2393 = vunpack.c.l.b16 %v2382
        %v2394 = vunpack.c.l.b16 %v2383
        %v2395 = vunpack.c.l.b16 %v2384
        %v2396 = vpack.c.b16 %v2393, %v2392
        %v2397 = vpack.c.b16 %v2395, %v2394
        %vm2400 = vcmask 261120
        %v2402 = vsel %vm2400, %v2349, 0
        %v2405 = vsel %vm2400, %v2350, 0
        %v2408 = vsel %vm2400, %v2351, 0
        %v2411 = vsel %vm2400, %v2352, 0
        %v2414 = vsel %vm2400, %v2353, 0
        %v2417 = vsel %vm2400, %v2354, 0
        %v2420 = vsel %vm2400, %v2355, 0
        %v2423 = vsel %vm2400, %v2356, 0
        %v2426 = vsel %vm2400, %v2357, 0
        %v2429 = vsel %vm2400, %v2358, 0
        %v2432 = vsel %vm2400, %v2359, 0
        %v2435 = vsel %vm2400, %v2360, 0
        %v2438 = vsel %vm2400, %v2361, 0
        %v2441 = vsel %vm2400, %v2362, 0
        %v2444 = vsel %vm2400, %v2363, 0
        %v2447 = vsel %vm2400, %v2364, 0
        %v2450 = vsel %vm2400, %v2365, 0
        %v2453 = vsel %vm2400, %v2366, 0
        %v2456 = vsel %vm2400, %v2367, 0
        %v2459 = vsel %vm2400, %v2368, 0
        %v2462 = vsel %vm2400, %v2369, 0
        %v2465 = vsel %vm2400, %v2370, 0
        %v2468 = vsel %vm2400, %v2371, 0
        %v2471 = vsel %vm2400, %v2372, 0
        %v2474 = vsel %vm2400, %v2373, 0
        %v2477 = vsel %vm2400, %v2374, 0
        %v2480 = vsel %vm2400, %v2375, 0
        %v2483 = vsel %vm2400, %v2376, 0
        %v2486 = vsel %vm2400, %v2377, 0
        %v2489 = vsel %vm2400, %v2378, 0
        %v2492 = vsel %vm2400, %v2379, 0
        %v2495 = vsel %vm2400, %v2380, 0
        %2497 = vmatpush.bf16.msra.mxu0 0
        %2498 = vmatpush.bf16.msra.mxu0 0
        %2499 = vmatpush.bf16.msra.mxu0 0
        %2500 = vmatpush.bf16.msra.mxu0 0
        %2501 = vmatpush.bf16.msra.mxu0 0
        %2502 = vmatpush.bf16.msra.mxu0 0
        %2503 = vmatpush.bf16.msra.mxu0 %v2397
        %2504 = vmatpush.bf16.msra.mxu0 %v2396
        %2505 = vmatmul.bf16.gmra.mxu0 %v2402
        %v2506 = vpop.f32.mrf.mxu0
        %v2507 = vadd.f32 %v2386, %v2506
        %v2508 = vpop.f32.mrf.mxu0
        %v2509 = vadd.f32 %v2386, %v2508
        %2510 = vmatmul.bf16.gmra.mxu0 %v2405
        %v2511 = vpop.f32.mrf.mxu0
        %v2512 = vadd.f32 %v2386, %v2511
        %v2513 = vpop.f32.mrf.mxu0
        %v2514 = vadd.f32 %v2386, %v2513
        %2515 = vmatmul.bf16.gmra.mxu0 %v2408
        %v2516 = vpop.f32.mrf.mxu0
        %v2517 = vadd.f32 %v2386, %v2516
        %v2518 = vpop.f32.mrf.mxu0
        %v2519 = vadd.f32 %v2386, %v2518
        %2520 = vmatmul.bf16.gmra.mxu0 %v2411
        %v2521 = vpop.f32.mrf.mxu0
        %v2522 = vadd.f32 %v2386, %v2521
        %v2523 = vpop.f32.mrf.mxu0
        %v2524 = vadd.f32 %v2386, %v2523
        %2525 = vmatmul.bf16.gmra.mxu0 %v2414
        %v2526 = vpop.f32.mrf.mxu0
        %v2527 = vadd.f32 %v2386, %v2526
        %v2528 = vpop.f32.mrf.mxu0
        %v2529 = vadd.f32 %v2386, %v2528
        %2530 = vmatmul.bf16.gmra.mxu0 %v2417
        %v2531 = vpop.f32.mrf.mxu0
        %v2532 = vadd.f32 %v2386, %v2531
        %v2533 = vpop.f32.mrf.mxu0
        %v2534 = vadd.f32 %v2386, %v2533
        %2535 = vmatmul.bf16.gmra.mxu0 %v2420
        %v2536 = vpop.f32.mrf.mxu0
        %v2537 = vadd.f32 %v2386, %v2536
        %v2538 = vpop.f32.mrf.mxu0
        %v2539 = vadd.f32 %v2386, %v2538
        %2540 = vmatmul.bf16.gmra.mxu0 %v2423
        %v2541 = vpop.f32.mrf.mxu0
        %v2542 = vadd.f32 %v2386, %v2541
        %v2543 = vpop.f32.mrf.mxu0
        %v2544 = vadd.f32 %v2386, %v2543
        %2545 = vmatmul.bf16.gmra.mxu0 %v2426
        %v2546 = vpop.f32.mrf.mxu0
        %v2547 = vadd.f32 %v2386, %v2546
        %v2548 = vpop.f32.mrf.mxu0
        %v2549 = vadd.f32 %v2386, %v2548
        %2550 = vmatmul.bf16.gmra.mxu0 %v2429
        %v2551 = vpop.f32.mrf.mxu0
        %v2552 = vadd.f32 %v2386, %v2551
        %v2553 = vpop.f32.mrf.mxu0
        %v2554 = vadd.f32 %v2386, %v2553
        %2555 = vmatmul.bf16.gmra.mxu0 %v2432
        %v2556 = vpop.f32.mrf.mxu0
        %v2557 = vadd.f32 %v2386, %v2556
        %v2558 = vpop.f32.mrf.mxu0
        %v2559 = vadd.f32 %v2386, %v2558
        %2560 = vmatmul.bf16.gmra.mxu0 %v2435
        %v2561 = vpop.f32.mrf.mxu0
        %v2562 = vadd.f32 %v2386, %v2561
        %v2563 = vpop.f32.mrf.mxu0
        %v2564 = vadd.f32 %v2386, %v2563
        %2565 = vmatmul.bf16.gmra.mxu0 %v2438
        %v2566 = vpop.f32.mrf.mxu0
        %v2567 = vadd.f32 %v2386, %v2566
        %v2568 = vpop.f32.mrf.mxu0
        %v2569 = vadd.f32 %v2386, %v2568
        %2570 = vmatmul.bf16.gmra.mxu0 %v2441
        %v2571 = vpop.f32.mrf.mxu0
        %v2572 = vadd.f32 %v2386, %v2571
        %v2573 = vpop.f32.mrf.mxu0
        %v2574 = vadd.f32 %v2386, %v2573
        %2575 = vmatmul.bf16.gmra.mxu0 %v2444
        %v2576 = vpop.f32.mrf.mxu0
        %v2577 = vadd.f32 %v2386, %v2576
        %v2578 = vpop.f32.mrf.mxu0
        %v2579 = vadd.f32 %v2386, %v2578
        %2580 = vmatmul.bf16.gmra.mxu0 %v2447
        %v2581 = vpop.f32.mrf.mxu0
        %v2582 = vadd.f32 %v2386, %v2581
        %v2583 = vpop.f32.mrf.mxu0
        %v2584 = vadd.f32 %v2386, %v2583
        %2585 = vmatmul.bf16.gmra.mxu0 %v2450
        %v2586 = vpop.f32.mrf.mxu0
        %v2587 = vadd.f32 %v2386, %v2586
        %v2588 = vpop.f32.mrf.mxu0
        %v2589 = vadd.f32 %v2386, %v2588
        %2590 = vmatmul.bf16.gmra.mxu0 %v2453
        %v2591 = vpop.f32.mrf.mxu0
        %v2592 = vadd.f32 %v2386, %v2591
        %v2593 = vpop.f32.mrf.mxu0
        %v2594 = vadd.f32 %v2386, %v2593
        %2595 = vmatmul.bf16.gmra.mxu0 %v2456
        %v2596 = vpop.f32.mrf.mxu0
        %v2597 = vadd.f32 %v2386, %v2596
        %v2598 = vpop.f32.mrf.mxu0
        %v2599 = vadd.f32 %v2386, %v2598
        %2600 = vmatmul.bf16.gmra.mxu0 %v2459
        %v2601 = vpop.f32.mrf.mxu0
        %v2602 = vadd.f32 %v2386, %v2601
        %v2603 = vpop.f32.mrf.mxu0
        %v2604 = vadd.f32 %v2386, %v2603
        %2605 = vmatmul.bf16.gmra.mxu0 %v2462
        %v2606 = vpop.f32.mrf.mxu0
        %v2607 = vadd.f32 %v2386, %v2606
        %v2608 = vpop.f32.mrf.mxu0
        %v2609 = vadd.f32 %v2386, %v2608
        %2610 = vmatmul.bf16.gmra.mxu0 %v2465
        %v2611 = vpop.f32.mrf.mxu0
        %v2612 = vadd.f32 %v2386, %v2611
        %v2613 = vpop.f32.mrf.mxu0
        %v2614 = vadd.f32 %v2386, %v2613
        %2615 = vmatmul.bf16.gmra.mxu0 %v2468
        %v2616 = vpop.f32.mrf.mxu0
        %v2617 = vadd.f32 %v2386, %v2616
        %v2618 = vpop.f32.mrf.mxu0
        %v2619 = vadd.f32 %v2386, %v2618
        %2620 = vmatmul.bf16.gmra.mxu0 %v2471
        %v2621 = vpop.f32.mrf.mxu0
        %v2622 = vadd.f32 %v2386, %v2621
        %v2623 = vpop.f32.mrf.mxu0
        %v2624 = vadd.f32 %v2386, %v2623
        %2625 = vmatmul.bf16.gmra.mxu0 %v2474
        %v2626 = vpop.f32.mrf.mxu0
        %v2627 = vadd.f32 %v2386, %v2626
        %v2628 = vpop.f32.mrf.mxu0
        %v2629 = vadd.f32 %v2386, %v2628
        %2630 = vmatmul.bf16.gmra.mxu0 %v2477
        %v2631 = vpop.f32.mrf.mxu0
        %v2632 = vadd.f32 %v2386, %v2631
        %v2633 = vpop.f32.mrf.mxu0
        %v2634 = vadd.f32 %v2386, %v2633
        %2635 = vmatmul.bf16.gmra.mxu0 %v2480
        %v2636 = vpop.f32.mrf.mxu0
        %v2637 = vadd.f32 %v2386, %v2636
        %v2638 = vpop.f32.mrf.mxu0
        %v2639 = vadd.f32 %v2386, %v2638
        %2640 = vmatmul.bf16.gmra.mxu0 %v2483
        %v2641 = vpop.f32.mrf.mxu0
        %v2642 = vadd.f32 %v2386, %v2641
        %v2643 = vpop.f32.mrf.mxu0
        %v2644 = vadd.f32 %v2386, %v2643
        %2645 = vmatmul.bf16.gmra.mxu0 %v2486
        %v2646 = vpop.f32.mrf.mxu0
        %v2647 = vadd.f32 %v2386, %v2646
        %v2648 = vpop.f32.mrf.mxu0
        %v2649 = vadd.f32 %v2386, %v2648
        %2650 = vmatmul.bf16.gmra.mxu0 %v2489
        %v2651 = vpop.f32.mrf.mxu0
        %v2652 = vadd.f32 %v2386, %v2651
        %v2653 = vpop.f32.mrf.mxu0
        %v2654 = vadd.f32 %v2386, %v2653
        %2655 = vmatmul.bf16.gmra.mxu0 %v2492
        %v2656 = vpop.f32.mrf.mxu0
        %v2657 = vadd.f32 %v2386, %v2656
        %v2658 = vpop.f32.mrf.mxu0
        %v2659 = vadd.f32 %v2386, %v2658
        %2660 = vmatmul.bf16.gmra.mxu0 %v2495
        %v2661 = vpop.f32.mrf.mxu0
        %v2662 = vadd.f32 %v2386, %v2661
        %v2663 = vpop.f32.mrf.mxu0
        %v2664 = vadd.f32 %v2386, %v2663
        %2665 = vdwg.mxu0
        %v2666 = vmax.f32 %v2507, 0.0
        %v2667 = vmax.f32 %v2509, 0.0
        %v2668 = vmax.f32 %v2512, 0.0
        %v2669 = vmax.f32 %v2514, 0.0
        %v2670 = vmax.f32 %v2517, 0.0
        %v2671 = vmax.f32 %v2519, 0.0
        %v2672 = vmax.f32 %v2522, 0.0
        %v2673 = vmax.f32 %v2524, 0.0
        %v2674 = vmax.f32 %v2527, 0.0
        %v2675 = vmax.f32 %v2529, 0.0
        %v2676 = vmax.f32 %v2532, 0.0
        %v2677 = vmax.f32 %v2534, 0.0
        %v2678 = vmax.f32 %v2537, 0.0
        %v2679 = vmax.f32 %v2539, 0.0
        %v2680 = vmax.f32 %v2542, 0.0
        %v2681 = vmax.f32 %v2544, 0.0
        %v2682 = vmax.f32 %v2547, 0.0
        %v2683 = vmax.f32 %v2549, 0.0
        %v2684 = vmax.f32 %v2552, 0.0
        %v2685 = vmax.f32 %v2554, 0.0
        %v2686 = vmax.f32 %v2557, 0.0
        %v2687 = vmax.f32 %v2559, 0.0
        %v2688 = vmax.f32 %v2562, 0.0
        %v2689 = vmax.f32 %v2564, 0.0
        %v2690 = vmax.f32 %v2567, 0.0
        %v2691 = vmax.f32 %v2569, 0.0
        %v2692 = vmax.f32 %v2572, 0.0
        %v2693 = vmax.f32 %v2574, 0.0
        %v2694 = vmax.f32 %v2577, 0.0
        %v2695 = vmax.f32 %v2579, 0.0
        %v2696 = vmax.f32 %v2582, 0.0
        %v2697 = vmax.f32 %v2584, 0.0
        %v2698 = vmax.f32 %v2587, 0.0
        %v2699 = vmax.f32 %v2589, 0.0
        %v2700 = vmax.f32 %v2592, 0.0
        %v2701 = vmax.f32 %v2594, 0.0
        %v2702 = vmax.f32 %v2597, 0.0
        %v2703 = vmax.f32 %v2599, 0.0
        %v2704 = vmax.f32 %v2602, 0.0
        %v2705 = vmax.f32 %v2604, 0.0
        %v2706 = vmax.f32 %v2607, 0.0
        %v2707 = vmax.f32 %v2609, 0.0
        %v2708 = vmax.f32 %v2612, 0.0
        %v2709 = vmax.f32 %v2614, 0.0
        %v2710 = vmax.f32 %v2617, 0.0
        %v2711 = vmax.f32 %v2619, 0.0
        %v2712 = vmax.f32 %v2622, 0.0
        %v2713 = vmax.f32 %v2624, 0.0
        %v2714 = vmax.f32 %v2627, 0.0
        %v2715 = vmax.f32 %v2629, 0.0
        %v2716 = vmax.f32 %v2632, 0.0
        %v2717 = vmax.f32 %v2634, 0.0
        %v2718 = vmax.f32 %v2637, 0.0
        %v2719 = vmax.f32 %v2639, 0.0
        %v2720 = vmax.f32 %v2642, 0.0
        %v2721 = vmax.f32 %v2644, 0.0
        %v2722 = vmax.f32 %v2647, 0.0
        %v2723 = vmax.f32 %v2649, 0.0
        %v2724 = vmax.f32 %v2652, 0.0
        %v2725 = vmax.f32 %v2654, 0.0
        %v2726 = vmax.f32 %v2657, 0.0
        %v2727 = vmax.f32 %v2659, 0.0
        %v2728 = vmax.f32 %v2662, 0.0
        %v2729 = vmax.f32 %v2664, 0.0
        %2730 = vst.msk [vmem:[#allocation4] sm:$0xff] %vm2400, %v2666
        %2731 = vst.msk [vmem:[#allocation4 + $0x8] sm:$0xff] %vm2400, %v2667
        %2732 = vst.msk [vmem:[#allocation4 + $0x10] sm:$0xff] %vm2400, %v2668
        %2733 = vst.msk [vmem:[#allocation4 + $0x18] sm:$0xff] %vm2400, %v2669
        %2734 = vst.msk [vmem:[#allocation4 + $0x20] sm:$0xff] %vm2400, %v2670
        %2735 = vst.msk [vmem:[#allocation4 + $0x28] sm:$0xff] %vm2400, %v2671
        %2736 = vst.msk [vmem:[#allocation4 + $0x30] sm:$0xff] %vm2400, %v2672
        %2737 = vst.msk [vmem:[#allocation4 + $0x38] sm:$0xff] %vm2400, %v2673
        %2738 = vst.msk [vmem:[#allocation4 + $0x40] sm:$0xff] %vm2400, %v2674
        %2739 = vst.msk [vmem:[#allocation4 + $0x48] sm:$0xff] %vm2400, %v2675
        %2740 = vst.msk [vmem:[#allocation4 + $0x50] sm:$0xff] %vm2400, %v2676
        %2741 = vst.msk [vmem:[#allocation4 + $0x58] sm:$0xff] %vm2400, %v2677
        %2742 = vst.msk [vmem:[#allocation4 + $0x60] sm:$0xff] %vm2400, %v2678
        %2743 = vst.msk [vmem:[#allocation4 + $0x68] sm:$0xff] %vm2400, %v2679
        %2744 = vst.msk [vmem:[#allocation4 + $0x70] sm:$0xff] %vm2400, %v2680
        %2745 = vst.msk [vmem:[#allocation4 + $0x78] sm:$0xff] %vm2400, %v2681
        %2746 = vst.msk [vmem:[#allocation4 + $0x80] sm:$0xff] %vm2400, %v2682
        %2747 = vst.msk [vmem:[#allocation4 + $0x88] sm:$0xff] %vm2400, %v2683
        %2748 = vst.msk [vmem:[#allocation4 + $0x90] sm:$0xff] %vm2400, %v2684
        %2749 = vst.msk [vmem:[#allocation4 + $0x98] sm:$0xff] %vm2400, %v2685
        %2750 = vst.msk [vmem:[#allocation4 + $0xa0] sm:$0xff] %vm2400, %v2686
        %2751 = vst.msk [vmem:[#allocation4 + $0xa8] sm:$0xff] %vm2400, %v2687
        %2752 = vst.msk [vmem:[#allocation4 + $0xb0] sm:$0xff] %vm2400, %v2688
        %2753 = vst.msk [vmem:[#allocation4 + $0xb8] sm:$0xff] %vm2400, %v2689
        %2754 = vst.msk [vmem:[#allocation4 + $0xc0] sm:$0xff] %vm2400, %v2690
        %2755 = vst.msk [vmem:[#allocation4 + $0xc8] sm:$0xff] %vm2400, %v2691
        %2756 = vst.msk [vmem:[#allocation4 + $0xd0] sm:$0xff] %vm2400, %v2692
        %2757 = vst.msk [vmem:[#allocation4 + $0xd8] sm:$0xff] %vm2400, %v2693
        %2758 = vst.msk [vmem:[#allocation4 + $0xe0] sm:$0xff] %vm2400, %v2694
        %2759 = vst.msk [vmem:[#allocation4 + $0xe8] sm:$0xff] %vm2400, %v2695
        %2760 = vst.msk [vmem:[#allocation4 + $0xf0] sm:$0xff] %vm2400, %v2696
        %2761 = vst.msk [vmem:[#allocation4 + $0xf8] sm:$0xff] %vm2400, %v2697
        %2762 = vst.msk [vmem:[#allocation4 + $0x100] sm:$0xff] %vm2400, %v2698
        %2763 = vst.msk [vmem:[#allocation4 + $0x108] sm:$0xff] %vm2400, %v2699
        %2764 = vst.msk [vmem:[#allocation4 + $0x110] sm:$0xff] %vm2400, %v2700
        %2765 = vst.msk [vmem:[#allocation4 + $0x118] sm:$0xff] %vm2400, %v2701
        %2766 = vst.msk [vmem:[#allocation4 + $0x120] sm:$0xff] %vm2400, %v2702
        %2767 = vst.msk [vmem:[#allocation4 + $0x128] sm:$0xff] %vm2400, %v2703
        %2768 = vst.msk [vmem:[#allocation4 + $0x130] sm:$0xff] %vm2400, %v2704
        %2769 = vst.msk [vmem:[#allocation4 + $0x138] sm:$0xff] %vm2400, %v2705
        %2770 = vst.msk [vmem:[#allocation4 + $0x140] sm:$0xff] %vm2400, %v2706
        %2771 = vst.msk [vmem:[#allocation4 + $0x148] sm:$0xff] %vm2400, %v2707
        %2772 = vst.msk [vmem:[#allocation4 + $0x150] sm:$0xff] %vm2400, %v2708
        %2773 = vst.msk [vmem:[#allocation4 + $0x158] sm:$0xff] %vm2400, %v2709
        %2774 = vst.msk [vmem:[#allocation4 + $0x160] sm:$0xff] %vm2400, %v2710
        %2775 = vst.msk [vmem:[#allocation4 + $0x168] sm:$0xff] %vm2400, %v2711
        %2776 = vst.msk [vmem:[#allocation4 + $0x170] sm:$0xff] %vm2400, %v2712
        %2777 = vst.msk [vmem:[#allocation4 + $0x178] sm:$0xff] %vm2400, %v2713
        %2778 = vst.msk [vmem:[#allocation4 + $0x180] sm:$0xff] %vm2400, %v2714
        %2779 = vst.msk [vmem:[#allocation4 + $0x188] sm:$0xff] %vm2400, %v2715
        %2780 = vst.msk [vmem:[#allocation4 + $0x190] sm:$0xff] %vm2400, %v2716
        %2781 = vst.msk [vmem:[#allocation4 + $0x198] sm:$0xff] %vm2400, %v2717
        %2782 = vst.msk [vmem:[#allocation4 + $0x1a0] sm:$0xff] %vm2400, %v2718
        %2783 = vst.msk [vmem:[#allocation4 + $0x1a8] sm:$0xff] %vm2400, %v2719
        %2784 = vst.msk [vmem:[#allocation4 + $0x1b0] sm:$0xff] %vm2400, %v2720
        %2785 = vst.msk [vmem:[#allocation4 + $0x1b8] sm:$0xff] %vm2400, %v2721
        %2786 = vst.msk [vmem:[#allocation4 + $0x1c0] sm:$0xff] %vm2400, %v2722
        %2787 = vst.msk [vmem:[#allocation4 + $0x1c8] sm:$0xff] %vm2400, %v2723
        %2788 = vst.msk [vmem:[#allocation4 + $0x1d0] sm:$0xff] %vm2400, %v2724
        %2789 = vst.msk [vmem:[#allocation4 + $0x1d8] sm:$0xff] %vm2400, %v2725
        %2790 = vst.msk [vmem:[#allocation4 + $0x1e0] sm:$0xff] %vm2400, %v2726
        %2791 = vst.msk [vmem:[#allocation4 + $0x1e8] sm:$0xff] %vm2400, %v2727
        %2792 = vst.msk [vmem:[#allocation4 + $0x1f0] sm:$0xff] %vm2400, %v2728
        %2793 = vst.msk [vmem:[#allocation4 + $0x1f8] sm:$0xff] %vm2400, %v2729
      $region72: #{weighted_proto_encoder.1} parent=59 // pred_fallthru
        _
      %v2794 = vld [vmem:[#allocation4] sm:$0xff]
      %v2795 = vld [vmem:[#allocation4 + $0x8] sm:$0xff]
      %v2796 = vld [vmem:[#allocation4 + $0x10] sm:$0xff]
      %v2797 = vld [vmem:[#allocation4 + $0x18] sm:$0xff]
      %v2798 = vld [vmem:[#allocation4 + $0x20] sm:$0xff]
      %v2799 = vld [vmem:[#allocation4 + $0x28] sm:$0xff]
      %v2800 = vld [vmem:[#allocation4 + $0x30] sm:$0xff]
      %v2801 = vld [vmem:[#allocation4 + $0x38] sm:$0xff]
      %v2802 = vld [vmem:[#allocation4 + $0x40] sm:$0xff]
      %v2803 = vld [vmem:[#allocation4 + $0x48] sm:$0xff]
      %v2804 = vld [vmem:[#allocation4 + $0x50] sm:$0xff]
      %v2805 = vld [vmem:[#allocation4 + $0x58] sm:$0xff]
      %v2806 = vld [vmem:[#allocation4 + $0x60] sm:$0xff]
      %v2807 = vld [vmem:[#allocation4 + $0x68] sm:$0xff]
      %v2808 = vld [vmem:[#allocation4 + $0x70] sm:$0xff]
      %v2809 = vld [vmem:[#allocation4 + $0x78] sm:$0xff]
      %v2810 = vld [vmem:[#allocation4 + $0x80] sm:$0xff]
      %v2811 = vld [vmem:[#allocation4 + $0x88] sm:$0xff]
      %v2812 = vld [vmem:[#allocation4 + $0x90] sm:$0xff]
      %v2813 = vld [vmem:[#allocation4 + $0x98] sm:$0xff]
      %v2814 = vld [vmem:[#allocation4 + $0xa0] sm:$0xff]
      %v2815 = vld [vmem:[#allocation4 + $0xa8] sm:$0xff]
      %v2816 = vld [vmem:[#allocation4 + $0xb0] sm:$0xff]
      %v2817 = vld [vmem:[#allocation4 + $0xb8] sm:$0xff]
      %v2818 = vld [vmem:[#allocation4 + $0xc0] sm:$0xff]
      %v2819 = vld [vmem:[#allocation4 + $0xc8] sm:$0xff]
      %v2820 = vld [vmem:[#allocation4 + $0xd0] sm:$0xff]
      %v2821 = vld [vmem:[#allocation4 + $0xd8] sm:$0xff]
      %v2822 = vld [vmem:[#allocation4 + $0xe0] sm:$0xff]
      %v2823 = vld [vmem:[#allocation4 + $0xe8] sm:$0xff]
      %v2824 = vld [vmem:[#allocation4 + $0xf0] sm:$0xff]
      %v2825 = vld [vmem:[#allocation4 + $0xf8] sm:$0xff]
      %v2826 = vld [vmem:[#allocation4 + $0x100] sm:$0xff]
      %v2827 = vld [vmem:[#allocation4 + $0x108] sm:$0xff]
      %v2828 = vld [vmem:[#allocation4 + $0x110] sm:$0xff]
      %v2829 = vld [vmem:[#allocation4 + $0x118] sm:$0xff]
      %v2830 = vld [vmem:[#allocation4 + $0x120] sm:$0xff]
      %v2831 = vld [vmem:[#allocation4 + $0x128] sm:$0xff]
      %v2832 = vld [vmem:[#allocation4 + $0x130] sm:$0xff]
      %v2833 = vld [vmem:[#allocation4 + $0x138] sm:$0xff]
      %v2834 = vld [vmem:[#allocation4 + $0x140] sm:$0xff]
      %v2835 = vld [vmem:[#allocation4 + $0x148] sm:$0xff]
      %v2836 = vld [vmem:[#allocation4 + $0x150] sm:$0xff]
      %v2837 = vld [vmem:[#allocation4 + $0x158] sm:$0xff]
      %v2838 = vld [vmem:[#allocation4 + $0x160] sm:$0xff]
      %v2839 = vld [vmem:[#allocation4 + $0x168] sm:$0xff]
      %v2840 = vld [vmem:[#allocation4 + $0x170] sm:$0xff]
      %v2841 = vld [vmem:[#allocation4 + $0x178] sm:$0xff]
      %v2842 = vld [vmem:[#allocation4 + $0x180] sm:$0xff]
      %v2843 = vld [vmem:[#allocation4 + $0x188] sm:$0xff]
      %v2844 = vld [vmem:[#allocation4 + $0x190] sm:$0xff]
      %v2845 = vld [vmem:[#allocation4 + $0x198] sm:$0xff]
      %v2846 = vld [vmem:[#allocation4 + $0x1a0] sm:$0xff]
      %v2847 = vld [vmem:[#allocation4 + $0x1a8] sm:$0xff]
      %v2848 = vld [vmem:[#allocation4 + $0x1b0] sm:$0xff]
      %v2849 = vld [vmem:[#allocation4 + $0x1b8] sm:$0xff]
      %v2850 = vld [vmem:[#allocation4 + $0x1c0] sm:$0xff]
      %v2851 = vld [vmem:[#allocation4 + $0x1c8] sm:$0xff]
      %v2852 = vld [vmem:[#allocation4 + $0x1d0] sm:$0xff]
      %v2853 = vld [vmem:[#allocation4 + $0x1d8] sm:$0xff]
      %v2854 = vld [vmem:[#allocation4 + $0x1e0] sm:$0xff]
      %v2855 = vld [vmem:[#allocation4 + $0x1e8] sm:$0xff]
      %v2856 = vld [vmem:[#allocation4 + $0x1f0] sm:$0xff]
      %v2857 = vld [vmem:[#allocation4 + $0x1f8] sm:$0xff]
      %v2858 = vpack.c.bf16 %v2795, %v2794
      %v2859 = vpack.c.bf16 %v2797, %v2796
      %v2860 = vpack.c.bf16 %v2799, %v2798
      %v2861 = vpack.c.bf16 %v2801, %v2800
      %v2862 = vpack.c.bf16 %v2803, %v2802
      %v2863 = vpack.c.bf16 %v2805, %v2804
      %v2864 = vpack.c.bf16 %v2807, %v2806
      %v2865 = vpack.c.bf16 %v2809, %v2808
      %v2866 = vpack.c.bf16 %v2811, %v2810
      %v2867 = vpack.c.bf16 %v2813, %v2812
      %v2868 = vpack.c.bf16 %v2815, %v2814
      %v2869 = vpack.c.bf16 %v2817, %v2816
      %v2870 = vpack.c.bf16 %v2819, %v2818
      %v2871 = vpack.c.bf16 %v2821, %v2820
      %v2872 = vpack.c.bf16 %v2823, %v2822
      %v2873 = vpack.c.bf16 %v2825, %v2824
      %v2874 = vpack.c.bf16 %v2827, %v2826
      %v2875 = vpack.c.bf16 %v2829, %v2828
      %v2876 = vpack.c.bf16 %v2831, %v2830
      %v2877 = vpack.c.bf16 %v2833, %v2832
      %v2878 = vpack.c.bf16 %v2835, %v2834
      %v2879 = vpack.c.bf16 %v2837, %v2836
      %v2880 = vpack.c.bf16 %v2839, %v2838
      %v2881 = vpack.c.bf16 %v2841, %v2840
      %v2882 = vpack.c.bf16 %v2843, %v2842
      %v2883 = vpack.c.bf16 %v2845, %v2844
      %v2884 = vpack.c.bf16 %v2847, %v2846
      %v2885 = vpack.c.bf16 %v2849, %v2848
      %v2886 = vpack.c.bf16 %v2851, %v2850
      %v2887 = vpack.c.bf16 %v2853, %v2852
      %v2888 = vpack.c.bf16 %v2855, %v2854
      %v2889 = vpack.c.bf16 %v2857, %v2856
      %v2890 = vld [vmem:[%s517] sm:$0xf]
      %v2891 = vld [vmem:[%s517 + $0x4] sm:$0xf]
      %v2892 = vld [vmem:[%s517 + $0x8] sm:$0xf]
      %v2893 = vld [vmem:[%s517 + $0xc] sm:$0xf]
      %s2894 = scalar_lea.vmem %s521, 1
      %v2895 = vld [vmem:[%s2894] sm:$0x1]
      %v2897 = vperm.slane %v2895, 0
      %v2903 = vunpack.c.l.b16 %v2890
      %v2904 = vunpack.c.l.b16 %v2891
      %v2905 = vunpack.c.l.b16 %v2892
      %v2906 = vunpack.c.l.b16 %v2893
      %v2907 = vpack.c.b16 %v2904, %v2903
      %v2908 = vpack.c.b16 %v2906, %v2905
      %vm2911 = vcmask 261120
      %v2913 = vsel %vm2911, %v2858, 0
      %v2916 = vsel %vm2911, %v2859, 0
      %v2919 = vsel %vm2911, %v2860, 0
      %v2922 = vsel %vm2911, %v2861, 0
      %v2925 = vsel %vm2911, %v2862, 0
      %v2928 = vsel %vm2911, %v2863, 0
      %v2931 = vsel %vm2911, %v2864, 0
      %v2934 = vsel %vm2911, %v2865, 0
      %v2937 = vsel %vm2911, %v2866, 0
      %v2940 = vsel %vm2911, %v2867, 0
      %v2943 = vsel %vm2911, %v2868, 0
      %v2946 = vsel %vm2911, %v2869, 0
      %v2949 = vsel %vm2911, %v2870, 0
      %v2952 = vsel %vm2911, %v2871, 0
      %v2955 = vsel %vm2911, %v2872, 0
      %v2958 = vsel %vm2911, %v2873, 0
      %v2961 = vsel %vm2911, %v2874, 0
      %v2964 = vsel %vm2911, %v2875, 0
      %v2967 = vsel %vm2911, %v2876, 0
      %v2970 = vsel %vm2911, %v2877, 0
      %v2973 = vsel %vm2911, %v2878, 0
      %v2976 = vsel %vm2911, %v2879, 0
      %v2979 = vsel %vm2911, %v2880, 0
      %v2982 = vsel %vm2911, %v2881, 0
      %v2985 = vsel %vm2911, %v2882, 0
      %v2988 = vsel %vm2911, %v2883, 0
      %v2991 = vsel %vm2911, %v2884, 0
      %v2994 = vsel %vm2911, %v2885, 0
      %v2997 = vsel %vm2911, %v2886, 0
      %v3000 = vsel %vm2911, %v2887, 0
      %v3003 = vsel %vm2911, %v2888, 0
      %v3006 = vsel %vm2911, %v2889, 0
      %3008 = vmatpush.bf16.msra.mxu0 0
      %3009 = vmatpush.bf16.msra.mxu0 0
      %3010 = vmatpush.bf16.msra.mxu0 0
      %3011 = vmatpush.bf16.msra.mxu0 0
      %3012 = vmatpush.bf16.msra.mxu0 0
      %3013 = vmatpush.bf16.msra.mxu0 0
      %3014 = vmatpush.bf16.msra.mxu0 %v2908
      %3015 = vmatpush.bf16.msra.mxu0 %v2907
      %3016 = vmatmul.bf16.gmra.mxu0 %v2913
      %v3017 = vpop.f32.mrf.mxu0
      %v3018 = vadd.f32 %v2897, %v3017
      %v3019 = vpop.f32.mrf.mxu0
      %v3020 = vadd.f32 %v2897, %v3019
      %3021 = vmatmul.bf16.gmra.mxu0 %v2916
      %v3022 = vpop.f32.mrf.mxu0
      %v3023 = vadd.f32 %v2897, %v3022
      %v3024 = vpop.f32.mrf.mxu0
      %v3025 = vadd.f32 %v2897, %v3024
      %3026 = vmatmul.bf16.gmra.mxu0 %v2919
      %v3027 = vpop.f32.mrf.mxu0
      %v3028 = vadd.f32 %v2897, %v3027
      %v3029 = vpop.f32.mrf.mxu0
      %v3030 = vadd.f32 %v2897, %v3029
      %3031 = vmatmul.bf16.gmra.mxu0 %v2922
      %v3032 = vpop.f32.mrf.mxu0
      %v3033 = vadd.f32 %v2897, %v3032
      %v3034 = vpop.f32.mrf.mxu0
      %v3035 = vadd.f32 %v2897, %v3034
      %3036 = vmatmul.bf16.gmra.mxu0 %v2925
      %v3037 = vpop.f32.mrf.mxu0
      %v3038 = vadd.f32 %v2897, %v3037
      %v3039 = vpop.f32.mrf.mxu0
      %v3040 = vadd.f32 %v2897, %v3039
      %3041 = vmatmul.bf16.gmra.mxu0 %v2928
      %v3042 = vpop.f32.mrf.mxu0
      %v3043 = vadd.f32 %v2897, %v3042
      %v3044 = vpop.f32.mrf.mxu0
      %v3045 = vadd.f32 %v2897, %v3044
      %3046 = vmatmul.bf16.gmra.mxu0 %v2931
      %v3047 = vpop.f32.mrf.mxu0
      %v3048 = vadd.f32 %v2897, %v3047
      %v3049 = vpop.f32.mrf.mxu0
      %v3050 = vadd.f32 %v2897, %v3049
      %3051 = vmatmul.bf16.gmra.mxu0 %v2934
      %v3052 = vpop.f32.mrf.mxu0
      %v3053 = vadd.f32 %v2897, %v3052
      %v3054 = vpop.f32.mrf.mxu0
      %v3055 = vadd.f32 %v2897, %v3054
      %3056 = vmatmul.bf16.gmra.mxu0 %v2937
      %v3057 = vpop.f32.mrf.mxu0
      %v3058 = vadd.f32 %v2897, %v3057
      %v3059 = vpop.f32.mrf.mxu0
      %v3060 = vadd.f32 %v2897, %v3059
      %3061 = vmatmul.bf16.gmra.mxu0 %v2940
      %v3062 = vpop.f32.mrf.mxu0
      %v3063 = vadd.f32 %v2897, %v3062
      %v3064 = vpop.f32.mrf.mxu0
      %v3065 = vadd.f32 %v2897, %v3064
      %3066 = vmatmul.bf16.gmra.mxu0 %v2943
      %v3067 = vpop.f32.mrf.mxu0
      %v3068 = vadd.f32 %v2897, %v3067
      %v3069 = vpop.f32.mrf.mxu0
      %v3070 = vadd.f32 %v2897, %v3069
      %3071 = vmatmul.bf16.gmra.mxu0 %v2946
      %v3072 = vpop.f32.mrf.mxu0
      %v3073 = vadd.f32 %v2897, %v3072
      %v3074 = vpop.f32.mrf.mxu0
      %v3075 = vadd.f32 %v2897, %v3074
      %3076 = vmatmul.bf16.gmra.mxu0 %v2949
      %v3077 = vpop.f32.mrf.mxu0
      %v3078 = vadd.f32 %v2897, %v3077
      %v3079 = vpop.f32.mrf.mxu0
      %v3080 = vadd.f32 %v2897, %v3079
      %3081 = vmatmul.bf16.gmra.mxu0 %v2952
      %v3082 = vpop.f32.mrf.mxu0
      %v3083 = vadd.f32 %v2897, %v3082
      %v3084 = vpop.f32.mrf.mxu0
      %v3085 = vadd.f32 %v2897, %v3084
      %3086 = vmatmul.bf16.gmra.mxu0 %v2955
      %v3087 = vpop.f32.mrf.mxu0
      %v3088 = vadd.f32 %v2897, %v3087
      %v3089 = vpop.f32.mrf.mxu0
      %v3090 = vadd.f32 %v2897, %v3089
      %3091 = vmatmul.bf16.gmra.mxu0 %v2958
      %v3092 = vpop.f32.mrf.mxu0
      %v3093 = vadd.f32 %v2897, %v3092
      %v3094 = vpop.f32.mrf.mxu0
      %v3095 = vadd.f32 %v2897, %v3094
      %3096 = vmatmul.bf16.gmra.mxu0 %v2961
      %v3097 = vpop.f32.mrf.mxu0
      %v3098 = vadd.f32 %v2897, %v3097
      %v3099 = vpop.f32.mrf.mxu0
      %v3100 = vadd.f32 %v2897, %v3099
      %3101 = vmatmul.bf16.gmra.mxu0 %v2964
      %v3102 = vpop.f32.mrf.mxu0
      %v3103 = vadd.f32 %v2897, %v3102
      %v3104 = vpop.f32.mrf.mxu0
      %v3105 = vadd.f32 %v2897, %v3104
      %3106 = vmatmul.bf16.gmra.mxu0 %v2967
      %v3107 = vpop.f32.mrf.mxu0
      %v3108 = vadd.f32 %v2897, %v3107
      %v3109 = vpop.f32.mrf.mxu0
      %v3110 = vadd.f32 %v2897, %v3109
      %3111 = vmatmul.bf16.gmra.mxu0 %v2970
      %v3112 = vpop.f32.mrf.mxu0
      %v3113 = vadd.f32 %v2897, %v3112
      %v3114 = vpop.f32.mrf.mxu0
      %v3115 = vadd.f32 %v2897, %v3114
      %3116 = vmatmul.bf16.gmra.mxu0 %v2973
      %v3117 = vpop.f32.mrf.mxu0
      %v3118 = vadd.f32 %v2897, %v3117
      %v3119 = vpop.f32.mrf.mxu0
      %v3120 = vadd.f32 %v2897, %v3119
      %3121 = vmatmul.bf16.gmra.mxu0 %v2976
      %v3122 = vpop.f32.mrf.mxu0
      %v3123 = vadd.f32 %v2897, %v3122
      %v3124 = vpop.f32.mrf.mxu0
      %v3125 = vadd.f32 %v2897, %v3124
      %3126 = vmatmul.bf16.gmra.mxu0 %v2979
      %v3127 = vpop.f32.mrf.mxu0
      %v3128 = vadd.f32 %v2897, %v3127
      %v3129 = vpop.f32.mrf.mxu0
      %v3130 = vadd.f32 %v2897, %v3129
      %3131 = vmatmul.bf16.gmra.mxu0 %v2982
      %v3132 = vpop.f32.mrf.mxu0
      %v3133 = vadd.f32 %v2897, %v3132
      %v3134 = vpop.f32.mrf.mxu0
      %v3135 = vadd.f32 %v2897, %v3134
      %3136 = vmatmul.bf16.gmra.mxu0 %v2985
      %v3137 = vpop.f32.mrf.mxu0
      %v3138 = vadd.f32 %v2897, %v3137
      %v3139 = vpop.f32.mrf.mxu0
      %v3140 = vadd.f32 %v2897, %v3139
      %3141 = vmatmul.bf16.gmra.mxu0 %v2988
      %v3142 = vpop.f32.mrf.mxu0
      %v3143 = vadd.f32 %v2897, %v3142
      %v3144 = vpop.f32.mrf.mxu0
      %v3145 = vadd.f32 %v2897, %v3144
      %3146 = vmatmul.bf16.gmra.mxu0 %v2991
      %v3147 = vpop.f32.mrf.mxu0
      %v3148 = vadd.f32 %v2897, %v3147
      %v3149 = vpop.f32.mrf.mxu0
      %v3150 = vadd.f32 %v2897, %v3149
      %3151 = vmatmul.bf16.gmra.mxu0 %v2994
      %v3152 = vpop.f32.mrf.mxu0
      %v3153 = vadd.f32 %v2897, %v3152
      %v3154 = vpop.f32.mrf.mxu0
      %v3155 = vadd.f32 %v2897, %v3154
      %3156 = vmatmul.bf16.gmra.mxu0 %v2997
      %v3157 = vpop.f32.mrf.mxu0
      %v3158 = vadd.f32 %v2897, %v3157
      %v3159 = vpop.f32.mrf.mxu0
      %v3160 = vadd.f32 %v2897, %v3159
      %3161 = vmatmul.bf16.gmra.mxu0 %v3000
      %v3162 = vpop.f32.mrf.mxu0
      %v3163 = vadd.f32 %v2897, %v3162
      %v3164 = vpop.f32.mrf.mxu0
      %v3165 = vadd.f32 %v2897, %v3164
      %3166 = vmatmul.bf16.gmra.mxu0 %v3003
      %v3167 = vpop.f32.mrf.mxu0
      %v3168 = vadd.f32 %v2897, %v3167
      %v3169 = vpop.f32.mrf.mxu0
      %v3170 = vadd.f32 %v2897, %v3169
      %3171 = vmatmul.bf16.gmra.mxu0 %v3006
      %v3172 = vpop.f32.mrf.mxu0
      %v3173 = vadd.f32 %v2897, %v3172
      %v3174 = vpop.f32.mrf.mxu0
      %v3175 = vadd.f32 %v2897, %v3174
      %3176 = vdwg.mxu0
      %v3177 = vmax.f32 %v3018, 0.0
      %v3178 = vmax.f32 %v3020, 0.0
      %v3179 = vmax.f32 %v3023, 0.0
      %v3180 = vmax.f32 %v3025, 0.0
      %v3181 = vmax.f32 %v3028, 0.0
      %v3182 = vmax.f32 %v3030, 0.0
      %v3183 = vmax.f32 %v3033, 0.0
      %v3184 = vmax.f32 %v3035, 0.0
      %v3185 = vmax.f32 %v3038, 0.0
      %v3186 = vmax.f32 %v3040, 0.0
      %v3187 = vmax.f32 %v3043, 0.0
      %v3188 = vmax.f32 %v3045, 0.0
      %v3189 = vmax.f32 %v3048, 0.0
      %v3190 = vmax.f32 %v3050, 0.0
      %v3191 = vmax.f32 %v3053, 0.0
      %v3192 = vmax.f32 %v3055, 0.0
      %v3193 = vmax.f32 %v3058, 0.0
      %v3194 = vmax.f32 %v3060, 0.0
      %v3195 = vmax.f32 %v3063, 0.0
      %v3196 = vmax.f32 %v3065, 0.0
      %v3197 = vmax.f32 %v3068, 0.0
      %v3198 = vmax.f32 %v3070, 0.0
      %v3199 = vmax.f32 %v3073, 0.0
      %v3200 = vmax.f32 %v3075, 0.0
      %v3201 = vmax.f32 %v3078, 0.0
      %v3202 = vmax.f32 %v3080, 0.0
      %v3203 = vmax.f32 %v3083, 0.0
      %v3204 = vmax.f32 %v3085, 0.0
      %v3205 = vmax.f32 %v3088, 0.0
      %v3206 = vmax.f32 %v3090, 0.0
      %v3207 = vmax.f32 %v3093, 0.0
      %v3208 = vmax.f32 %v3095, 0.0
      %v3209 = vmax.f32 %v3098, 0.0
      %v3210 = vmax.f32 %v3100, 0.0
      %v3211 = vmax.f32 %v3103, 0.0
      %v3212 = vmax.f32 %v3105, 0.0
      %v3213 = vmax.f32 %v3108, 0.0
      %v3214 = vmax.f32 %v3110, 0.0
      %v3215 = vmax.f32 %v3113, 0.0
      %v3216 = vmax.f32 %v3115, 0.0
      %v3217 = vmax.f32 %v3118, 0.0
      %v3218 = vmax.f32 %v3120, 0.0
      %v3219 = vmax.f32 %v3123, 0.0
      %v3220 = vmax.f32 %v3125, 0.0
      %v3221 = vmax.f32 %v3128, 0.0
      %v3222 = vmax.f32 %v3130, 0.0
      %v3223 = vmax.f32 %v3133, 0.0
      %v3224 = vmax.f32 %v3135, 0.0
      %v3225 = vmax.f32 %v3138, 0.0
      %v3226 = vmax.f32 %v3140, 0.0
      %v3227 = vmax.f32 %v3143, 0.0
      %v3228 = vmax.f32 %v3145, 0.0
      %v3229 = vmax.f32 %v3148, 0.0
      %v3230 = vmax.f32 %v3150, 0.0
      %v3231 = vmax.f32 %v3153, 0.0
      %v3232 = vmax.f32 %v3155, 0.0
      %v3233 = vmax.f32 %v3158, 0.0
      %v3234 = vmax.f32 %v3160, 0.0
      %v3235 = vmax.f32 %v3163, 0.0
      %v3236 = vmax.f32 %v3165, 0.0
      %v3237 = vmax.f32 %v3168, 0.0
      %v3238 = vmax.f32 %v3170, 0.0
      %v3239 = vmax.f32 %v3173, 0.0
      %v3240 = vmax.f32 %v3175, 0.0
      %v3241 = vpack.c.bf16 %v3178, %v3177
      %v3242 = vpack.c.bf16 %v3180, %v3179
      %v3243 = vpack.c.bf16 %v3182, %v3181
      %v3244 = vpack.c.bf16 %v3184, %v3183
      %v3245 = vpack.c.bf16 %v3186, %v3185
      %v3246 = vpack.c.bf16 %v3188, %v3187
      %v3247 = vpack.c.bf16 %v3190, %v3189
      %v3248 = vpack.c.bf16 %v3192, %v3191
      %v3249 = vpack.c.bf16 %v3194, %v3193
      %v3250 = vpack.c.bf16 %v3196, %v3195
      %v3251 = vpack.c.bf16 %v3198, %v3197
      %v3252 = vpack.c.bf16 %v3200, %v3199
      %v3253 = vpack.c.bf16 %v3202, %v3201
      %v3254 = vpack.c.bf16 %v3204, %v3203
      %v3255 = vpack.c.bf16 %v3206, %v3205
      %v3256 = vpack.c.bf16 %v3208, %v3207
      %v3257 = vpack.c.bf16 %v3210, %v3209
      %v3258 = vpack.c.bf16 %v3212, %v3211
      %v3259 = vpack.c.bf16 %v3214, %v3213
      %v3260 = vpack.c.bf16 %v3216, %v3215
      %v3261 = vpack.c.bf16 %v3218, %v3217
      %v3262 = vpack.c.bf16 %v3220, %v3219
      %v3263 = vpack.c.bf16 %v3222, %v3221
      %v3264 = vpack.c.bf16 %v3224, %v3223
      %v3265 = vpack.c.bf16 %v3226, %v3225
      %v3266 = vpack.c.bf16 %v3228, %v3227
      %v3267 = vpack.c.bf16 %v3230, %v3229
      %v3268 = vpack.c.bf16 %v3232, %v3231
      %v3269 = vpack.c.bf16 %v3234, %v3233
      %v3270 = vpack.c.bf16 %v3236, %v3235
      %v3271 = vpack.c.bf16 %v3238, %v3237
      %v3272 = vpack.c.bf16 %v3240, %v3239
      %v3273 = vld [vmem:[%s527] sm:$0xf]
      %v3274 = vld [vmem:[%s527 + $0x4] sm:$0xf]
      %v3275 = vld [vmem:[%s527 + $0x8] sm:$0xf]
      %v3276 = vld [vmem:[%s527 + $0xc] sm:$0xf]
      %v3277 = vld [vmem:[%s530] sm:$0x1]
      %v3279 = vperm.slane %v3277, 0
      %v3285 = vunpack.c.l.b16 %v3273
      %v3286 = vunpack.c.l.b16 %v3274
      %v3287 = vunpack.c.l.b16 %v3275
      %v3288 = vunpack.c.l.b16 %v3276
      %v3289 = vpack.c.b16 %v3286, %v3285
      %v3290 = vpack.c.b16 %v3288, %v3287
      %v3294 = vsel %vm2911, %v3241, 0
      %v3297 = vsel %vm2911, %v3242, 0
      %v3300 = vsel %vm2911, %v3243, 0
      %v3303 = vsel %vm2911, %v3244, 0
      %v3306 = vsel %vm2911, %v3245, 0
      %v3309 = vsel %vm2911, %v3246, 0
      %v3312 = vsel %vm2911, %v3247, 0
      %v3315 = vsel %vm2911, %v3248, 0
      %v3318 = vsel %vm2911, %v3249, 0
      %v3321 = vsel %vm2911, %v3250, 0
      %v3324 = vsel %vm2911, %v3251, 0
      %v3327 = vsel %vm2911, %v3252, 0
      %v3330 = vsel %vm2911, %v3253, 0
      %v3333 = vsel %vm2911, %v3254, 0
      %v3336 = vsel %vm2911, %v3255, 0
      %v3339 = vsel %vm2911, %v3256, 0
      %v3342 = vsel %vm2911, %v3257, 0
      %v3345 = vsel %vm2911, %v3258, 0
      %v3348 = vsel %vm2911, %v3259, 0
      %v3351 = vsel %vm2911, %v3260, 0
      %v3354 = vsel %vm2911, %v3261, 0
      %v3357 = vsel %vm2911, %v3262, 0
      %v3360 = vsel %vm2911, %v3263, 0
      %v3363 = vsel %vm2911, %v3264, 0
      %v3366 = vsel %vm2911, %v3265, 0
      %v3369 = vsel %vm2911, %v3266, 0
      %v3372 = vsel %vm2911, %v3267, 0
      %v3375 = vsel %vm2911, %v3268, 0
      %v3378 = vsel %vm2911, %v3269, 0
      %v3381 = vsel %vm2911, %v3270, 0
      %v3384 = vsel %vm2911, %v3271, 0
      %v3387 = vsel %vm2911, %v3272, 0
      %3389 = vmatpush.bf16.msra.mxu0 0
      %3390 = vmatpush.bf16.msra.mxu0 0
      %3391 = vmatpush.bf16.msra.mxu0 0
      %3392 = vmatpush.bf16.msra.mxu0 0
      %3393 = vmatpush.bf16.msra.mxu0 0
      %3394 = vmatpush.bf16.msra.mxu0 0
      %3395 = vmatpush.bf16.msra.mxu0 %v3290
      %3396 = vmatpush.bf16.msra.mxu0 %v3289
      %3397 = vmatmul.bf16.gmra.mxu0 %v3294
      %v3398 = vpop.f32.mrf.mxu0
      %v3399 = vadd.f32 %v3279, %v3398
      %v3400 = vpop.f32.mrf.mxu0
      %v3401 = vadd.f32 %v3279, %v3400
      %3402 = vmatmul.bf16.gmra.mxu0 %v3297
      %v3403 = vpop.f32.mrf.mxu0
      %v3404 = vadd.f32 %v3279, %v3403
      %v3405 = vpop.f32.mrf.mxu0
      %v3406 = vadd.f32 %v3279, %v3405
      %3407 = vmatmul.bf16.gmra.mxu0 %v3300
      %v3408 = vpop.f32.mrf.mxu0
      %v3409 = vadd.f32 %v3279, %v3408
      %v3410 = vpop.f32.mrf.mxu0
      %v3411 = vadd.f32 %v3279, %v3410
      %3412 = vmatmul.bf16.gmra.mxu0 %v3303
      %v3413 = vpop.f32.mrf.mxu0
      %v3414 = vadd.f32 %v3279, %v3413
      %v3415 = vpop.f32.mrf.mxu0
      %v3416 = vadd.f32 %v3279, %v3415
      %3417 = vmatmul.bf16.gmra.mxu0 %v3306
      %v3418 = vpop.f32.mrf.mxu0
      %v3419 = vadd.f32 %v3279, %v3418
      %v3420 = vpop.f32.mrf.mxu0
      %v3421 = vadd.f32 %v3279, %v3420
      %3422 = vmatmul.bf16.gmra.mxu0 %v3309
      %v3423 = vpop.f32.mrf.mxu0
      %v3424 = vadd.f32 %v3279, %v3423
      %v3425 = vpop.f32.mrf.mxu0
      %v3426 = vadd.f32 %v3279, %v3425
      %3427 = vmatmul.bf16.gmra.mxu0 %v3312
      %v3428 = vpop.f32.mrf.mxu0
      %v3429 = vadd.f32 %v3279, %v3428
      %v3430 = vpop.f32.mrf.mxu0
      %v3431 = vadd.f32 %v3279, %v3430
      %3432 = vmatmul.bf16.gmra.mxu0 %v3315
      %v3433 = vpop.f32.mrf.mxu0
      %v3434 = vadd.f32 %v3279, %v3433
      %v3435 = vpop.f32.mrf.mxu0
      %v3436 = vadd.f32 %v3279, %v3435
      %3437 = vmatmul.bf16.gmra.mxu0 %v3318
      %v3438 = vpop.f32.mrf.mxu0
      %v3439 = vadd.f32 %v3279, %v3438
      %v3440 = vpop.f32.mrf.mxu0
      %v3441 = vadd.f32 %v3279, %v3440
      %3442 = vmatmul.bf16.gmra.mxu0 %v3321
      %v3443 = vpop.f32.mrf.mxu0
      %v3444 = vadd.f32 %v3279, %v3443
      %v3445 = vpop.f32.mrf.mxu0
      %v3446 = vadd.f32 %v3279, %v3445
      %3447 = vmatmul.bf16.gmra.mxu0 %v3324
      %v3448 = vpop.f32.mrf.mxu0
      %v3449 = vadd.f32 %v3279, %v3448
      %v3450 = vpop.f32.mrf.mxu0
      %v3451 = vadd.f32 %v3279, %v3450
      %3452 = vmatmul.bf16.gmra.mxu0 %v3327
      %v3453 = vpop.f32.mrf.mxu0
      %v3454 = vadd.f32 %v3279, %v3453
      %v3455 = vpop.f32.mrf.mxu0
      %v3456 = vadd.f32 %v3279, %v3455
      %3457 = vmatmul.bf16.gmra.mxu0 %v3330
      %v3458 = vpop.f32.mrf.mxu0
      %v3459 = vadd.f32 %v3279, %v3458
      %v3460 = vpop.f32.mrf.mxu0
      %v3461 = vadd.f32 %v3279, %v3460
      %3462 = vmatmul.bf16.gmra.mxu0 %v3333
      %v3463 = vpop.f32.mrf.mxu0
      %v3464 = vadd.f32 %v3279, %v3463
      %v3465 = vpop.f32.mrf.mxu0
      %v3466 = vadd.f32 %v3279, %v3465
      %3467 = vmatmul.bf16.gmra.mxu0 %v3336
      %v3468 = vpop.f32.mrf.mxu0
      %v3469 = vadd.f32 %v3279, %v3468
      %v3470 = vpop.f32.mrf.mxu0
      %v3471 = vadd.f32 %v3279, %v3470
      %3472 = vmatmul.bf16.gmra.mxu0 %v3339
      %v3473 = vpop.f32.mrf.mxu0
      %v3474 = vadd.f32 %v3279, %v3473
      %v3475 = vpop.f32.mrf.mxu0
      %v3476 = vadd.f32 %v3279, %v3475
      %3477 = vmatmul.bf16.gmra.mxu0 %v3342
      %v3478 = vpop.f32.mrf.mxu0
      %v3479 = vadd.f32 %v3279, %v3478
      %v3480 = vpop.f32.mrf.mxu0
      %v3481 = vadd.f32 %v3279, %v3480
      %3482 = vmatmul.bf16.gmra.mxu0 %v3345
      %v3483 = vpop.f32.mrf.mxu0
      %v3484 = vadd.f32 %v3279, %v3483
      %v3485 = vpop.f32.mrf.mxu0
      %v3486 = vadd.f32 %v3279, %v3485
      %3487 = vmatmul.bf16.gmra.mxu0 %v3348
      %v3488 = vpop.f32.mrf.mxu0
      %v3489 = vadd.f32 %v3279, %v3488
      %v3490 = vpop.f32.mrf.mxu0
      %v3491 = vadd.f32 %v3279, %v3490
      %3492 = vmatmul.bf16.gmra.mxu0 %v3351
      %v3493 = vpop.f32.mrf.mxu0
      %v3494 = vadd.f32 %v3279, %v3493
      %v3495 = vpop.f32.mrf.mxu0
      %v3496 = vadd.f32 %v3279, %v3495
      %3497 = vmatmul.bf16.gmra.mxu0 %v3354
      %v3498 = vpop.f32.mrf.mxu0
      %v3499 = vadd.f32 %v3279, %v3498
      %v3500 = vpop.f32.mrf.mxu0
      %v3501 = vadd.f32 %v3279, %v3500
      %3502 = vmatmul.bf16.gmra.mxu0 %v3357
      %v3503 = vpop.f32.mrf.mxu0
      %v3504 = vadd.f32 %v3279, %v3503
      %v3505 = vpop.f32.mrf.mxu0
      %v3506 = vadd.f32 %v3279, %v3505
      %3507 = vmatmul.bf16.gmra.mxu0 %v3360
      %v3508 = vpop.f32.mrf.mxu0
      %v3509 = vadd.f32 %v3279, %v3508
      %v3510 = vpop.f32.mrf.mxu0
      %v3511 = vadd.f32 %v3279, %v3510
      %3512 = vmatmul.bf16.gmra.mxu0 %v3363
      %v3513 = vpop.f32.mrf.mxu0
      %v3514 = vadd.f32 %v3279, %v3513
      %v3515 = vpop.f32.mrf.mxu0
      %v3516 = vadd.f32 %v3279, %v3515
      %3517 = vmatmul.bf16.gmra.mxu0 %v3366
      %v3518 = vpop.f32.mrf.mxu0
      %v3519 = vadd.f32 %v3279, %v3518
      %v3520 = vpop.f32.mrf.mxu0
      %v3521 = vadd.f32 %v3279, %v3520
      %3522 = vmatmul.bf16.gmra.mxu0 %v3369
      %v3523 = vpop.f32.mrf.mxu0
      %v3524 = vadd.f32 %v3279, %v3523
      %v3525 = vpop.f32.mrf.mxu0
      %v3526 = vadd.f32 %v3279, %v3525
      %3527 = vmatmul.bf16.gmra.mxu0 %v3372
      %v3528 = vpop.f32.mrf.mxu0
      %v3529 = vadd.f32 %v3279, %v3528
      %v3530 = vpop.f32.mrf.mxu0
      %v3531 = vadd.f32 %v3279, %v3530
      %3532 = vmatmul.bf16.gmra.mxu0 %v3375
      %v3533 = vpop.f32.mrf.mxu0
      %v3534 = vadd.f32 %v3279, %v3533
      %v3535 = vpop.f32.mrf.mxu0
      %v3536 = vadd.f32 %v3279, %v3535
      %3537 = vmatmul.bf16.gmra.mxu0 %v3378
      %v3538 = vpop.f32.mrf.mxu0
      %v3539 = vadd.f32 %v3279, %v3538
      %v3540 = vpop.f32.mrf.mxu0
      %v3541 = vadd.f32 %v3279, %v3540
      %3542 = vmatmul.bf16.gmra.mxu0 %v3381
      %v3543 = vpop.f32.mrf.mxu0
      %v3544 = vadd.f32 %v3279, %v3543
      %v3545 = vpop.f32.mrf.mxu0
      %v3546 = vadd.f32 %v3279, %v3545
      %3547 = vmatmul.bf16.gmra.mxu0 %v3384
      %v3548 = vpop.f32.mrf.mxu0
      %v3549 = vadd.f32 %v3279, %v3548
      %v3550 = vpop.f32.mrf.mxu0
      %v3551 = vadd.f32 %v3279, %v3550
      %3552 = vmatmul.bf16.gmra.mxu0 %v3387
      %v3553 = vpop.f32.mrf.mxu0
      %v3554 = vadd.f32 %v3279, %v3553
      %v3555 = vpop.f32.mrf.mxu0
      %v3556 = vadd.f32 %v3279, %v3555
      %3557 = vdwg.mxu0
      %v3558 = vld [vmem:[%s535] sm:$0xf]
      %v3559 = vld [vmem:[%s535 + $0x4] sm:$0xf]
      %v3560 = vld [vmem:[%s535 + $0x8] sm:$0xf]
      %v3561 = vld [vmem:[%s535 + $0xc] sm:$0xf]
      %v3562 = vld [vmem:[%s538] sm:$0x1]
      %v3564 = vperm.slane %v3562, 0
      %v3570 = vunpack.c.l.b16 %v3558
      %v3571 = vunpack.c.l.b16 %v3559
      %v3572 = vunpack.c.l.b16 %v3560
      %v3573 = vunpack.c.l.b16 %v3561
      %v3574 = vpack.c.b16 %v3571, %v3570
      %v3575 = vpack.c.b16 %v3573, %v3572
      %3578 = vmatpush.bf16.msra.mxu0 0
      %3579 = vmatpush.bf16.msra.mxu0 0
      %3580 = vmatpush.bf16.msra.mxu0 0
      %3581 = vmatpush.bf16.msra.mxu0 0
      %3582 = vmatpush.bf16.msra.mxu0 0
      %3583 = vmatpush.bf16.msra.mxu0 0
      %3584 = vmatpush.bf16.msra.mxu0 %v3575
      %3585 = vmatpush.bf16.msra.mxu0 %v3574
      %3586 = vmatmul.bf16.gmra.mxu0 %v3294
      %v3587 = vpop.f32.mrf.mxu0
      %v3588 = vadd.f32 %v3564, %v3587
      %v3589 = vpop.f32.mrf.mxu0
      %v3590 = vadd.f32 %v3564, %v3589
      %3591 = vmatmul.bf16.gmra.mxu0 %v3297
      %v3592 = vpop.f32.mrf.mxu0
      %v3593 = vadd.f32 %v3564, %v3592
      %v3594 = vpop.f32.mrf.mxu0
      %v3595 = vadd.f32 %v3564, %v3594
      %3596 = vmatmul.bf16.gmra.mxu0 %v3300
      %v3597 = vpop.f32.mrf.mxu0
      %v3598 = vadd.f32 %v3564, %v3597
      %v3599 = vpop.f32.mrf.mxu0
      %v3600 = vadd.f32 %v3564, %v3599
      %3601 = vmatmul.bf16.gmra.mxu0 %v3303
      %v3602 = vpop.f32.mrf.mxu0
      %v3603 = vadd.f32 %v3564, %v3602
      %v3604 = vpop.f32.mrf.mxu0
      %v3605 = vadd.f32 %v3564, %v3604
      %3606 = vmatmul.bf16.gmra.mxu0 %v3306
      %v3607 = vpop.f32.mrf.mxu0
      %v3608 = vadd.f32 %v3564, %v3607
      %v3609 = vpop.f32.mrf.mxu0
      %v3610 = vadd.f32 %v3564, %v3609
      %3611 = vmatmul.bf16.gmra.mxu0 %v3309
      %v3612 = vpop.f32.mrf.mxu0
      %v3613 = vadd.f32 %v3564, %v3612
      %v3614 = vpop.f32.mrf.mxu0
      %v3615 = vadd.f32 %v3564, %v3614
      %3616 = vmatmul.bf16.gmra.mxu0 %v3312
      %v3617 = vpop.f32.mrf.mxu0
      %v3618 = vadd.f32 %v3564, %v3617
      %v3619 = vpop.f32.mrf.mxu0
      %v3620 = vadd.f32 %v3564, %v3619
      %3621 = vmatmul.bf16.gmra.mxu0 %v3315
      %v3622 = vpop.f32.mrf.mxu0
      %v3623 = vadd.f32 %v3564, %v3622
      %v3624 = vpop.f32.mrf.mxu0
      %v3625 = vadd.f32 %v3564, %v3624
      %3626 = vmatmul.bf16.gmra.mxu0 %v3318
      %v3627 = vpop.f32.mrf.mxu0
      %v3628 = vadd.f32 %v3564, %v3627
      %v3629 = vpop.f32.mrf.mxu0
      %v3630 = vadd.f32 %v3564, %v3629
      %3631 = vmatmul.bf16.gmra.mxu0 %v3321
      %v3632 = vpop.f32.mrf.mxu0
      %v3633 = vadd.f32 %v3564, %v3632
      %v3634 = vpop.f32.mrf.mxu0
      %v3635 = vadd.f32 %v3564, %v3634
      %3636 = vmatmul.bf16.gmra.mxu0 %v3324
      %v3637 = vpop.f32.mrf.mxu0
      %v3638 = vadd.f32 %v3564, %v3637
      %v3639 = vpop.f32.mrf.mxu0
      %v3640 = vadd.f32 %v3564, %v3639
      %3641 = vmatmul.bf16.gmra.mxu0 %v3327
      %v3642 = vpop.f32.mrf.mxu0
      %v3643 = vadd.f32 %v3564, %v3642
      %v3644 = vpop.f32.mrf.mxu0
      %v3645 = vadd.f32 %v3564, %v3644
      %3646 = vmatmul.bf16.gmra.mxu0 %v3330
      %v3647 = vpop.f32.mrf.mxu0
      %v3648 = vadd.f32 %v3564, %v3647
      %v3649 = vpop.f32.mrf.mxu0
      %v3650 = vadd.f32 %v3564, %v3649
      %3651 = vmatmul.bf16.gmra.mxu0 %v3333
      %v3652 = vpop.f32.mrf.mxu0
      %v3653 = vadd.f32 %v3564, %v3652
      %v3654 = vpop.f32.mrf.mxu0
      %v3655 = vadd.f32 %v3564, %v3654
      %3656 = vmatmul.bf16.gmra.mxu0 %v3336
      %v3657 = vpop.f32.mrf.mxu0
      %v3658 = vadd.f32 %v3564, %v3657
      %v3659 = vpop.f32.mrf.mxu0
      %v3660 = vadd.f32 %v3564, %v3659
      %3661 = vmatmul.bf16.gmra.mxu0 %v3339
      %v3662 = vpop.f32.mrf.mxu0
      %v3663 = vadd.f32 %v3564, %v3662
      %v3664 = vpop.f32.mrf.mxu0
      %v3665 = vadd.f32 %v3564, %v3664
      %3666 = vmatmul.bf16.gmra.mxu0 %v3342
      %v3667 = vpop.f32.mrf.mxu0
      %v3668 = vadd.f32 %v3564, %v3667
      %v3669 = vpop.f32.mrf.mxu0
      %v3670 = vadd.f32 %v3564, %v3669
      %3671 = vmatmul.bf16.gmra.mxu0 %v3345
      %v3672 = vpop.f32.mrf.mxu0
      %v3673 = vadd.f32 %v3564, %v3672
      %v3674 = vpop.f32.mrf.mxu0
      %v3675 = vadd.f32 %v3564, %v3674
      %3676 = vmatmul.bf16.gmra.mxu0 %v3348
      %v3677 = vpop.f32.mrf.mxu0
      %v3678 = vadd.f32 %v3564, %v3677
      %v3679 = vpop.f32.mrf.mxu0
      %v3680 = vadd.f32 %v3564, %v3679
      %3681 = vmatmul.bf16.gmra.mxu0 %v3351
      %v3682 = vpop.f32.mrf.mxu0
      %v3683 = vadd.f32 %v3564, %v3682
      %v3684 = vpop.f32.mrf.mxu0
      %v3685 = vadd.f32 %v3564, %v3684
      %3686 = vmatmul.bf16.gmra.mxu0 %v3354
      %v3687 = vpop.f32.mrf.mxu0
      %v3688 = vadd.f32 %v3564, %v3687
      %v3689 = vpop.f32.mrf.mxu0
      %v3690 = vadd.f32 %v3564, %v3689
      %3691 = vmatmul.bf16.gmra.mxu0 %v3357
      %v3692 = vpop.f32.mrf.mxu0
      %v3693 = vadd.f32 %v3564, %v3692
      %v3694 = vpop.f32.mrf.mxu0
      %v3695 = vadd.f32 %v3564, %v3694
      %3696 = vmatmul.bf16.gmra.mxu0 %v3360
      %v3697 = vpop.f32.mrf.mxu0
      %v3698 = vadd.f32 %v3564, %v3697
      %v3699 = vpop.f32.mrf.mxu0
      %v3700 = vadd.f32 %v3564, %v3699
      %3701 = vmatmul.bf16.gmra.mxu0 %v3363
      %v3702 = vpop.f32.mrf.mxu0
      %v3703 = vadd.f32 %v3564, %v3702
      %v3704 = vpop.f32.mrf.mxu0
      %v3705 = vadd.f32 %v3564, %v3704
      %3706 = vmatmul.bf16.gmra.mxu0 %v3366
      %v3707 = vpop.f32.mrf.mxu0
      %v3708 = vadd.f32 %v3564, %v3707
      %v3709 = vpop.f32.mrf.mxu0
      %v3710 = vadd.f32 %v3564, %v3709
      %3711 = vmatmul.bf16.gmra.mxu0 %v3369
      %v3712 = vpop.f32.mrf.mxu0
      %v3713 = vadd.f32 %v3564, %v3712
      %v3714 = vpop.f32.mrf.mxu0
      %v3715 = vadd.f32 %v3564, %v3714
      %3716 = vmatmul.bf16.gmra.mxu0 %v3372
      %v3717 = vpop.f32.mrf.mxu0
      %v3718 = vadd.f32 %v3564, %v3717
      %v3719 = vpop.f32.mrf.mxu0
      %v3720 = vadd.f32 %v3564, %v3719
      %3721 = vmatmul.bf16.gmra.mxu0 %v3375
      %v3722 = vpop.f32.mrf.mxu0
      %v3723 = vadd.f32 %v3564, %v3722
      %v3724 = vpop.f32.mrf.mxu0
      %v3725 = vadd.f32 %v3564, %v3724
      %3726 = vmatmul.bf16.gmra.mxu0 %v3378
      %v3727 = vpop.f32.mrf.mxu0
      %v3728 = vadd.f32 %v3564, %v3727
      %v3729 = vpop.f32.mrf.mxu0
      %v3730 = vadd.f32 %v3564, %v3729
      %3731 = vmatmul.bf16.gmra.mxu0 %v3381
      %v3732 = vpop.f32.mrf.mxu0
      %v3733 = vadd.f32 %v3564, %v3732
      %v3734 = vpop.f32.mrf.mxu0
      %v3735 = vadd.f32 %v3564, %v3734
      %3736 = vmatmul.bf16.gmra.mxu0 %v3384
      %v3737 = vpop.f32.mrf.mxu0
      %v3738 = vadd.f32 %v3564, %v3737
      %v3739 = vpop.f32.mrf.mxu0
      %v3740 = vadd.f32 %v3564, %v3739
      %3741 = vmatmul.bf16.gmra.mxu0 %v3387
      %v3742 = vpop.f32.mrf.mxu0
      %v3743 = vadd.f32 %v3564, %v3742
      %v3744 = vpop.f32.mrf.mxu0
      %v3745 = vadd.f32 %v3564, %v3744
      %3746 = vdwg.mxu0
      %v3747 = vld [vmem:[#allocation3] sm:$0xff]
      %v3748 = vld [vmem:[#allocation3 + $0x8] sm:$0xff]
      %v3749 = vld [vmem:[#allocation3 + $0x10] sm:$0xff]
      %v3750 = vld [vmem:[#allocation3 + $0x18] sm:$0xff]
      %v3751 = vld [vmem:[#allocation3 + $0x20] sm:$0xff]
      %v3752 = vld [vmem:[#allocation3 + $0x28] sm:$0xff]
      %v3753 = vld [vmem:[#allocation3 + $0x30] sm:$0xff]
      %v3754 = vld [vmem:[#allocation3 + $0x38] sm:$0xff]
      %v3755 = vld [vmem:[#allocation3 + $0x40] sm:$0xff]
      %v3756 = vld [vmem:[#allocation3 + $0x48] sm:$0xff]
      %v3757 = vld [vmem:[#allocation3 + $0x50] sm:$0xff]
      %v3758 = vld [vmem:[#allocation3 + $0x58] sm:$0xff]
      %v3759 = vld [vmem:[#allocation3 + $0x60] sm:$0xff]
      %v3760 = vld [vmem:[#allocation3 + $0x68] sm:$0xff]
      %v3761 = vld [vmem:[#allocation3 + $0x70] sm:$0xff]
      %v3762 = vld [vmem:[#allocation3 + $0x78] sm:$0xff]
      %v3763 = vld [vmem:[#allocation3 + $0x80] sm:$0xff]
      %v3764 = vld [vmem:[#allocation3 + $0x88] sm:$0xff]
      %v3765 = vld [vmem:[#allocation3 + $0x90] sm:$0xff]
      %v3766 = vld [vmem:[#allocation3 + $0x98] sm:$0xff]
      %v3767 = vld [vmem:[#allocation3 + $0xa0] sm:$0xff]
      %v3768 = vld [vmem:[#allocation3 + $0xa8] sm:$0xff]
      %v3769 = vld [vmem:[#allocation3 + $0xb0] sm:$0xff]
      %v3770 = vld [vmem:[#allocation3 + $0xb8] sm:$0xff]
      %v3771 = vld [vmem:[#allocation3 + $0xc0] sm:$0xff]
      %v3772 = vld [vmem:[#allocation3 + $0xc8] sm:$0xff]
      %v3773 = vld [vmem:[#allocation3 + $0xd0] sm:$0xff]
      %v3774 = vld [vmem:[#allocation3 + $0xd8] sm:$0xff]
      %v3775 = vld [vmem:[#allocation3 + $0xe0] sm:$0xff]
      %v3776 = vld [vmem:[#allocation3 + $0xe8] sm:$0xff]
      %v3777 = vld [vmem:[#allocation3 + $0xf0] sm:$0xff]
      %v3778 = vld [vmem:[#allocation3 + $0xf8] sm:$0xff]
      %v3779 = vld [vmem:[#allocation3 + $0x100] sm:$0xff]
      %v3780 = vld [vmem:[#allocation3 + $0x108] sm:$0xff]
      %v3781 = vld [vmem:[#allocation3 + $0x110] sm:$0xff]
      %v3782 = vld [vmem:[#allocation3 + $0x118] sm:$0xff]
      %v3783 = vld [vmem:[#allocation3 + $0x120] sm:$0xff]
      %v3784 = vld [vmem:[#allocation3 + $0x128] sm:$0xff]
      %v3785 = vld [vmem:[#allocation3 + $0x130] sm:$0xff]
      %v3786 = vld [vmem:[#allocation3 + $0x138] sm:$0xff]
      %v3787 = vld [vmem:[#allocation3 + $0x140] sm:$0xff]
      %v3788 = vld [vmem:[#allocation3 + $0x148] sm:$0xff]
      %v3789 = vld [vmem:[#allocation3 + $0x150] sm:$0xff]
      %v3790 = vld [vmem:[#allocation3 + $0x158] sm:$0xff]
      %v3791 = vld [vmem:[#allocation3 + $0x160] sm:$0xff]
      %v3792 = vld [vmem:[#allocation3 + $0x168] sm:$0xff]
      %v3793 = vld [vmem:[#allocation3 + $0x170] sm:$0xff]
      %v3794 = vld [vmem:[#allocation3 + $0x178] sm:$0xff]
      %v3795 = vld [vmem:[#allocation3 + $0x180] sm:$0xff]
      %v3796 = vld [vmem:[#allocation3 + $0x188] sm:$0xff]
      %v3797 = vld [vmem:[#allocation3 + $0x190] sm:$0xff]
      %v3798 = vld [vmem:[#allocation3 + $0x198] sm:$0xff]
      %v3799 = vld [vmem:[#allocation3 + $0x1a0] sm:$0xff]
      %v3800 = vld [vmem:[#allocation3 + $0x1a8] sm:$0xff]
      %v3801 = vld [vmem:[#allocation3 + $0x1b0] sm:$0xff]
      %v3802 = vld [vmem:[#allocation3 + $0x1b8] sm:$0xff]
      %v3803 = vld [vmem:[#allocation3 + $0x1c0] sm:$0xff]
      %v3804 = vld [vmem:[#allocation3 + $0x1c8] sm:$0xff]
      %v3805 = vld [vmem:[#allocation3 + $0x1d0] sm:$0xff]
      %v3806 = vld [vmem:[#allocation3 + $0x1d8] sm:$0xff]
      %v3807 = vld [vmem:[#allocation3 + $0x1e0] sm:$0xff]
      %v3808 = vld [vmem:[#allocation3 + $0x1e8] sm:$0xff]
      %v3809 = vld [vmem:[#allocation3 + $0x1f0] sm:$0xff]
      %v3810 = vld [vmem:[#allocation3 + $0x1f8] sm:$0xff]
      %v3811 = vadd.f32 %v3747, %v3588
      %v3812 = vadd.f32 %v3748, %v3590
      %v3813 = vadd.f32 %v3749, %v3593
      %v3814 = vadd.f32 %v3750, %v3595
      %v3815 = vadd.f32 %v3751, %v3598
      %v3816 = vadd.f32 %v3752, %v3600
      %v3817 = vadd.f32 %v3753, %v3603
      %v3818 = vadd.f32 %v3754, %v3605
      %v3819 = vadd.f32 %v3755, %v3608
      %v3820 = vadd.f32 %v3756, %v3610
      %v3821 = vadd.f32 %v3757, %v3613
      %v3822 = vadd.f32 %v3758, %v3615
      %v3823 = vadd.f32 %v3759, %v3618
      %v3824 = vadd.f32 %v3760, %v3620
      %v3825 = vadd.f32 %v3761, %v3623
      %v3826 = vadd.f32 %v3762, %v3625
      %v3827 = vadd.f32 %v3763, %v3628
      %v3828 = vadd.f32 %v3764, %v3630
      %v3829 = vadd.f32 %v3765, %v3633
      %v3830 = vadd.f32 %v3766, %v3635
      %v3831 = vadd.f32 %v3767, %v3638
      %v3832 = vadd.f32 %v3768, %v3640
      %v3833 = vadd.f32 %v3769, %v3643
      %v3834 = vadd.f32 %v3770, %v3645
      %v3835 = vadd.f32 %v3771, %v3648
      %v3836 = vadd.f32 %v3772, %v3650
      %v3837 = vadd.f32 %v3773, %v3653
      %v3838 = vadd.f32 %v3774, %v3655
      %v3839 = vadd.f32 %v3775, %v3658
      %v3840 = vadd.f32 %v3776, %v3660
      %v3841 = vadd.f32 %v3777, %v3663
      %v3842 = vadd.f32 %v3778, %v3665
      %v3843 = vadd.f32 %v3779, %v3668
      %v3844 = vadd.f32 %v3780, %v3670
      %v3845 = vadd.f32 %v3781, %v3673
      %v3846 = vadd.f32 %v3782, %v3675
      %v3847 = vadd.f32 %v3783, %v3678
      %v3848 = vadd.f32 %v3784, %v3680
      %v3849 = vadd.f32 %v3785, %v3683
      %v3850 = vadd.f32 %v3786, %v3685
      %v3851 = vadd.f32 %v3787, %v3688
      %v3852 = vadd.f32 %v3788, %v3690
      %v3853 = vadd.f32 %v3789, %v3693
      %v3854 = vadd.f32 %v3790, %v3695
      %v3855 = vadd.f32 %v3791, %v3698
      %v3856 = vadd.f32 %v3792, %v3700
      %v3857 = vadd.f32 %v3793, %v3703
      %v3858 = vadd.f32 %v3794, %v3705
      %v3859 = vadd.f32 %v3795, %v3708
      %v3860 = vadd.f32 %v3796, %v3710
      %v3861 = vadd.f32 %v3797, %v3713
      %v3862 = vadd.f32 %v3798, %v3715
      %v3863 = vadd.f32 %v3799, %v3718
      %v3864 = vadd.f32 %v3800, %v3720
      %v3865 = vadd.f32 %v3801, %v3723
      %v3866 = vadd.f32 %v3802, %v3725
      %v3867 = vadd.f32 %v3803, %v3728
      %v3868 = vadd.f32 %v3804, %v3730
      %v3869 = vadd.f32 %v3805, %v3733
      %v3870 = vadd.f32 %v3806, %v3735
      %v3871 = vadd.f32 %v3807, %v3738
      %v3872 = vadd.f32 %v3808, %v3740
      %v3873 = vadd.f32 %v3809, %v3743
      %v3874 = vadd.f32 %v3810, %v3745
      %3875 = vst.msk [vmem:[#allocation3] sm:$0xff] %vm2911, %v3811
      %3876 = vst.msk [vmem:[#allocation3 + $0x8] sm:$0xff] %vm2911, %v3812
      %3877 = vst.msk [vmem:[#allocation3 + $0x10] sm:$0xff] %vm2911, %v3813
      %3878 = vst.msk [vmem:[#allocation3 + $0x18] sm:$0xff] %vm2911, %v3814
      %3879 = vst.msk [vmem:[#allocation3 + $0x20] sm:$0xff] %vm2911, %v3815
      %3880 = vst.msk [vmem:[#allocation3 + $0x28] sm:$0xff] %vm2911, %v3816
      %3881 = vst.msk [vmem:[#allocation3 + $0x30] sm:$0xff] %vm2911, %v3817
      %3882 = vst.msk [vmem:[#allocation3 + $0x38] sm:$0xff] %vm2911, %v3818
      %3883 = vst.msk [vmem:[#allocation3 + $0x40] sm:$0xff] %vm2911, %v3819
      %3884 = vst.msk [vmem:[#allocation3 + $0x48] sm:$0xff] %vm2911, %v3820
      %3885 = vst.msk [vmem:[#allocation3 + $0x50] sm:$0xff] %vm2911, %v3821
      %3886 = vst.msk [vmem:[#allocation3 + $0x58] sm:$0xff] %vm2911, %v3822
      %3887 = vst.msk [vmem:[#allocation3 + $0x60] sm:$0xff] %vm2911, %v3823
      %3888 = vst.msk [vmem:[#allocation3 + $0x68] sm:$0xff] %vm2911, %v3824
      %3889 = vst.msk [vmem:[#allocation3 + $0x70] sm:$0xff] %vm2911, %v3825
      %3890 = vst.msk [vmem:[#allocation3 + $0x78] sm:$0xff] %vm2911, %v3826
      %3891 = vst.msk [vmem:[#allocation3 + $0x80] sm:$0xff] %vm2911, %v3827
      %3892 = vst.msk [vmem:[#allocation3 + $0x88] sm:$0xff] %vm2911, %v3828
      %3893 = vst.msk [vmem:[#allocation3 + $0x90] sm:$0xff] %vm2911, %v3829
      %3894 = vst.msk [vmem:[#allocation3 + $0x98] sm:$0xff] %vm2911, %v3830
      %3895 = vst.msk [vmem:[#allocation3 + $0xa0] sm:$0xff] %vm2911, %v3831
      %3896 = vst.msk [vmem:[#allocation3 + $0xa8] sm:$0xff] %vm2911, %v3832
      %3897 = vst.msk [vmem:[#allocation3 + $0xb0] sm:$0xff] %vm2911, %v3833
      %3898 = vst.msk [vmem:[#allocation3 + $0xb8] sm:$0xff] %vm2911, %v3834
      %3899 = vst.msk [vmem:[#allocation3 + $0xc0] sm:$0xff] %vm2911, %v3835
      %3900 = vst.msk [vmem:[#allocation3 + $0xc8] sm:$0xff] %vm2911, %v3836
      %3901 = vst.msk [vmem:[#allocation3 + $0xd0] sm:$0xff] %vm2911, %v3837
      %3902 = vst.msk [vmem:[#allocation3 + $0xd8] sm:$0xff] %vm2911, %v3838
      %3903 = vst.msk [vmem:[#allocation3 + $0xe0] sm:$0xff] %vm2911, %v3839
      %3904 = vst.msk [vmem:[#allocation3 + $0xe8] sm:$0xff] %vm2911, %v3840
      %3905 = vst.msk [vmem:[#allocation3 + $0xf0] sm:$0xff] %vm2911, %v3841
      %3906 = vst.msk [vmem:[#allocation3 + $0xf8] sm:$0xff] %vm2911, %v3842
      %3907 = vst.msk [vmem:[#allocation3 + $0x100] sm:$0xff] %vm2911, %v3843
      %3908 = vst.msk [vmem:[#allocation3 + $0x108] sm:$0xff] %vm2911, %v3844
      %3909 = vst.msk [vmem:[#allocation3 + $0x110] sm:$0xff] %vm2911, %v3845
      %3910 = vst.msk [vmem:[#allocation3 + $0x118] sm:$0xff] %vm2911, %v3846
      %3911 = vst.msk [vmem:[#allocation3 + $0x120] sm:$0xff] %vm2911, %v3847
      %3912 = vst.msk [vmem:[#allocation3 + $0x128] sm:$0xff] %vm2911, %v3848
      %3913 = vst.msk [vmem:[#allocation3 + $0x130] sm:$0xff] %vm2911, %v3849
      %3914 = vst.msk [vmem:[#allocation3 + $0x138] sm:$0xff] %vm2911, %v3850
      %3915 = vst.msk [vmem:[#allocation3 + $0x140] sm:$0xff] %vm2911, %v3851
      %3916 = vst.msk [vmem:[#allocation3 + $0x148] sm:$0xff] %vm2911, %v3852
      %3917 = vst.msk [vmem:[#allocation3 + $0x150] sm:$0xff] %vm2911, %v3853
      %3918 = vst.msk [vmem:[#allocation3 + $0x158] sm:$0xff] %vm2911, %v3854
      %3919 = vst.msk [vmem:[#allocation3 + $0x160] sm:$0xff] %vm2911, %v3855
      %3920 = vst.msk [vmem:[#allocation3 + $0x168] sm:$0xff] %vm2911, %v3856
      %3921 = vst.msk [vmem:[#allocation3 + $0x170] sm:$0xff] %vm2911, %v3857
      %3922 = vst.msk [vmem:[#allocation3 + $0x178] sm:$0xff] %vm2911, %v3858
      %3923 = vst.msk [vmem:[#allocation3 + $0x180] sm:$0xff] %vm2911, %v3859
      %3924 = vst.msk [vmem:[#allocation3 + $0x188] sm:$0xff] %vm2911, %v3860
      %3925 = vst.msk [vmem:[#allocation3 + $0x190] sm:$0xff] %vm2911, %v3861
      %3926 = vst.msk [vmem:[#allocation3 + $0x198] sm:$0xff] %vm2911, %v3862
      %3927 = vst.msk [vmem:[#allocation3 + $0x1a0] sm:$0xff] %vm2911, %v3863
      %3928 = vst.msk [vmem:[#allocation3 + $0x1a8] sm:$0xff] %vm2911, %v3864
      %3929 = vst.msk [vmem:[#allocation3 + $0x1b0] sm:$0xff] %vm2911, %v3865
      %3930 = vst.msk [vmem:[#allocation3 + $0x1b8] sm:$0xff] %vm2911, %v3866
      %3931 = vst.msk [vmem:[#allocation3 + $0x1c0] sm:$0xff] %vm2911, %v3867
      %3932 = vst.msk [vmem:[#allocation3 + $0x1c8] sm:$0xff] %vm2911, %v3868
      %3933 = vst.msk [vmem:[#allocation3 + $0x1d0] sm:$0xff] %vm2911, %v3869
      %3934 = vst.msk [vmem:[#allocation3 + $0x1d8] sm:$0xff] %vm2911, %v3870
      %3935 = vst.msk [vmem:[#allocation3 + $0x1e0] sm:$0xff] %vm2911, %v3871
      %3936 = vst.msk [vmem:[#allocation3 + $0x1e8] sm:$0xff] %vm2911, %v3872
      %3937 = vst.msk [vmem:[#allocation3 + $0x1f0] sm:$0xff] %vm2911, %v3873
      %3938 = vst.msk [vmem:[#allocation3 + $0x1f8] sm:$0xff] %vm2911, %v3874
      %p3939 = scmp.lt.s32.totalorder %s26, 2
      // Predicated region
      $region73: #{weighted_proto_encoder.1} parent=59 // pred_check
        %p3940 = pneg %p3939
      $region74: #{weighted_proto_encoder.1} parent=59 // pred_check_branch
        %3942 = sbr.rel (%p3940) target = $region76
      $region75: #{weighted_proto_encoder.1} parent=59 // pred_region
        %v3943 = vld [vmem:[#allocation3] sm:$0xff]
        %v3944 = vld [vmem:[#allocation3 + $0x8] sm:$0xff]
        %v3945 = vld [vmem:[#allocation3 + $0x10] sm:$0xff]
        %v3946 = vld [vmem:[#allocation3 + $0x18] sm:$0xff]
        %v3947 = vld [vmem:[#allocation3 + $0x20] sm:$0xff]
        %v3948 = vld [vmem:[#allocation3 + $0x28] sm:$0xff]
        %v3949 = vld [vmem:[#allocation3 + $0x30] sm:$0xff]
        %v3950 = vld [vmem:[#allocation3 + $0x38] sm:$0xff]
        %v3951 = vld [vmem:[#allocation3 + $0x40] sm:$0xff]
        %v3952 = vld [vmem:[#allocation3 + $0x48] sm:$0xff]
        %v3953 = vld [vmem:[#allocation3 + $0x50] sm:$0xff]
        %v3954 = vld [vmem:[#allocation3 + $0x58] sm:$0xff]
        %v3955 = vld [vmem:[#allocation3 + $0x60] sm:$0xff]
        %v3956 = vld [vmem:[#allocation3 + $0x68] sm:$0xff]
        %v3957 = vld [vmem:[#allocation3 + $0x70] sm:$0xff]
        %v3958 = vld [vmem:[#allocation3 + $0x78] sm:$0xff]
        %v3959 = vld [vmem:[#allocation3 + $0x80] sm:$0xff]
        %v3960 = vld [vmem:[#allocation3 + $0x88] sm:$0xff]
        %v3961 = vld [vmem:[#allocation3 + $0x90] sm:$0xff]
        %v3962 = vld [vmem:[#allocation3 + $0x98] sm:$0xff]
        %v3963 = vld [vmem:[#allocation3 + $0xa0] sm:$0xff]
        %v3964 = vld [vmem:[#allocation3 + $0xa8] sm:$0xff]
        %v3965 = vld [vmem:[#allocation3 + $0xb0] sm:$0xff]
        %v3966 = vld [vmem:[#allocation3 + $0xb8] sm:$0xff]
        %v3967 = vld [vmem:[#allocation3 + $0xc0] sm:$0xff]
        %v3968 = vld [vmem:[#allocation3 + $0xc8] sm:$0xff]
        %v3969 = vld [vmem:[#allocation3 + $0xd0] sm:$0xff]
        %v3970 = vld [vmem:[#allocation3 + $0xd8] sm:$0xff]
        %v3971 = vld [vmem:[#allocation3 + $0xe0] sm:$0xff]
        %v3972 = vld [vmem:[#allocation3 + $0xe8] sm:$0xff]
        %v3973 = vld [vmem:[#allocation3 + $0xf0] sm:$0xff]
        %v3974 = vld [vmem:[#allocation3 + $0xf8] sm:$0xff]
        %v3975 = vld [vmem:[#allocation3 + $0x100] sm:$0xff]
        %v3976 = vld [vmem:[#allocation3 + $0x108] sm:$0xff]
        %v3977 = vld [vmem:[#allocation3 + $0x110] sm:$0xff]
        %v3978 = vld [vmem:[#allocation3 + $0x118] sm:$0xff]
        %v3979 = vld [vmem:[#allocation3 + $0x120] sm:$0xff]
        %v3980 = vld [vmem:[#allocation3 + $0x128] sm:$0xff]
        %v3981 = vld [vmem:[#allocation3 + $0x130] sm:$0xff]
        %v3982 = vld [vmem:[#allocation3 + $0x138] sm:$0xff]
        %v3983 = vld [vmem:[#allocation3 + $0x140] sm:$0xff]
        %v3984 = vld [vmem:[#allocation3 + $0x148] sm:$0xff]
        %v3985 = vld [vmem:[#allocation3 + $0x150] sm:$0xff]
        %v3986 = vld [vmem:[#allocation3 + $0x158] sm:$0xff]
        %v3987 = vld [vmem:[#allocation3 + $0x160] sm:$0xff]
        %v3988 = vld [vmem:[#allocation3 + $0x168] sm:$0xff]
        %v3989 = vld [vmem:[#allocation3 + $0x170] sm:$0xff]
        %v3990 = vld [vmem:[#allocation3 + $0x178] sm:$0xff]
        %v3991 = vld [vmem:[#allocation3 + $0x180] sm:$0xff]
        %v3992 = vld [vmem:[#allocation3 + $0x188] sm:$0xff]
        %v3993 = vld [vmem:[#allocation3 + $0x190] sm:$0xff]
        %v3994 = vld [vmem:[#allocation3 + $0x198] sm:$0xff]
        %v3995 = vld [vmem:[#allocation3 + $0x1a0] sm:$0xff]
        %v3996 = vld [vmem:[#allocation3 + $0x1a8] sm:$0xff]
        %v3997 = vld [vmem:[#allocation3 + $0x1b0] sm:$0xff]
        %v3998 = vld [vmem:[#allocation3 + $0x1b8] sm:$0xff]
        %v3999 = vld [vmem:[#allocation3 + $0x1c0] sm:$0xff]
        %v4000 = vld [vmem:[#allocation3 + $0x1c8] sm:$0xff]
        %v4001 = vld [vmem:[#allocation3 + $0x1d0] sm:$0xff]
        %v4002 = vld [vmem:[#allocation3 + $0x1d8] sm:$0xff]
        %v4003 = vld [vmem:[#allocation3 + $0x1e0] sm:$0xff]
        %v4004 = vld [vmem:[#allocation3 + $0x1e8] sm:$0xff]
        %v4005 = vld [vmem:[#allocation3 + $0x1f0] sm:$0xff]
        %v4006 = vld [vmem:[#allocation3 + $0x1f8] sm:$0xff]
        %s4007 = sadd.s32 %s26, 1
        %s4008 = scvt.s32.f32 %s4007
        %v4009 = vstv %s4008
        %v4010 = vrcp.pop %v4009
        %v4011 = vmul.f32 %v4009, %v4010
        %v4012 = vsub.f32 1.0, %v4011
        %v4013 = vmul.f32 %v4010, %v4012
        %v4014 = vadd.f32 %v4010, %v4013
        %vm4015 = vweird.f32 %v4009
        %vm4016 = vweird.f32 %v4010
        %vm4017 = vmor %vm4015, %vm4016
        %v4018 = vsel %vm4017, %v4010, %v4014
        %v4019 = vand.u32 2147483647, %v4009
        %vm4020 = vcmp.eq.f32.partialorder %v4019, 8.507059e+37
        %v4021 = vand.u32 %v4009, 2147483648
        %v4022 = vor.u32 1.1754944e-38, %v4021
        %v4023 = vsel %vm4020, %v4022, %v4018
        %v4024 = vmul.f32 %v1642, %v4023
        %v4025 = vmul.f32 %v1643, %v4023
        %v4026 = vmul.f32 %v1644, %v4023
        %v4027 = vmul.f32 %v1645, %v4023
        %v4028 = vmul.f32 %v1646, %v4023
        %v4029 = vmul.f32 %v1647, %v4023
        %v4030 = vmul.f32 %v1648, %v4023
        %v4031 = vmul.f32 %v1649, %v4023
        %v4032 = vmul.f32 %v1650, %v4023
        %v4033 = vmul.f32 %v1651, %v4023
        %v4034 = vmul.f32 %v1652, %v4023
        %v4035 = vmul.f32 %v1653, %v4023
        %v4036 = vmul.f32 %v1654, %v4023
        %v4037 = vmul.f32 %v1655, %v4023
        %v4038 = vmul.f32 %v1656, %v4023
        %v4039 = vmul.f32 %v1657, %v4023
        %v4040 = vmul.f32 %v1658, %v4023
        %v4041 = vmul.f32 %v1659, %v4023
        %v4042 = vmul.f32 %v1660, %v4023
        %v4043 = vmul.f32 %v1661, %v4023
        %v4044 = vmul.f32 %v1662, %v4023
        %v4045 = vmul.f32 %v1663, %v4023
        %v4046 = vmul.f32 %v1664, %v4023
        %v4047 = vmul.f32 %v1665, %v4023
        %v4048 = vmul.f32 %v1666, %v4023
        %v4049 = vmul.f32 %v1667, %v4023
        %v4050 = vmul.f32 %v1668, %v4023
        %v4051 = vmul.f32 %v1669, %v4023
        %v4052 = vmul.f32 %v1670, %v4023
        %v4053 = vmul.f32 %v1671, %v4023
        %v4054 = vmul.f32 %v1672, %v4023
        %v4055 = vmul.f32 %v1673, %v4023
        %v4056 = vmul.f32 %v1674, %v4023
        %v4057 = vmul.f32 %v1675, %v4023
        %v4058 = vmul.f32 %v1676, %v4023
        %v4059 = vmul.f32 %v1677, %v4023
        %v4060 = vmul.f32 %v1678, %v4023
        %v4061 = vmul.f32 %v1679, %v4023
        %v4062 = vmul.f32 %v1680, %v4023
        %v4063 = vmul.f32 %v1681, %v4023
        %v4064 = vmul.f32 %v1682, %v4023
        %v4065 = vmul.f32 %v1683, %v4023
        %v4066 = vmul.f32 %v1684, %v4023
        %v4067 = vmul.f32 %v1685, %v4023
        %v4068 = vmul.f32 %v1686, %v4023
        %v4069 = vmul.f32 %v1687, %v4023
        %v4070 = vmul.f32 %v1688, %v4023
        %v4071 = vmul.f32 %v1689, %v4023
        %v4072 = vmul.f32 %v1690, %v4023
        %v4073 = vmul.f32 %v1691, %v4023
        %v4074 = vmul.f32 %v1692, %v4023
        %v4075 = vmul.f32 %v1693, %v4023
        %v4076 = vmul.f32 %v1694, %v4023
        %v4077 = vmul.f32 %v1695, %v4023
        %v4078 = vmul.f32 %v1696, %v4023
        %v4079 = vmul.f32 %v1697, %v4023
        %v4080 = vmul.f32 %v1698, %v4023
        %v4081 = vmul.f32 %v1699, %v4023
        %v4082 = vmul.f32 %v1700, %v4023
        %v4083 = vmul.f32 %v1701, %v4023
        %v4084 = vmul.f32 %v1702, %v4023
        %v4085 = vmul.f32 %v1703, %v4023
        %v4086 = vmul.f32 %v1704, %v4023
        %v4087 = vmul.f32 %v1705, %v4023
        %v4088 = vmul.f32 %v3943, %v560
        %v4089 = vmul.f32 %v3944, %v567
        %v4090 = vmul.f32 %v3945, %v574
        %v4091 = vmul.f32 %v3946, %v581
        %v4092 = vmul.f32 %v3947, %v588
        %v4093 = vmul.f32 %v3948, %v595
        %v4094 = vmul.f32 %v3949, %v602
        %v4095 = vmul.f32 %v3950, %v609
        %v4096 = vmul.f32 %v3951, %v616
        %v4097 = vmul.f32 %v3952, %v623
        %v4098 = vmul.f32 %v3953, %v630
        %v4099 = vmul.f32 %v3954, %v637
        %v4100 = vmul.f32 %v3955, %v644
        %v4101 = vmul.f32 %v3956, %v651
        %v4102 = vmul.f32 %v3957, %v658
        %v4103 = vmul.f32 %v3958, %v665
        %v4104 = vmul.f32 %v3959, %v672
        %v4105 = vmul.f32 %v3960, %v679
        %v4106 = vmul.f32 %v3961, %v686
        %v4107 = vmul.f32 %v3962, %v693
        %v4108 = vmul.f32 %v3963, %v700
        %v4109 = vmul.f32 %v3964, %v707
        %v4110 = vmul.f32 %v3965, %v714
        %v4111 = vmul.f32 %v3966, %v721
        %v4112 = vmul.f32 %v3967, %v728
        %v4113 = vmul.f32 %v3968, %v735
        %v4114 = vmul.f32 %v3969, %v742
        %v4115 = vmul.f32 %v3970, %v749
        %v4116 = vmul.f32 %v3971, %v756
        %v4117 = vmul.f32 %v3972, %v763
        %v4118 = vmul.f32 %v3973, %v770
        %v4119 = vmul.f32 %v3974, %v777
        %v4120 = vmul.f32 %v3975, %v784
        %v4121 = vmul.f32 %v3976, %v791
        %v4122 = vmul.f32 %v3977, %v798
        %v4123 = vmul.f32 %v3978, %v805
        %v4124 = vmul.f32 %v3979, %v812
        %v4125 = vmul.f32 %v3980, %v819
        %v4126 = vmul.f32 %v3981, %v826
        %v4127 = vmul.f32 %v3982, %v833
        %v4128 = vmul.f32 %v3983, %v840
        %v4129 = vmul.f32 %v3984, %v847
        %v4130 = vmul.f32 %v3985, %v854
        %v4131 = vmul.f32 %v3986, %v861
        %v4132 = vmul.f32 %v3987, %v868
        %v4133 = vmul.f32 %v3988, %v875
        %v4134 = vmul.f32 %v3989, %v882
        %v4135 = vmul.f32 %v3990, %v889
        %v4136 = vmul.f32 %v3991, %v896
        %v4137 = vmul.f32 %v3992, %v903
        %v4138 = vmul.f32 %v3993, %v910
        %v4139 = vmul.f32 %v3994, %v917
        %v4140 = vmul.f32 %v3995, %v924
        %v4141 = vmul.f32 %v3996, %v931
        %v4142 = vmul.f32 %v3997, %v938
        %v4143 = vmul.f32 %v3998, %v945
        %v4144 = vmul.f32 %v3999, %v952
        %v4145 = vmul.f32 %v4000, %v959
        %v4146 = vmul.f32 %v4001, %v966
        %v4147 = vmul.f32 %v4002, %v973
        %v4148 = vmul.f32 %v4003, %v980
        %v4149 = vmul.f32 %v4004, %v987
        %v4150 = vmul.f32 %v4005, %v994
        %v4151 = vmul.f32 %v4006, %v1001
        %v4152 = vsel %vm2911, %v4088, 0.0
        %v4153 = vrot.slane %v4152, 4
        %v4154 = vadd.f32 %v4152, %v4153
        %v4155 = vrot.slane %v4154, 2
        %v4156 = vadd.f32 %v4154, %v4155
        %v4157 = vrot.slane %v4156, 1
        %v4158 = vadd.f32 %v4156, %v4157
        %v4159 = vsel %vm2911, %v4089, 0.0
        %v4160 = vrot.slane %v4159, 4
        %v4161 = vadd.f32 %v4159, %v4160
        %v4162 = vrot.slane %v4161, 2
        %v4163 = vadd.f32 %v4161, %v4162
        %v4164 = vrot.slane %v4163, 1
        %v4165 = vadd.f32 %v4163, %v4164
        %v4166 = vsel %vm2911, %v4090, 0.0
        %v4167 = vrot.slane %v4166, 4
        %v4168 = vadd.f32 %v4166, %v4167
        %v4169 = vrot.slane %v4168, 2
        %v4170 = vadd.f32 %v4168, %v4169
        %v4171 = vrot.slane %v4170, 1
        %v4172 = vadd.f32 %v4170, %v4171
        %v4173 = vsel %vm2911, %v4091, 0.0
        %v4174 = vrot.slane %v4173, 4
        %v4175 = vadd.f32 %v4173, %v4174
        %v4176 = vrot.slane %v4175, 2
        %v4177 = vadd.f32 %v4175, %v4176
        %v4178 = vrot.slane %v4177, 1
        %v4179 = vadd.f32 %v4177, %v4178
        %v4180 = vsel %vm2911, %v4092, 0.0
        %v4181 = vrot.slane %v4180, 4
        %v4182 = vadd.f32 %v4180, %v4181
        %v4183 = vrot.slane %v4182, 2
        %v4184 = vadd.f32 %v4182, %v4183
        %v4185 = vrot.slane %v4184, 1
        %v4186 = vadd.f32 %v4184, %v4185
        %v4187 = vsel %vm2911, %v4093, 0.0
        %v4188 = vrot.slane %v4187, 4
        %v4189 = vadd.f32 %v4187, %v4188
        %v4190 = vrot.slane %v4189, 2
        %v4191 = vadd.f32 %v4189, %v4190
        %v4192 = vrot.slane %v4191, 1
        %v4193 = vadd.f32 %v4191, %v4192
        %v4194 = vsel %vm2911, %v4094, 0.0
        %v4195 = vrot.slane %v4194, 4
        %v4196 = vadd.f32 %v4194, %v4195
        %v4197 = vrot.slane %v4196, 2
        %v4198 = vadd.f32 %v4196, %v4197
        %v4199 = vrot.slane %v4198, 1
        %v4200 = vadd.f32 %v4198, %v4199
        %v4201 = vsel %vm2911, %v4095, 0.0
        %v4202 = vrot.slane %v4201, 4
        %v4203 = vadd.f32 %v4201, %v4202
        %v4204 = vrot.slane %v4203, 2
        %v4205 = vadd.f32 %v4203, %v4204
        %v4206 = vrot.slane %v4205, 1
        %v4207 = vadd.f32 %v4205, %v4206
        %v4208 = vsel %vm2911, %v4096, 0.0
        %v4209 = vrot.slane %v4208, 4
        %v4210 = vadd.f32 %v4208, %v4209
        %v4211 = vrot.slane %v4210, 2
        %v4212 = vadd.f32 %v4210, %v4211
        %v4213 = vrot.slane %v4212, 1
        %v4214 = vadd.f32 %v4212, %v4213
        %v4215 = vsel %vm2911, %v4097, 0.0
        %v4216 = vrot.slane %v4215, 4
        %v4217 = vadd.f32 %v4215, %v4216
        %v4218 = vrot.slane %v4217, 2
        %v4219 = vadd.f32 %v4217, %v4218
        %v4220 = vrot.slane %v4219, 1
        %v4221 = vadd.f32 %v4219, %v4220
        %v4222 = vsel %vm2911, %v4098, 0.0
        %v4223 = vrot.slane %v4222, 4
        %v4224 = vadd.f32 %v4222, %v4223
        %v4225 = vrot.slane %v4224, 2
        %v4226 = vadd.f32 %v4224, %v4225
        %v4227 = vrot.slane %v4226, 1
        %v4228 = vadd.f32 %v4226, %v4227
        %v4229 = vsel %vm2911, %v4099, 0.0
        %v4230 = vrot.slane %v4229, 4
        %v4231 = vadd.f32 %v4229, %v4230
        %v4232 = vrot.slane %v4231, 2
        %v4233 = vadd.f32 %v4231, %v4232
        %v4234 = vrot.slane %v4233, 1
        %v4235 = vadd.f32 %v4233, %v4234
        %v4236 = vsel %vm2911, %v4100, 0.0
        %v4237 = vrot.slane %v4236, 4
        %v4238 = vadd.f32 %v4236, %v4237
        %v4239 = vrot.slane %v4238, 2
        %v4240 = vadd.f32 %v4238, %v4239
        %v4241 = vrot.slane %v4240, 1
        %v4242 = vadd.f32 %v4240, %v4241
        %v4243 = vsel %vm2911, %v4101, 0.0
        %v4244 = vrot.slane %v4243, 4
        %v4245 = vadd.f32 %v4243, %v4244
        %v4246 = vrot.slane %v4245, 2
        %v4247 = vadd.f32 %v4245, %v4246
        %v4248 = vrot.slane %v4247, 1
        %v4249 = vadd.f32 %v4247, %v4248
        %v4250 = vsel %vm2911, %v4102, 0.0
        %v4251 = vrot.slane %v4250, 4
        %v4252 = vadd.f32 %v4250, %v4251
        %v4253 = vrot.slane %v4252, 2
        %v4254 = vadd.f32 %v4252, %v4253
        %v4255 = vrot.slane %v4254, 1
        %v4256 = vadd.f32 %v4254, %v4255
        %v4257 = vsel %vm2911, %v4103, 0.0
        %v4258 = vrot.slane %v4257, 4
        %v4259 = vadd.f32 %v4257, %v4258
        %v4260 = vrot.slane %v4259, 2
        %v4261 = vadd.f32 %v4259, %v4260
        %v4262 = vrot.slane %v4261, 1
        %v4263 = vadd.f32 %v4261, %v4262
        %v4264 = vsel %vm2911, %v4104, 0.0
        %v4265 = vrot.slane %v4264, 4
        %v4266 = vadd.f32 %v4264, %v4265
        %v4267 = vrot.slane %v4266, 2
        %v4268 = vadd.f32 %v4266, %v4267
        %v4269 = vrot.slane %v4268, 1
        %v4270 = vadd.f32 %v4268, %v4269
        %v4271 = vsel %vm2911, %v4105, 0.0
        %v4272 = vrot.slane %v4271, 4
        %v4273 = vadd.f32 %v4271, %v4272
        %v4274 = vrot.slane %v4273, 2
        %v4275 = vadd.f32 %v4273, %v4274
        %v4276 = vrot.slane %v4275, 1
        %v4277 = vadd.f32 %v4275, %v4276
        %v4278 = vsel %vm2911, %v4106, 0.0
        %v4279 = vrot.slane %v4278, 4
        %v4280 = vadd.f32 %v4278, %v4279
        %v4281 = vrot.slane %v4280, 2
        %v4282 = vadd.f32 %v4280, %v4281
        %v4283 = vrot.slane %v4282, 1
        %v4284 = vadd.f32 %v4282, %v4283
        %v4285 = vsel %vm2911, %v4107, 0.0
        %v4286 = vrot.slane %v4285, 4
        %v4287 = vadd.f32 %v4285, %v4286
        %v4288 = vrot.slane %v4287, 2
        %v4289 = vadd.f32 %v4287, %v4288
        %v4290 = vrot.slane %v4289, 1
        %v4291 = vadd.f32 %v4289, %v4290
        %v4292 = vsel %vm2911, %v4108, 0.0
        %v4293 = vrot.slane %v4292, 4
        %v4294 = vadd.f32 %v4292, %v4293
        %v4295 = vrot.slane %v4294, 2
        %v4296 = vadd.f32 %v4294, %v4295
        %v4297 = vrot.slane %v4296, 1
        %v4298 = vadd.f32 %v4296, %v4297
        %v4299 = vsel %vm2911, %v4109, 0.0
        %v4300 = vrot.slane %v4299, 4
        %v4301 = vadd.f32 %v4299, %v4300
        %v4302 = vrot.slane %v4301, 2
        %v4303 = vadd.f32 %v4301, %v4302
        %v4304 = vrot.slane %v4303, 1
        %v4305 = vadd.f32 %v4303, %v4304
        %v4306 = vsel %vm2911, %v4110, 0.0
        %v4307 = vrot.slane %v4306, 4
        %v4308 = vadd.f32 %v4306, %v4307
        %v4309 = vrot.slane %v4308, 2
        %v4310 = vadd.f32 %v4308, %v4309
        %v4311 = vrot.slane %v4310, 1
        %v4312 = vadd.f32 %v4310, %v4311
        %v4313 = vsel %vm2911, %v4111, 0.0
        %v4314 = vrot.slane %v4313, 4
        %v4315 = vadd.f32 %v4313, %v4314
        %v4316 = vrot.slane %v4315, 2
        %v4317 = vadd.f32 %v4315, %v4316
        %v4318 = vrot.slane %v4317, 1
        %v4319 = vadd.f32 %v4317, %v4318
        %v4320 = vsel %vm2911, %v4112, 0.0
        %v4321 = vrot.slane %v4320, 4
        %v4322 = vadd.f32 %v4320, %v4321
        %v4323 = vrot.slane %v4322, 2
        %v4324 = vadd.f32 %v4322, %v4323
        %v4325 = vrot.slane %v4324, 1
        %v4326 = vadd.f32 %v4324, %v4325
        %v4327 = vsel %vm2911, %v4113, 0.0
        %v4328 = vrot.slane %v4327, 4
        %v4329 = vadd.f32 %v4327, %v4328
        %v4330 = vrot.slane %v4329, 2
        %v4331 = vadd.f32 %v4329, %v4330
        %v4332 = vrot.slane %v4331, 1
        %v4333 = vadd.f32 %v4331, %v4332
        %v4334 = vsel %vm2911, %v4114, 0.0
        %v4335 = vrot.slane %v4334, 4
        %v4336 = vadd.f32 %v4334, %v4335
        %v4337 = vrot.slane %v4336, 2
        %v4338 = vadd.f32 %v4336, %v4337
        %v4339 = vrot.slane %v4338, 1
        %v4340 = vadd.f32 %v4338, %v4339
        %v4341 = vsel %vm2911, %v4115, 0.0
        %v4342 = vrot.slane %v4341, 4
        %v4343 = vadd.f32 %v4341, %v4342
        %v4344 = vrot.slane %v4343, 2
        %v4345 = vadd.f32 %v4343, %v4344
        %v4346 = vrot.slane %v4345, 1
        %v4347 = vadd.f32 %v4345, %v4346
        %v4348 = vsel %vm2911, %v4116, 0.0
        %v4349 = vrot.slane %v4348, 4
        %v4350 = vadd.f32 %v4348, %v4349
        %v4351 = vrot.slane %v4350, 2
        %v4352 = vadd.f32 %v4350, %v4351
        %v4353 = vrot.slane %v4352, 1
        %v4354 = vadd.f32 %v4352, %v4353
        %v4355 = vsel %vm2911, %v4117, 0.0
        %v4356 = vrot.slane %v4355, 4
        %v4357 = vadd.f32 %v4355, %v4356
        %v4358 = vrot.slane %v4357, 2
        %v4359 = vadd.f32 %v4357, %v4358
        %v4360 = vrot.slane %v4359, 1
        %v4361 = vadd.f32 %v4359, %v4360
        %v4362 = vsel %vm2911, %v4118, 0.0
        %v4363 = vrot.slane %v4362, 4
        %v4364 = vadd.f32 %v4362, %v4363
        %v4365 = vrot.slane %v4364, 2
        %v4366 = vadd.f32 %v4364, %v4365
        %v4367 = vrot.slane %v4366, 1
        %v4368 = vadd.f32 %v4366, %v4367
        %v4369 = vsel %vm2911, %v4119, 0.0
        %v4370 = vrot.slane %v4369, 4
        %v4371 = vadd.f32 %v4369, %v4370
        %v4372 = vrot.slane %v4371, 2
        %v4373 = vadd.f32 %v4371, %v4372
        %v4374 = vrot.slane %v4373, 1
        %v4375 = vadd.f32 %v4373, %v4374
        %v4376 = vsel %vm2911, %v4120, 0.0
        %v4377 = vrot.slane %v4376, 4
        %v4378 = vadd.f32 %v4376, %v4377
        %v4379 = vrot.slane %v4378, 2
        %v4380 = vadd.f32 %v4378, %v4379
        %v4381 = vrot.slane %v4380, 1
        %v4382 = vadd.f32 %v4380, %v4381
        %v4383 = vsel %vm2911, %v4121, 0.0
        %v4384 = vrot.slane %v4383, 4
        %v4385 = vadd.f32 %v4383, %v4384
        %v4386 = vrot.slane %v4385, 2
        %v4387 = vadd.f32 %v4385, %v4386
        %v4388 = vrot.slane %v4387, 1
        %v4389 = vadd.f32 %v4387, %v4388
        %v4390 = vsel %vm2911, %v4122, 0.0
        %v4391 = vrot.slane %v4390, 4
        %v4392 = vadd.f32 %v4390, %v4391
        %v4393 = vrot.slane %v4392, 2
        %v4394 = vadd.f32 %v4392, %v4393
        %v4395 = vrot.slane %v4394, 1
        %v4396 = vadd.f32 %v4394, %v4395
        %v4397 = vsel %vm2911, %v4123, 0.0
        %v4398 = vrot.slane %v4397, 4
        %v4399 = vadd.f32 %v4397, %v4398
        %v4400 = vrot.slane %v4399, 2
        %v4401 = vadd.f32 %v4399, %v4400
        %v4402 = vrot.slane %v4401, 1
        %v4403 = vadd.f32 %v4401, %v4402
        %v4404 = vsel %vm2911, %v4124, 0.0
        %v4405 = vrot.slane %v4404, 4
        %v4406 = vadd.f32 %v4404, %v4405
        %v4407 = vrot.slane %v4406, 2
        %v4408 = vadd.f32 %v4406, %v4407
        %v4409 = vrot.slane %v4408, 1
        %v4410 = vadd.f32 %v4408, %v4409
        %v4411 = vsel %vm2911, %v4125, 0.0
        %v4412 = vrot.slane %v4411, 4
        %v4413 = vadd.f32 %v4411, %v4412
        %v4414 = vrot.slane %v4413, 2
        %v4415 = vadd.f32 %v4413, %v4414
        %v4416 = vrot.slane %v4415, 1
        %v4417 = vadd.f32 %v4415, %v4416
        %v4418 = vsel %vm2911, %v4126, 0.0
        %v4419 = vrot.slane %v4418, 4
        %v4420 = vadd.f32 %v4418, %v4419
        %v4421 = vrot.slane %v4420, 2
        %v4422 = vadd.f32 %v4420, %v4421
        %v4423 = vrot.slane %v4422, 1
        %v4424 = vadd.f32 %v4422, %v4423
        %v4425 = vsel %vm2911, %v4127, 0.0
        %v4426 = vrot.slane %v4425, 4
        %v4427 = vadd.f32 %v4425, %v4426
        %v4428 = vrot.slane %v4427, 2
        %v4429 = vadd.f32 %v4427, %v4428
        %v4430 = vrot.slane %v4429, 1
        %v4431 = vadd.f32 %v4429, %v4430
        %v4432 = vsel %vm2911, %v4128, 0.0
        %v4433 = vrot.slane %v4432, 4
        %v4434 = vadd.f32 %v4432, %v4433
        %v4435 = vrot.slane %v4434, 2
        %v4436 = vadd.f32 %v4434, %v4435
        %v4437 = vrot.slane %v4436, 1
        %v4438 = vadd.f32 %v4436, %v4437
        %v4439 = vsel %vm2911, %v4129, 0.0
        %v4440 = vrot.slane %v4439, 4
        %v4441 = vadd.f32 %v4439, %v4440
        %v4442 = vrot.slane %v4441, 2
        %v4443 = vadd.f32 %v4441, %v4442
        %v4444 = vrot.slane %v4443, 1
        %v4445 = vadd.f32 %v4443, %v4444
        %v4446 = vsel %vm2911, %v4130, 0.0
        %v4447 = vrot.slane %v4446, 4
        %v4448 = vadd.f32 %v4446, %v4447
        %v4449 = vrot.slane %v4448, 2
        %v4450 = vadd.f32 %v4448, %v4449
        %v4451 = vrot.slane %v4450, 1
        %v4452 = vadd.f32 %v4450, %v4451
        %v4453 = vsel %vm2911, %v4131, 0.0
        %v4454 = vrot.slane %v4453, 4
        %v4455 = vadd.f32 %v4453, %v4454
        %v4456 = vrot.slane %v4455, 2
        %v4457 = vadd.f32 %v4455, %v4456
        %v4458 = vrot.slane %v4457, 1
        %v4459 = vadd.f32 %v4457, %v4458
        %v4460 = vsel %vm2911, %v4132, 0.0
        %v4461 = vrot.slane %v4460, 4
        %v4462 = vadd.f32 %v4460, %v4461
        %v4463 = vrot.slane %v4462, 2
        %v4464 = vadd.f32 %v4462, %v4463
        %v4465 = vrot.slane %v4464, 1
        %v4466 = vadd.f32 %v4464, %v4465
        %v4467 = vsel %vm2911, %v4133, 0.0
        %v4468 = vrot.slane %v4467, 4
        %v4469 = vadd.f32 %v4467, %v4468
        %v4470 = vrot.slane %v4469, 2
        %v4471 = vadd.f32 %v4469, %v4470
        %v4472 = vrot.slane %v4471, 1
        %v4473 = vadd.f32 %v4471, %v4472
        %v4474 = vsel %vm2911, %v4134, 0.0
        %v4475 = vrot.slane %v4474, 4
        %v4476 = vadd.f32 %v4474, %v4475
        %v4477 = vrot.slane %v4476, 2
        %v4478 = vadd.f32 %v4476, %v4477
        %v4479 = vrot.slane %v4478, 1
        %v4480 = vadd.f32 %v4478, %v4479
        %v4481 = vsel %vm2911, %v4135, 0.0
        %v4482 = vrot.slane %v4481, 4
        %v4483 = vadd.f32 %v4481, %v4482
        %v4484 = vrot.slane %v4483, 2
        %v4485 = vadd.f32 %v4483, %v4484
        %v4486 = vrot.slane %v4485, 1
        %v4487 = vadd.f32 %v4485, %v4486
        %v4488 = vsel %vm2911, %v4136, 0.0
        %v4489 = vrot.slane %v4488, 4
        %v4490 = vadd.f32 %v4488, %v4489
        %v4491 = vrot.slane %v4490, 2
        %v4492 = vadd.f32 %v4490, %v4491
        %v4493 = vrot.slane %v4492, 1
        %v4494 = vadd.f32 %v4492, %v4493
        %v4495 = vsel %vm2911, %v4137, 0.0
        %v4496 = vrot.slane %v4495, 4
        %v4497 = vadd.f32 %v4495, %v4496
        %v4498 = vrot.slane %v4497, 2
        %v4499 = vadd.f32 %v4497, %v4498
        %v4500 = vrot.slane %v4499, 1
        %v4501 = vadd.f32 %v4499, %v4500
        %v4502 = vsel %vm2911, %v4138, 0.0
        %v4503 = vrot.slane %v4502, 4
        %v4504 = vadd.f32 %v4502, %v4503
        %v4505 = vrot.slane %v4504, 2
        %v4506 = vadd.f32 %v4504, %v4505
        %v4507 = vrot.slane %v4506, 1
        %v4508 = vadd.f32 %v4506, %v4507
        %v4509 = vsel %vm2911, %v4139, 0.0
        %v4510 = vrot.slane %v4509, 4
        %v4511 = vadd.f32 %v4509, %v4510
        %v4512 = vrot.slane %v4511, 2
        %v4513 = vadd.f32 %v4511, %v4512
        %v4514 = vrot.slane %v4513, 1
        %v4515 = vadd.f32 %v4513, %v4514
        %v4516 = vsel %vm2911, %v4140, 0.0
        %v4517 = vrot.slane %v4516, 4
        %v4518 = vadd.f32 %v4516, %v4517
        %v4519 = vrot.slane %v4518, 2
        %v4520 = vadd.f32 %v4518, %v4519
        %v4521 = vrot.slane %v4520, 1
        %v4522 = vadd.f32 %v4520, %v4521
        %v4523 = vsel %vm2911, %v4141, 0.0
        %v4524 = vrot.slane %v4523, 4
        %v4525 = vadd.f32 %v4523, %v4524
        %v4526 = vrot.slane %v4525, 2
        %v4527 = vadd.f32 %v4525, %v4526
        %v4528 = vrot.slane %v4527, 1
        %v4529 = vadd.f32 %v4527, %v4528
        %v4530 = vsel %vm2911, %v4142, 0.0
        %v4531 = vrot.slane %v4530, 4
        %v4532 = vadd.f32 %v4530, %v4531
        %v4533 = vrot.slane %v4532, 2
        %v4534 = vadd.f32 %v4532, %v4533
        %v4535 = vrot.slane %v4534, 1
        %v4536 = vadd.f32 %v4534, %v4535
        %v4537 = vsel %vm2911, %v4143, 0.0
        %v4538 = vrot.slane %v4537, 4
        %v4539 = vadd.f32 %v4537, %v4538
        %v4540 = vrot.slane %v4539, 2
        %v4541 = vadd.f32 %v4539, %v4540
        %v4542 = vrot.slane %v4541, 1
        %v4543 = vadd.f32 %v4541, %v4542
        %v4544 = vsel %vm2911, %v4144, 0.0
        %v4545 = vrot.slane %v4544, 4
        %v4546 = vadd.f32 %v4544, %v4545
        %v4547 = vrot.slane %v4546, 2
        %v4548 = vadd.f32 %v4546, %v4547
        %v4549 = vrot.slane %v4548, 1
        %v4550 = vadd.f32 %v4548, %v4549
        %v4551 = vsel %vm2911, %v4145, 0.0
        %v4552 = vrot.slane %v4551, 4
        %v4553 = vadd.f32 %v4551, %v4552
        %v4554 = vrot.slane %v4553, 2
        %v4555 = vadd.f32 %v4553, %v4554
        %v4556 = vrot.slane %v4555, 1
        %v4557 = vadd.f32 %v4555, %v4556
        %v4558 = vsel %vm2911, %v4146, 0.0
        %v4559 = vrot.slane %v4558, 4
        %v4560 = vadd.f32 %v4558, %v4559
        %v4561 = vrot.slane %v4560, 2
        %v4562 = vadd.f32 %v4560, %v4561
        %v4563 = vrot.slane %v4562, 1
        %v4564 = vadd.f32 %v4562, %v4563
        %v4565 = vsel %vm2911, %v4147, 0.0
        %v4566 = vrot.slane %v4565, 4
        %v4567 = vadd.f32 %v4565, %v4566
        %v4568 = vrot.slane %v4567, 2
        %v4569 = vadd.f32 %v4567, %v4568
        %v4570 = vrot.slane %v4569, 1
        %v4571 = vadd.f32 %v4569, %v4570
        %v4572 = vsel %vm2911, %v4148, 0.0
        %v4573 = vrot.slane %v4572, 4
        %v4574 = vadd.f32 %v4572, %v4573
        %v4575 = vrot.slane %v4574, 2
        %v4576 = vadd.f32 %v4574, %v4575
        %v4577 = vrot.slane %v4576, 1
        %v4578 = vadd.f32 %v4576, %v4577
        %v4579 = vsel %vm2911, %v4149, 0.0
        %v4580 = vrot.slane %v4579, 4
        %v4581 = vadd.f32 %v4579, %v4580
        %v4582 = vrot.slane %v4581, 2
        %v4583 = vadd.f32 %v4581, %v4582
        %v4584 = vrot.slane %v4583, 1
        %v4585 = vadd.f32 %v4583, %v4584
        %v4586 = vsel %vm2911, %v4150, 0.0
        %v4587 = vrot.slane %v4586, 4
        %v4588 = vadd.f32 %v4586, %v4587
        %v4589 = vrot.slane %v4588, 2
        %v4590 = vadd.f32 %v4588, %v4589
        %v4591 = vrot.slane %v4590, 1
        %v4592 = vadd.f32 %v4590, %v4591
        %v4593 = vsel %vm2911, %v4151, 0.0
        %v4594 = vrot.slane %v4593, 4
        %v4595 = vadd.f32 %v4593, %v4594
        %v4596 = vrot.slane %v4595, 2
        %v4597 = vadd.f32 %v4595, %v4596
        %v4598 = vrot.slane %v4597, 1
        %v4599 = vadd.f32 %v4597, %v4598
        %v4600 = vmul.f32 %v4158, %v4024
        %v4601 = vmul.f32 %v4165, %v4025
        %v4602 = vmul.f32 %v4172, %v4026
        %v4603 = vmul.f32 %v4179, %v4027
        %v4604 = vmul.f32 %v4186, %v4028
        %v4605 = vmul.f32 %v4193, %v4029
        %v4606 = vmul.f32 %v4200, %v4030
        %v4607 = vmul.f32 %v4207, %v4031
        %v4608 = vmul.f32 %v4214, %v4032
        %v4609 = vmul.f32 %v4221, %v4033
        %v4610 = vmul.f32 %v4228, %v4034
        %v4611 = vmul.f32 %v4235, %v4035
        %v4612 = vmul.f32 %v4242, %v4036
        %v4613 = vmul.f32 %v4249, %v4037
        %v4614 = vmul.f32 %v4256, %v4038
        %v4615 = vmul.f32 %v4263, %v4039
        %v4616 = vmul.f32 %v4270, %v4040
        %v4617 = vmul.f32 %v4277, %v4041
        %v4618 = vmul.f32 %v4284, %v4042
        %v4619 = vmul.f32 %v4291, %v4043
        %v4620 = vmul.f32 %v4298, %v4044
        %v4621 = vmul.f32 %v4305, %v4045
        %v4622 = vmul.f32 %v4312, %v4046
        %v4623 = vmul.f32 %v4319, %v4047
        %v4624 = vmul.f32 %v4326, %v4048
        %v4625 = vmul.f32 %v4333, %v4049
        %v4626 = vmul.f32 %v4340, %v4050
        %v4627 = vmul.f32 %v4347, %v4051
        %v4628 = vmul.f32 %v4354, %v4052
        %v4629 = vmul.f32 %v4361, %v4053
        %v4630 = vmul.f32 %v4368, %v4054
        %v4631 = vmul.f32 %v4375, %v4055
        %v4632 = vmul.f32 %v4382, %v4056
        %v4633 = vmul.f32 %v4389, %v4057
        %v4634 = vmul.f32 %v4396, %v4058
        %v4635 = vmul.f32 %v4403, %v4059
        %v4636 = vmul.f32 %v4410, %v4060
        %v4637 = vmul.f32 %v4417, %v4061
        %v4638 = vmul.f32 %v4424, %v4062
        %v4639 = vmul.f32 %v4431, %v4063
        %v4640 = vmul.f32 %v4438, %v4064
        %v4641 = vmul.f32 %v4445, %v4065
        %v4642 = vmul.f32 %v4452, %v4066
        %v4643 = vmul.f32 %v4459, %v4067
        %v4644 = vmul.f32 %v4466, %v4068
        %v4645 = vmul.f32 %v4473, %v4069
        %v4646 = vmul.f32 %v4480, %v4070
        %v4647 = vmul.f32 %v4487, %v4071
        %v4648 = vmul.f32 %v4494, %v4072
        %v4649 = vmul.f32 %v4501, %v4073
        %v4650 = vmul.f32 %v4508, %v4074
        %v4651 = vmul.f32 %v4515, %v4075
        %v4652 = vmul.f32 %v4522, %v4076
        %v4653 = vmul.f32 %v4529, %v4077
        %v4654 = vmul.f32 %v4536, %v4078
        %v4655 = vmul.f32 %v4543, %v4079
        %v4656 = vmul.f32 %v4550, %v4080
        %v4657 = vmul.f32 %v4557, %v4081
        %v4658 = vmul.f32 %v4564, %v4082
        %v4659 = vmul.f32 %v4571, %v4083
        %v4660 = vmul.f32 %v4578, %v4084
        %v4661 = vmul.f32 %v4585, %v4085
        %v4662 = vmul.f32 %v4592, %v4086
        %v4663 = vmul.f32 %v4599, %v4087
        %v4664 = vsub.f32 %v3399, %v4600
        %v4665 = vsub.f32 %v3401, %v4601
        %v4666 = vsub.f32 %v3404, %v4602
        %v4667 = vsub.f32 %v3406, %v4603
        %v4668 = vsub.f32 %v3409, %v4604
        %v4669 = vsub.f32 %v3411, %v4605
        %v4670 = vsub.f32 %v3414, %v4606
        %v4671 = vsub.f32 %v3416, %v4607
        %v4672 = vsub.f32 %v3419, %v4608
        %v4673 = vsub.f32 %v3421, %v4609
        %v4674 = vsub.f32 %v3424, %v4610
        %v4675 = vsub.f32 %v3426, %v4611
        %v4676 = vsub.f32 %v3429, %v4612
        %v4677 = vsub.f32 %v3431, %v4613
        %v4678 = vsub.f32 %v3434, %v4614
        %v4679 = vsub.f32 %v3436, %v4615
        %v4680 = vsub.f32 %v3439, %v4616
        %v4681 = vsub.f32 %v3441, %v4617
        %v4682 = vsub.f32 %v3444, %v4618
        %v4683 = vsub.f32 %v3446, %v4619
        %v4684 = vsub.f32 %v3449, %v4620
        %v4685 = vsub.f32 %v3451, %v4621
        %v4686 = vsub.f32 %v3454, %v4622
        %v4687 = vsub.f32 %v3456, %v4623
        %v4688 = vsub.f32 %v3459, %v4624
        %v4689 = vsub.f32 %v3461, %v4625
        %v4690 = vsub.f32 %v3464, %v4626
        %v4691 = vsub.f32 %v3466, %v4627
        %v4692 = vsub.f32 %v3469, %v4628
        %v4693 = vsub.f32 %v3471, %v4629
        %v4694 = vsub.f32 %v3474, %v4630
        %v4695 = vsub.f32 %v3476, %v4631
        %v4696 = vsub.f32 %v3479, %v4632
        %v4697 = vsub.f32 %v3481, %v4633
        %v4698 = vsub.f32 %v3484, %v4634
        %v4699 = vsub.f32 %v3486, %v4635
        %v4700 = vsub.f32 %v3489, %v4636
        %v4701 = vsub.f32 %v3491, %v4637
        %v4702 = vsub.f32 %v3494, %v4638
        %v4703 = vsub.f32 %v3496, %v4639
        %v4704 = vsub.f32 %v3499, %v4640
        %v4705 = vsub.f32 %v3501, %v4641
        %v4706 = vsub.f32 %v3504, %v4642
        %v4707 = vsub.f32 %v3506, %v4643
        %v4708 = vsub.f32 %v3509, %v4644
        %v4709 = vsub.f32 %v3511, %v4645
        %v4710 = vsub.f32 %v3514, %v4646
        %v4711 = vsub.f32 %v3516, %v4647
        %v4712 = vsub.f32 %v3519, %v4648
        %v4713 = vsub.f32 %v3521, %v4649
        %v4714 = vsub.f32 %v3524, %v4650
        %v4715 = vsub.f32 %v3526, %v4651
        %v4716 = vsub.f32 %v3529, %v4652
        %v4717 = vsub.f32 %v3531, %v4653
        %v4718 = vsub.f32 %v3534, %v4654
        %v4719 = vsub.f32 %v3536, %v4655
        %v4720 = vsub.f32 %v3539, %v4656
        %v4721 = vsub.f32 %v3541, %v4657
        %v4722 = vsub.f32 %v3544, %v4658
        %v4723 = vsub.f32 %v3546, %v4659
        %v4724 = vsub.f32 %v3549, %v4660
        %v4725 = vsub.f32 %v3551, %v4661
        %v4726 = vsub.f32 %v3554, %v4662
        %v4727 = vsub.f32 %v3556, %v4663
        %v4728 = vmax.f32 %v4664, 0.0
        %v4729 = vmax.f32 %v4665, 0.0
        %v4730 = vmax.f32 %v4666, 0.0
        %v4731 = vmax.f32 %v4667, 0.0
        %v4732 = vmax.f32 %v4668, 0.0
        %v4733 = vmax.f32 %v4669, 0.0
        %v4734 = vmax.f32 %v4670, 0.0
        %v4735 = vmax.f32 %v4671, 0.0
        %v4736 = vmax.f32 %v4672, 0.0
        %v4737 = vmax.f32 %v4673, 0.0
        %v4738 = vmax.f32 %v4674, 0.0
        %v4739 = vmax.f32 %v4675, 0.0
        %v4740 = vmax.f32 %v4676, 0.0
        %v4741 = vmax.f32 %v4677, 0.0
        %v4742 = vmax.f32 %v4678, 0.0
        %v4743 = vmax.f32 %v4679, 0.0
        %v4744 = vmax.f32 %v4680, 0.0
        %v4745 = vmax.f32 %v4681, 0.0
        %v4746 = vmax.f32 %v4682, 0.0
        %v4747 = vmax.f32 %v4683, 0.0
        %v4748 = vmax.f32 %v4684, 0.0
        %v4749 = vmax.f32 %v4685, 0.0
        %v4750 = vmax.f32 %v4686, 0.0
        %v4751 = vmax.f32 %v4687, 0.0
        %v4752 = vmax.f32 %v4688, 0.0
        %v4753 = vmax.f32 %v4689, 0.0
        %v4754 = vmax.f32 %v4690, 0.0
        %v4755 = vmax.f32 %v4691, 0.0
        %v4756 = vmax.f32 %v4692, 0.0
        %v4757 = vmax.f32 %v4693, 0.0
        %v4758 = vmax.f32 %v4694, 0.0
        %v4759 = vmax.f32 %v4695, 0.0
        %v4760 = vmax.f32 %v4696, 0.0
        %v4761 = vmax.f32 %v4697, 0.0
        %v4762 = vmax.f32 %v4698, 0.0
        %v4763 = vmax.f32 %v4699, 0.0
        %v4764 = vmax.f32 %v4700, 0.0
        %v4765 = vmax.f32 %v4701, 0.0
        %v4766 = vmax.f32 %v4702, 0.0
        %v4767 = vmax.f32 %v4703, 0.0
        %v4768 = vmax.f32 %v4704, 0.0
        %v4769 = vmax.f32 %v4705, 0.0
        %v4770 = vmax.f32 %v4706, 0.0
        %v4771 = vmax.f32 %v4707, 0.0
        %v4772 = vmax.f32 %v4708, 0.0
        %v4773 = vmax.f32 %v4709, 0.0
        %v4774 = vmax.f32 %v4710, 0.0
        %v4775 = vmax.f32 %v4711, 0.0
        %v4776 = vmax.f32 %v4712, 0.0
        %v4777 = vmax.f32 %v4713, 0.0
        %v4778 = vmax.f32 %v4714, 0.0
        %v4779 = vmax.f32 %v4715, 0.0
        %v4780 = vmax.f32 %v4716, 0.0
        %v4781 = vmax.f32 %v4717, 0.0
        %v4782 = vmax.f32 %v4718, 0.0
        %v4783 = vmax.f32 %v4719, 0.0
        %v4784 = vmax.f32 %v4720, 0.0
        %v4785 = vmax.f32 %v4721, 0.0
        %v4786 = vmax.f32 %v4722, 0.0
        %v4787 = vmax.f32 %v4723, 0.0
        %v4788 = vmax.f32 %v4724, 0.0
        %v4789 = vmax.f32 %v4725, 0.0
        %v4790 = vmax.f32 %v4726, 0.0
        %v4791 = vmax.f32 %v4727, 0.0
        %4792 = vst.msk [vmem:[#allocation2] sm:$0xff] %vm2911, %v4728
        %4793 = vst.msk [vmem:[#allocation2 + $0x8] sm:$0xff] %vm2911, %v4729
        %4794 = vst.msk [vmem:[#allocation2 + $0x10] sm:$0xff] %vm2911, %v4730
        %4795 = vst.msk [vmem:[#allocation2 + $0x18] sm:$0xff] %vm2911, %v4731
        %4796 = vst.msk [vmem:[#allocation2 + $0x20] sm:$0xff] %vm2911, %v4732
        %4797 = vst.msk [vmem:[#allocation2 + $0x28] sm:$0xff] %vm2911, %v4733
        %4798 = vst.msk [vmem:[#allocation2 + $0x30] sm:$0xff] %vm2911, %v4734
        %4799 = vst.msk [vmem:[#allocation2 + $0x38] sm:$0xff] %vm2911, %v4735
        %4800 = vst.msk [vmem:[#allocation2 + $0x40] sm:$0xff] %vm2911, %v4736
        %4801 = vst.msk [vmem:[#allocation2 + $0x48] sm:$0xff] %vm2911, %v4737
        %4802 = vst.msk [vmem:[#allocation2 + $0x50] sm:$0xff] %vm2911, %v4738
        %4803 = vst.msk [vmem:[#allocation2 + $0x58] sm:$0xff] %vm2911, %v4739
        %4804 = vst.msk [vmem:[#allocation2 + $0x60] sm:$0xff] %vm2911, %v4740
        %4805 = vst.msk [vmem:[#allocation2 + $0x68] sm:$0xff] %vm2911, %v4741
        %4806 = vst.msk [vmem:[#allocation2 + $0x70] sm:$0xff] %vm2911, %v4742
        %4807 = vst.msk [vmem:[#allocation2 + $0x78] sm:$0xff] %vm2911, %v4743
        %4808 = vst.msk [vmem:[#allocation2 + $0x80] sm:$0xff] %vm2911, %v4744
        %4809 = vst.msk [vmem:[#allocation2 + $0x88] sm:$0xff] %vm2911, %v4745
        %4810 = vst.msk [vmem:[#allocation2 + $0x90] sm:$0xff] %vm2911, %v4746
        %4811 = vst.msk [vmem:[#allocation2 + $0x98] sm:$0xff] %vm2911, %v4747
        %4812 = vst.msk [vmem:[#allocation2 + $0xa0] sm:$0xff] %vm2911, %v4748
        %4813 = vst.msk [vmem:[#allocation2 + $0xa8] sm:$0xff] %vm2911, %v4749
        %4814 = vst.msk [vmem:[#allocation2 + $0xb0] sm:$0xff] %vm2911, %v4750
        %4815 = vst.msk [vmem:[#allocation2 + $0xb8] sm:$0xff] %vm2911, %v4751
        %4816 = vst.msk [vmem:[#allocation2 + $0xc0] sm:$0xff] %vm2911, %v4752
        %4817 = vst.msk [vmem:[#allocation2 + $0xc8] sm:$0xff] %vm2911, %v4753
        %4818 = vst.msk [vmem:[#allocation2 + $0xd0] sm:$0xff] %vm2911, %v4754
        %4819 = vst.msk [vmem:[#allocation2 + $0xd8] sm:$0xff] %vm2911, %v4755
        %4820 = vst.msk [vmem:[#allocation2 + $0xe0] sm:$0xff] %vm2911, %v4756
        %4821 = vst.msk [vmem:[#allocation2 + $0xe8] sm:$0xff] %vm2911, %v4757
        %4822 = vst.msk [vmem:[#allocation2 + $0xf0] sm:$0xff] %vm2911, %v4758
        %4823 = vst.msk [vmem:[#allocation2 + $0xf8] sm:$0xff] %vm2911, %v4759
        %4824 = vst.msk [vmem:[#allocation2 + $0x100] sm:$0xff] %vm2911, %v4760
        %4825 = vst.msk [vmem:[#allocation2 + $0x108] sm:$0xff] %vm2911, %v4761
        %4826 = vst.msk [vmem:[#allocation2 + $0x110] sm:$0xff] %vm2911, %v4762
        %4827 = vst.msk [vmem:[#allocation2 + $0x118] sm:$0xff] %vm2911, %v4763
        %4828 = vst.msk [vmem:[#allocation2 + $0x120] sm:$0xff] %vm2911, %v4764
        %4829 = vst.msk [vmem:[#allocation2 + $0x128] sm:$0xff] %vm2911, %v4765
        %4830 = vst.msk [vmem:[#allocation2 + $0x130] sm:$0xff] %vm2911, %v4766
        %4831 = vst.msk [vmem:[#allocation2 + $0x138] sm:$0xff] %vm2911, %v4767
        %4832 = vst.msk [vmem:[#allocation2 + $0x140] sm:$0xff] %vm2911, %v4768
        %4833 = vst.msk [vmem:[#allocation2 + $0x148] sm:$0xff] %vm2911, %v4769
        %4834 = vst.msk [vmem:[#allocation2 + $0x150] sm:$0xff] %vm2911, %v4770
        %4835 = vst.msk [vmem:[#allocation2 + $0x158] sm:$0xff] %vm2911, %v4771
        %4836 = vst.msk [vmem:[#allocation2 + $0x160] sm:$0xff] %vm2911, %v4772
        %4837 = vst.msk [vmem:[#allocation2 + $0x168] sm:$0xff] %vm2911, %v4773
        %4838 = vst.msk [vmem:[#allocation2 + $0x170] sm:$0xff] %vm2911, %v4774
        %4839 = vst.msk [vmem:[#allocation2 + $0x178] sm:$0xff] %vm2911, %v4775
        %4840 = vst.msk [vmem:[#allocation2 + $0x180] sm:$0xff] %vm2911, %v4776
        %4841 = vst.msk [vmem:[#allocation2 + $0x188] sm:$0xff] %vm2911, %v4777
        %4842 = vst.msk [vmem:[#allocation2 + $0x190] sm:$0xff] %vm2911, %v4778
        %4843 = vst.msk [vmem:[#allocation2 + $0x198] sm:$0xff] %vm2911, %v4779
        %4844 = vst.msk [vmem:[#allocation2 + $0x1a0] sm:$0xff] %vm2911, %v4780
        %4845 = vst.msk [vmem:[#allocation2 + $0x1a8] sm:$0xff] %vm2911, %v4781
        %4846 = vst.msk [vmem:[#allocation2 + $0x1b0] sm:$0xff] %vm2911, %v4782
        %4847 = vst.msk [vmem:[#allocation2 + $0x1b8] sm:$0xff] %vm2911, %v4783
        %4848 = vst.msk [vmem:[#allocation2 + $0x1c0] sm:$0xff] %vm2911, %v4784
        %4849 = vst.msk [vmem:[#allocation2 + $0x1c8] sm:$0xff] %vm2911, %v4785
        %4850 = vst.msk [vmem:[#allocation2 + $0x1d0] sm:$0xff] %vm2911, %v4786
        %4851 = vst.msk [vmem:[#allocation2 + $0x1d8] sm:$0xff] %vm2911, %v4787
        %4852 = vst.msk [vmem:[#allocation2 + $0x1e0] sm:$0xff] %vm2911, %v4788
        %4853 = vst.msk [vmem:[#allocation2 + $0x1e8] sm:$0xff] %vm2911, %v4789
        %4854 = vst.msk [vmem:[#allocation2 + $0x1f0] sm:$0xff] %vm2911, %v4790
        %4855 = vst.msk [vmem:[#allocation2 + $0x1f8] sm:$0xff] %vm2911, %v4791
      $region76: #{weighted_proto_encoder.1} parent=59 // pred_fallthru
        _
      %p4856 = scmp.eq.s32.totalorder %s26, 2
      // Predicated region
      $region77: #{weighted_proto_encoder.1} parent=59 // pred_check
        %p4857 = pneg %p4856
      $region78: #{weighted_proto_encoder.1} parent=59 // pred_check_branch
        %4859 = sbr.rel (%p4857) target = $region80
      $region79: #{weighted_proto_encoder.1} parent=59 // pred_region
        %v4860 = vld [vmem:[#allocation3] sm:$0xff]
        %v4861 = vld [vmem:[#allocation3 + $0x8] sm:$0xff]
        %v4862 = vld [vmem:[#allocation3 + $0x10] sm:$0xff]
        %v4863 = vld [vmem:[#allocation3 + $0x18] sm:$0xff]
        %v4864 = vld [vmem:[#allocation3 + $0x20] sm:$0xff]
        %v4865 = vld [vmem:[#allocation3 + $0x28] sm:$0xff]
        %v4866 = vld [vmem:[#allocation3 + $0x30] sm:$0xff]
        %v4867 = vld [vmem:[#allocation3 + $0x38] sm:$0xff]
        %v4868 = vld [vmem:[#allocation3 + $0x40] sm:$0xff]
        %v4869 = vld [vmem:[#allocation3 + $0x48] sm:$0xff]
        %v4870 = vld [vmem:[#allocation3 + $0x50] sm:$0xff]
        %v4871 = vld [vmem:[#allocation3 + $0x58] sm:$0xff]
        %v4872 = vld [vmem:[#allocation3 + $0x60] sm:$0xff]
        %v4873 = vld [vmem:[#allocation3 + $0x68] sm:$0xff]
        %v4874 = vld [vmem:[#allocation3 + $0x70] sm:$0xff]
        %v4875 = vld [vmem:[#allocation3 + $0x78] sm:$0xff]
        %v4876 = vld [vmem:[#allocation3 + $0x80] sm:$0xff]
        %v4877 = vld [vmem:[#allocation3 + $0x88] sm:$0xff]
        %v4878 = vld [vmem:[#allocation3 + $0x90] sm:$0xff]
        %v4879 = vld [vmem:[#allocation3 + $0x98] sm:$0xff]
        %v4880 = vld [vmem:[#allocation3 + $0xa0] sm:$0xff]
        %v4881 = vld [vmem:[#allocation3 + $0xa8] sm:$0xff]
        %v4882 = vld [vmem:[#allocation3 + $0xb0] sm:$0xff]
        %v4883 = vld [vmem:[#allocation3 + $0xb8] sm:$0xff]
        %v4884 = vld [vmem:[#allocation3 + $0xc0] sm:$0xff]
        %v4885 = vld [vmem:[#allocation3 + $0xc8] sm:$0xff]
        %v4886 = vld [vmem:[#allocation3 + $0xd0] sm:$0xff]
        %v4887 = vld [vmem:[#allocation3 + $0xd8] sm:$0xff]
        %v4888 = vld [vmem:[#allocation3 + $0xe0] sm:$0xff]
        %v4889 = vld [vmem:[#allocation3 + $0xe8] sm:$0xff]
        %v4890 = vld [vmem:[#allocation3 + $0xf0] sm:$0xff]
        %v4891 = vld [vmem:[#allocation3 + $0xf8] sm:$0xff]
        %v4892 = vld [vmem:[#allocation3 + $0x100] sm:$0xff]
        %v4893 = vld [vmem:[#allocation3 + $0x108] sm:$0xff]
        %v4894 = vld [vmem:[#allocation3 + $0x110] sm:$0xff]
        %v4895 = vld [vmem:[#allocation3 + $0x118] sm:$0xff]
        %v4896 = vld [vmem:[#allocation3 + $0x120] sm:$0xff]
        %v4897 = vld [vmem:[#allocation3 + $0x128] sm:$0xff]
        %v4898 = vld [vmem:[#allocation3 + $0x130] sm:$0xff]
        %v4899 = vld [vmem:[#allocation3 + $0x138] sm:$0xff]
        %v4900 = vld [vmem:[#allocation3 + $0x140] sm:$0xff]
        %v4901 = vld [vmem:[#allocation3 + $0x148] sm:$0xff]
        %v4902 = vld [vmem:[#allocation3 + $0x150] sm:$0xff]
        %v4903 = vld [vmem:[#allocation3 + $0x158] sm:$0xff]
        %v4904 = vld [vmem:[#allocation3 + $0x160] sm:$0xff]
        %v4905 = vld [vmem:[#allocation3 + $0x168] sm:$0xff]
        %v4906 = vld [vmem:[#allocation3 + $0x170] sm:$0xff]
        %v4907 = vld [vmem:[#allocation3 + $0x178] sm:$0xff]
        %v4908 = vld [vmem:[#allocation3 + $0x180] sm:$0xff]
        %v4909 = vld [vmem:[#allocation3 + $0x188] sm:$0xff]
        %v4910 = vld [vmem:[#allocation3 + $0x190] sm:$0xff]
        %v4911 = vld [vmem:[#allocation3 + $0x198] sm:$0xff]
        %v4912 = vld [vmem:[#allocation3 + $0x1a0] sm:$0xff]
        %v4913 = vld [vmem:[#allocation3 + $0x1a8] sm:$0xff]
        %v4914 = vld [vmem:[#allocation3 + $0x1b0] sm:$0xff]
        %v4915 = vld [vmem:[#allocation3 + $0x1b8] sm:$0xff]
        %v4916 = vld [vmem:[#allocation3 + $0x1c0] sm:$0xff]
        %v4917 = vld [vmem:[#allocation3 + $0x1c8] sm:$0xff]
        %v4918 = vld [vmem:[#allocation3 + $0x1d0] sm:$0xff]
        %v4919 = vld [vmem:[#allocation3 + $0x1d8] sm:$0xff]
        %v4920 = vld [vmem:[#allocation3 + $0x1e0] sm:$0xff]
        %v4921 = vld [vmem:[#allocation3 + $0x1e8] sm:$0xff]
        %v4922 = vld [vmem:[#allocation3 + $0x1f0] sm:$0xff]
        %v4923 = vld [vmem:[#allocation3 + $0x1f8] sm:$0xff]
        %v4924 = vmul.f32 %v4860, %v560
        %v4925 = vmul.f32 %v4861, %v567
        %v4926 = vmul.f32 %v4862, %v574
        %v4927 = vmul.f32 %v4863, %v581
        %v4928 = vmul.f32 %v4864, %v588
        %v4929 = vmul.f32 %v4865, %v595
        %v4930 = vmul.f32 %v4866, %v602
        %v4931 = vmul.f32 %v4867, %v609
        %v4932 = vmul.f32 %v4868, %v616
        %v4933 = vmul.f32 %v4869, %v623
        %v4934 = vmul.f32 %v4870, %v630
        %v4935 = vmul.f32 %v4871, %v637
        %v4936 = vmul.f32 %v4872, %v644
        %v4937 = vmul.f32 %v4873, %v651
        %v4938 = vmul.f32 %v4874, %v658
        %v4939 = vmul.f32 %v4875, %v665
        %v4940 = vmul.f32 %v4876, %v672
        %v4941 = vmul.f32 %v4877, %v679
        %v4942 = vmul.f32 %v4878, %v686
        %v4943 = vmul.f32 %v4879, %v693
        %v4944 = vmul.f32 %v4880, %v700
        %v4945 = vmul.f32 %v4881, %v707
        %v4946 = vmul.f32 %v4882, %v714
        %v4947 = vmul.f32 %v4883, %v721
        %v4948 = vmul.f32 %v4884, %v728
        %v4949 = vmul.f32 %v4885, %v735
        %v4950 = vmul.f32 %v4886, %v742
        %v4951 = vmul.f32 %v4887, %v749
        %v4952 = vmul.f32 %v4888, %v756
        %v4953 = vmul.f32 %v4889, %v763
        %v4954 = vmul.f32 %v4890, %v770
        %v4955 = vmul.f32 %v4891, %v777
        %v4956 = vmul.f32 %v4892, %v784
        %v4957 = vmul.f32 %v4893, %v791
        %v4958 = vmul.f32 %v4894, %v798
        %v4959 = vmul.f32 %v4895, %v805
        %v4960 = vmul.f32 %v4896, %v812
        %v4961 = vmul.f32 %v4897, %v819
        %v4962 = vmul.f32 %v4898, %v826
        %v4963 = vmul.f32 %v4899, %v833
        %v4964 = vmul.f32 %v4900, %v840
        %v4965 = vmul.f32 %v4901, %v847
        %v4966 = vmul.f32 %v4902, %v854
        %v4967 = vmul.f32 %v4903, %v861
        %v4968 = vmul.f32 %v4904, %v868
        %v4969 = vmul.f32 %v4905, %v875
        %v4970 = vmul.f32 %v4906, %v882
        %v4971 = vmul.f32 %v4907, %v889
        %v4972 = vmul.f32 %v4908, %v896
        %v4973 = vmul.f32 %v4909, %v903
        %v4974 = vmul.f32 %v4910, %v910
        %v4975 = vmul.f32 %v4911, %v917
        %v4976 = vmul.f32 %v4912, %v924
        %v4977 = vmul.f32 %v4913, %v931
        %v4978 = vmul.f32 %v4914, %v938
        %v4979 = vmul.f32 %v4915, %v945
        %v4980 = vmul.f32 %v4916, %v952
        %v4981 = vmul.f32 %v4917, %v959
        %v4982 = vmul.f32 %v4918, %v966
        %v4983 = vmul.f32 %v4919, %v973
        %v4984 = vmul.f32 %v4920, %v980
        %v4985 = vmul.f32 %v4921, %v987
        %v4986 = vmul.f32 %v4922, %v994
        %v4987 = vmul.f32 %v4923, %v1001
        %v4988 = vsel %vm2911, %v4924, 0.0
        %v4989 = vrot.slane %v4988, 4
        %v4990 = vadd.f32 %v4988, %v4989
        %v4991 = vrot.slane %v4990, 2
        %v4992 = vadd.f32 %v4990, %v4991
        %v4993 = vrot.slane %v4992, 1
        %v4994 = vadd.f32 %v4992, %v4993
        %v4995 = vsel %vm2911, %v4925, 0.0
        %v4996 = vrot.slane %v4995, 4
        %v4997 = vadd.f32 %v4995, %v4996
        %v4998 = vrot.slane %v4997, 2
        %v4999 = vadd.f32 %v4997, %v4998
        %v5000 = vrot.slane %v4999, 1
        %v5001 = vadd.f32 %v4999, %v5000
        %v5002 = vsel %vm2911, %v4926, 0.0
        %v5003 = vrot.slane %v5002, 4
        %v5004 = vadd.f32 %v5002, %v5003
        %v5005 = vrot.slane %v5004, 2
        %v5006 = vadd.f32 %v5004, %v5005
        %v5007 = vrot.slane %v5006, 1
        %v5008 = vadd.f32 %v5006, %v5007
        %v5009 = vsel %vm2911, %v4927, 0.0
        %v5010 = vrot.slane %v5009, 4
        %v5011 = vadd.f32 %v5009, %v5010
        %v5012 = vrot.slane %v5011, 2
        %v5013 = vadd.f32 %v5011, %v5012
        %v5014 = vrot.slane %v5013, 1
        %v5015 = vadd.f32 %v5013, %v5014
        %v5016 = vsel %vm2911, %v4928, 0.0
        %v5017 = vrot.slane %v5016, 4
        %v5018 = vadd.f32 %v5016, %v5017
        %v5019 = vrot.slane %v5018, 2
        %v5020 = vadd.f32 %v5018, %v5019
        %v5021 = vrot.slane %v5020, 1
        %v5022 = vadd.f32 %v5020, %v5021
        %v5023 = vsel %vm2911, %v4929, 0.0
        %v5024 = vrot.slane %v5023, 4
        %v5025 = vadd.f32 %v5023, %v5024
        %v5026 = vrot.slane %v5025, 2
        %v5027 = vadd.f32 %v5025, %v5026
        %v5028 = vrot.slane %v5027, 1
        %v5029 = vadd.f32 %v5027, %v5028
        %v5030 = vsel %vm2911, %v4930, 0.0
        %v5031 = vrot.slane %v5030, 4
        %v5032 = vadd.f32 %v5030, %v5031
        %v5033 = vrot.slane %v5032, 2
        %v5034 = vadd.f32 %v5032, %v5033
        %v5035 = vrot.slane %v5034, 1
        %v5036 = vadd.f32 %v5034, %v5035
        %v5037 = vsel %vm2911, %v4931, 0.0
        %v5038 = vrot.slane %v5037, 4
        %v5039 = vadd.f32 %v5037, %v5038
        %v5040 = vrot.slane %v5039, 2
        %v5041 = vadd.f32 %v5039, %v5040
        %v5042 = vrot.slane %v5041, 1
        %v5043 = vadd.f32 %v5041, %v5042
        %v5044 = vsel %vm2911, %v4932, 0.0
        %v5045 = vrot.slane %v5044, 4
        %v5046 = vadd.f32 %v5044, %v5045
        %v5047 = vrot.slane %v5046, 2
        %v5048 = vadd.f32 %v5046, %v5047
        %v5049 = vrot.slane %v5048, 1
        %v5050 = vadd.f32 %v5048, %v5049
        %v5051 = vsel %vm2911, %v4933, 0.0
        %v5052 = vrot.slane %v5051, 4
        %v5053 = vadd.f32 %v5051, %v5052
        %v5054 = vrot.slane %v5053, 2
        %v5055 = vadd.f32 %v5053, %v5054
        %v5056 = vrot.slane %v5055, 1
        %v5057 = vadd.f32 %v5055, %v5056
        %v5058 = vsel %vm2911, %v4934, 0.0
        %v5059 = vrot.slane %v5058, 4
        %v5060 = vadd.f32 %v5058, %v5059
        %v5061 = vrot.slane %v5060, 2
        %v5062 = vadd.f32 %v5060, %v5061
        %v5063 = vrot.slane %v5062, 1
        %v5064 = vadd.f32 %v5062, %v5063
        %v5065 = vsel %vm2911, %v4935, 0.0
        %v5066 = vrot.slane %v5065, 4
        %v5067 = vadd.f32 %v5065, %v5066
        %v5068 = vrot.slane %v5067, 2
        %v5069 = vadd.f32 %v5067, %v5068
        %v5070 = vrot.slane %v5069, 1
        %v5071 = vadd.f32 %v5069, %v5070
        %v5072 = vsel %vm2911, %v4936, 0.0
        %v5073 = vrot.slane %v5072, 4
        %v5074 = vadd.f32 %v5072, %v5073
        %v5075 = vrot.slane %v5074, 2
        %v5076 = vadd.f32 %v5074, %v5075
        %v5077 = vrot.slane %v5076, 1
        %v5078 = vadd.f32 %v5076, %v5077
        %v5079 = vsel %vm2911, %v4937, 0.0
        %v5080 = vrot.slane %v5079, 4
        %v5081 = vadd.f32 %v5079, %v5080
        %v5082 = vrot.slane %v5081, 2
        %v5083 = vadd.f32 %v5081, %v5082
        %v5084 = vrot.slane %v5083, 1
        %v5085 = vadd.f32 %v5083, %v5084
        %v5086 = vsel %vm2911, %v4938, 0.0
        %v5087 = vrot.slane %v5086, 4
        %v5088 = vadd.f32 %v5086, %v5087
        %v5089 = vrot.slane %v5088, 2
        %v5090 = vadd.f32 %v5088, %v5089
        %v5091 = vrot.slane %v5090, 1
        %v5092 = vadd.f32 %v5090, %v5091
        %v5093 = vsel %vm2911, %v4939, 0.0
        %v5094 = vrot.slane %v5093, 4
        %v5095 = vadd.f32 %v5093, %v5094
        %v5096 = vrot.slane %v5095, 2
        %v5097 = vadd.f32 %v5095, %v5096
        %v5098 = vrot.slane %v5097, 1
        %v5099 = vadd.f32 %v5097, %v5098
        %v5100 = vsel %vm2911, %v4940, 0.0
        %v5101 = vrot.slane %v5100, 4
        %v5102 = vadd.f32 %v5100, %v5101
        %v5103 = vrot.slane %v5102, 2
        %v5104 = vadd.f32 %v5102, %v5103
        %v5105 = vrot.slane %v5104, 1
        %v5106 = vadd.f32 %v5104, %v5105
        %v5107 = vsel %vm2911, %v4941, 0.0
        %v5108 = vrot.slane %v5107, 4
        %v5109 = vadd.f32 %v5107, %v5108
        %v5110 = vrot.slane %v5109, 2
        %v5111 = vadd.f32 %v5109, %v5110
        %v5112 = vrot.slane %v5111, 1
        %v5113 = vadd.f32 %v5111, %v5112
        %v5114 = vsel %vm2911, %v4942, 0.0
        %v5115 = vrot.slane %v5114, 4
        %v5116 = vadd.f32 %v5114, %v5115
        %v5117 = vrot.slane %v5116, 2
        %v5118 = vadd.f32 %v5116, %v5117
        %v5119 = vrot.slane %v5118, 1
        %v5120 = vadd.f32 %v5118, %v5119
        %v5121 = vsel %vm2911, %v4943, 0.0
        %v5122 = vrot.slane %v5121, 4
        %v5123 = vadd.f32 %v5121, %v5122
        %v5124 = vrot.slane %v5123, 2
        %v5125 = vadd.f32 %v5123, %v5124
        %v5126 = vrot.slane %v5125, 1
        %v5127 = vadd.f32 %v5125, %v5126
        %v5128 = vsel %vm2911, %v4944, 0.0
        %v5129 = vrot.slane %v5128, 4
        %v5130 = vadd.f32 %v5128, %v5129
        %v5131 = vrot.slane %v5130, 2
        %v5132 = vadd.f32 %v5130, %v5131
        %v5133 = vrot.slane %v5132, 1
        %v5134 = vadd.f32 %v5132, %v5133
        %v5135 = vsel %vm2911, %v4945, 0.0
        %v5136 = vrot.slane %v5135, 4
        %v5137 = vadd.f32 %v5135, %v5136
        %v5138 = vrot.slane %v5137, 2
        %v5139 = vadd.f32 %v5137, %v5138
        %v5140 = vrot.slane %v5139, 1
        %v5141 = vadd.f32 %v5139, %v5140
        %v5142 = vsel %vm2911, %v4946, 0.0
        %v5143 = vrot.slane %v5142, 4
        %v5144 = vadd.f32 %v5142, %v5143
        %v5145 = vrot.slane %v5144, 2
        %v5146 = vadd.f32 %v5144, %v5145
        %v5147 = vrot.slane %v5146, 1
        %v5148 = vadd.f32 %v5146, %v5147
        %v5149 = vsel %vm2911, %v4947, 0.0
        %v5150 = vrot.slane %v5149, 4
        %v5151 = vadd.f32 %v5149, %v5150
        %v5152 = vrot.slane %v5151, 2
        %v5153 = vadd.f32 %v5151, %v5152
        %v5154 = vrot.slane %v5153, 1
        %v5155 = vadd.f32 %v5153, %v5154
        %v5156 = vsel %vm2911, %v4948, 0.0
        %v5157 = vrot.slane %v5156, 4
        %v5158 = vadd.f32 %v5156, %v5157
        %v5159 = vrot.slane %v5158, 2
        %v5160 = vadd.f32 %v5158, %v5159
        %v5161 = vrot.slane %v5160, 1
        %v5162 = vadd.f32 %v5160, %v5161
        %v5163 = vsel %vm2911, %v4949, 0.0
        %v5164 = vrot.slane %v5163, 4
        %v5165 = vadd.f32 %v5163, %v5164
        %v5166 = vrot.slane %v5165, 2
        %v5167 = vadd.f32 %v5165, %v5166
        %v5168 = vrot.slane %v5167, 1
        %v5169 = vadd.f32 %v5167, %v5168
        %v5170 = vsel %vm2911, %v4950, 0.0
        %v5171 = vrot.slane %v5170, 4
        %v5172 = vadd.f32 %v5170, %v5171
        %v5173 = vrot.slane %v5172, 2
        %v5174 = vadd.f32 %v5172, %v5173
        %v5175 = vrot.slane %v5174, 1
        %v5176 = vadd.f32 %v5174, %v5175
        %v5177 = vsel %vm2911, %v4951, 0.0
        %v5178 = vrot.slane %v5177, 4
        %v5179 = vadd.f32 %v5177, %v5178
        %v5180 = vrot.slane %v5179, 2
        %v5181 = vadd.f32 %v5179, %v5180
        %v5182 = vrot.slane %v5181, 1
        %v5183 = vadd.f32 %v5181, %v5182
        %v5184 = vsel %vm2911, %v4952, 0.0
        %v5185 = vrot.slane %v5184, 4
        %v5186 = vadd.f32 %v5184, %v5185
        %v5187 = vrot.slane %v5186, 2
        %v5188 = vadd.f32 %v5186, %v5187
        %v5189 = vrot.slane %v5188, 1
        %v5190 = vadd.f32 %v5188, %v5189
        %v5191 = vsel %vm2911, %v4953, 0.0
        %v5192 = vrot.slane %v5191, 4
        %v5193 = vadd.f32 %v5191, %v5192
        %v5194 = vrot.slane %v5193, 2
        %v5195 = vadd.f32 %v5193, %v5194
        %v5196 = vrot.slane %v5195, 1
        %v5197 = vadd.f32 %v5195, %v5196
        %v5198 = vsel %vm2911, %v4954, 0.0
        %v5199 = vrot.slane %v5198, 4
        %v5200 = vadd.f32 %v5198, %v5199
        %v5201 = vrot.slane %v5200, 2
        %v5202 = vadd.f32 %v5200, %v5201
        %v5203 = vrot.slane %v5202, 1
        %v5204 = vadd.f32 %v5202, %v5203
        %v5205 = vsel %vm2911, %v4955, 0.0
        %v5206 = vrot.slane %v5205, 4
        %v5207 = vadd.f32 %v5205, %v5206
        %v5208 = vrot.slane %v5207, 2
        %v5209 = vadd.f32 %v5207, %v5208
        %v5210 = vrot.slane %v5209, 1
        %v5211 = vadd.f32 %v5209, %v5210
        %v5212 = vsel %vm2911, %v4956, 0.0
        %v5213 = vrot.slane %v5212, 4
        %v5214 = vadd.f32 %v5212, %v5213
        %v5215 = vrot.slane %v5214, 2
        %v5216 = vadd.f32 %v5214, %v5215
        %v5217 = vrot.slane %v5216, 1
        %v5218 = vadd.f32 %v5216, %v5217
        %v5219 = vsel %vm2911, %v4957, 0.0
        %v5220 = vrot.slane %v5219, 4
        %v5221 = vadd.f32 %v5219, %v5220
        %v5222 = vrot.slane %v5221, 2
        %v5223 = vadd.f32 %v5221, %v5222
        %v5224 = vrot.slane %v5223, 1
        %v5225 = vadd.f32 %v5223, %v5224
        %v5226 = vsel %vm2911, %v4958, 0.0
        %v5227 = vrot.slane %v5226, 4
        %v5228 = vadd.f32 %v5226, %v5227
        %v5229 = vrot.slane %v5228, 2
        %v5230 = vadd.f32 %v5228, %v5229
        %v5231 = vrot.slane %v5230, 1
        %v5232 = vadd.f32 %v5230, %v5231
        %v5233 = vsel %vm2911, %v4959, 0.0
        %v5234 = vrot.slane %v5233, 4
        %v5235 = vadd.f32 %v5233, %v5234
        %v5236 = vrot.slane %v5235, 2
        %v5237 = vadd.f32 %v5235, %v5236
        %v5238 = vrot.slane %v5237, 1
        %v5239 = vadd.f32 %v5237, %v5238
        %v5240 = vsel %vm2911, %v4960, 0.0
        %v5241 = vrot.slane %v5240, 4
        %v5242 = vadd.f32 %v5240, %v5241
        %v5243 = vrot.slane %v5242, 2
        %v5244 = vadd.f32 %v5242, %v5243
        %v5245 = vrot.slane %v5244, 1
        %v5246 = vadd.f32 %v5244, %v5245
        %v5247 = vsel %vm2911, %v4961, 0.0
        %v5248 = vrot.slane %v5247, 4
        %v5249 = vadd.f32 %v5247, %v5248
        %v5250 = vrot.slane %v5249, 2
        %v5251 = vadd.f32 %v5249, %v5250
        %v5252 = vrot.slane %v5251, 1
        %v5253 = vadd.f32 %v5251, %v5252
        %v5254 = vsel %vm2911, %v4962, 0.0
        %v5255 = vrot.slane %v5254, 4
        %v5256 = vadd.f32 %v5254, %v5255
        %v5257 = vrot.slane %v5256, 2
        %v5258 = vadd.f32 %v5256, %v5257
        %v5259 = vrot.slane %v5258, 1
        %v5260 = vadd.f32 %v5258, %v5259
        %v5261 = vsel %vm2911, %v4963, 0.0
        %v5262 = vrot.slane %v5261, 4
        %v5263 = vadd.f32 %v5261, %v5262
        %v5264 = vrot.slane %v5263, 2
        %v5265 = vadd.f32 %v5263, %v5264
        %v5266 = vrot.slane %v5265, 1
        %v5267 = vadd.f32 %v5265, %v5266
        %v5268 = vsel %vm2911, %v4964, 0.0
        %v5269 = vrot.slane %v5268, 4
        %v5270 = vadd.f32 %v5268, %v5269
        %v5271 = vrot.slane %v5270, 2
        %v5272 = vadd.f32 %v5270, %v5271
        %v5273 = vrot.slane %v5272, 1
        %v5274 = vadd.f32 %v5272, %v5273
        %v5275 = vsel %vm2911, %v4965, 0.0
        %v5276 = vrot.slane %v5275, 4
        %v5277 = vadd.f32 %v5275, %v5276
        %v5278 = vrot.slane %v5277, 2
        %v5279 = vadd.f32 %v5277, %v5278
        %v5280 = vrot.slane %v5279, 1
        %v5281 = vadd.f32 %v5279, %v5280
        %v5282 = vsel %vm2911, %v4966, 0.0
        %v5283 = vrot.slane %v5282, 4
        %v5284 = vadd.f32 %v5282, %v5283
        %v5285 = vrot.slane %v5284, 2
        %v5286 = vadd.f32 %v5284, %v5285
        %v5287 = vrot.slane %v5286, 1
        %v5288 = vadd.f32 %v5286, %v5287
        %v5289 = vsel %vm2911, %v4967, 0.0
        %v5290 = vrot.slane %v5289, 4
        %v5291 = vadd.f32 %v5289, %v5290
        %v5292 = vrot.slane %v5291, 2
        %v5293 = vadd.f32 %v5291, %v5292
        %v5294 = vrot.slane %v5293, 1
        %v5295 = vadd.f32 %v5293, %v5294
        %v5296 = vsel %vm2911, %v4968, 0.0
        %v5297 = vrot.slane %v5296, 4
        %v5298 = vadd.f32 %v5296, %v5297
        %v5299 = vrot.slane %v5298, 2
        %v5300 = vadd.f32 %v5298, %v5299
        %v5301 = vrot.slane %v5300, 1
        %v5302 = vadd.f32 %v5300, %v5301
        %v5303 = vsel %vm2911, %v4969, 0.0
        %v5304 = vrot.slane %v5303, 4
        %v5305 = vadd.f32 %v5303, %v5304
        %v5306 = vrot.slane %v5305, 2
        %v5307 = vadd.f32 %v5305, %v5306
        %v5308 = vrot.slane %v5307, 1
        %v5309 = vadd.f32 %v5307, %v5308
        %v5310 = vsel %vm2911, %v4970, 0.0
        %v5311 = vrot.slane %v5310, 4
        %v5312 = vadd.f32 %v5310, %v5311
        %v5313 = vrot.slane %v5312, 2
        %v5314 = vadd.f32 %v5312, %v5313
        %v5315 = vrot.slane %v5314, 1
        %v5316 = vadd.f32 %v5314, %v5315
        %v5317 = vsel %vm2911, %v4971, 0.0
        %v5318 = vrot.slane %v5317, 4
        %v5319 = vadd.f32 %v5317, %v5318
        %v5320 = vrot.slane %v5319, 2
        %v5321 = vadd.f32 %v5319, %v5320
        %v5322 = vrot.slane %v5321, 1
        %v5323 = vadd.f32 %v5321, %v5322
        %v5324 = vsel %vm2911, %v4972, 0.0
        %v5325 = vrot.slane %v5324, 4
        %v5326 = vadd.f32 %v5324, %v5325
        %v5327 = vrot.slane %v5326, 2
        %v5328 = vadd.f32 %v5326, %v5327
        %v5329 = vrot.slane %v5328, 1
        %v5330 = vadd.f32 %v5328, %v5329
        %v5331 = vsel %vm2911, %v4973, 0.0
        %v5332 = vrot.slane %v5331, 4
        %v5333 = vadd.f32 %v5331, %v5332
        %v5334 = vrot.slane %v5333, 2
        %v5335 = vadd.f32 %v5333, %v5334
        %v5336 = vrot.slane %v5335, 1
        %v5337 = vadd.f32 %v5335, %v5336
        %v5338 = vsel %vm2911, %v4974, 0.0
        %v5339 = vrot.slane %v5338, 4
        %v5340 = vadd.f32 %v5338, %v5339
        %v5341 = vrot.slane %v5340, 2
        %v5342 = vadd.f32 %v5340, %v5341
        %v5343 = vrot.slane %v5342, 1
        %v5344 = vadd.f32 %v5342, %v5343
        %v5345 = vsel %vm2911, %v4975, 0.0
        %v5346 = vrot.slane %v5345, 4
        %v5347 = vadd.f32 %v5345, %v5346
        %v5348 = vrot.slane %v5347, 2
        %v5349 = vadd.f32 %v5347, %v5348
        %v5350 = vrot.slane %v5349, 1
        %v5351 = vadd.f32 %v5349, %v5350
        %v5352 = vsel %vm2911, %v4976, 0.0
        %v5353 = vrot.slane %v5352, 4
        %v5354 = vadd.f32 %v5352, %v5353
        %v5355 = vrot.slane %v5354, 2
        %v5356 = vadd.f32 %v5354, %v5355
        %v5357 = vrot.slane %v5356, 1
        %v5358 = vadd.f32 %v5356, %v5357
        %v5359 = vsel %vm2911, %v4977, 0.0
        %v5360 = vrot.slane %v5359, 4
        %v5361 = vadd.f32 %v5359, %v5360
        %v5362 = vrot.slane %v5361, 2
        %v5363 = vadd.f32 %v5361, %v5362
        %v5364 = vrot.slane %v5363, 1
        %v5365 = vadd.f32 %v5363, %v5364
        %v5366 = vsel %vm2911, %v4978, 0.0
        %v5367 = vrot.slane %v5366, 4
        %v5368 = vadd.f32 %v5366, %v5367
        %v5369 = vrot.slane %v5368, 2
        %v5370 = vadd.f32 %v5368, %v5369
        %v5371 = vrot.slane %v5370, 1
        %v5372 = vadd.f32 %v5370, %v5371
        %v5373 = vsel %vm2911, %v4979, 0.0
        %v5374 = vrot.slane %v5373, 4
        %v5375 = vadd.f32 %v5373, %v5374
        %v5376 = vrot.slane %v5375, 2
        %v5377 = vadd.f32 %v5375, %v5376
        %v5378 = vrot.slane %v5377, 1
        %v5379 = vadd.f32 %v5377, %v5378
        %v5380 = vsel %vm2911, %v4980, 0.0
        %v5381 = vrot.slane %v5380, 4
        %v5382 = vadd.f32 %v5380, %v5381
        %v5383 = vrot.slane %v5382, 2
        %v5384 = vadd.f32 %v5382, %v5383
        %v5385 = vrot.slane %v5384, 1
        %v5386 = vadd.f32 %v5384, %v5385
        %v5387 = vsel %vm2911, %v4981, 0.0
        %v5388 = vrot.slane %v5387, 4
        %v5389 = vadd.f32 %v5387, %v5388
        %v5390 = vrot.slane %v5389, 2
        %v5391 = vadd.f32 %v5389, %v5390
        %v5392 = vrot.slane %v5391, 1
        %v5393 = vadd.f32 %v5391, %v5392
        %v5394 = vsel %vm2911, %v4982, 0.0
        %v5395 = vrot.slane %v5394, 4
        %v5396 = vadd.f32 %v5394, %v5395
        %v5397 = vrot.slane %v5396, 2
        %v5398 = vadd.f32 %v5396, %v5397
        %v5399 = vrot.slane %v5398, 1
        %v5400 = vadd.f32 %v5398, %v5399
        %v5401 = vsel %vm2911, %v4983, 0.0
        %v5402 = vrot.slane %v5401, 4
        %v5403 = vadd.f32 %v5401, %v5402
        %v5404 = vrot.slane %v5403, 2
        %v5405 = vadd.f32 %v5403, %v5404
        %v5406 = vrot.slane %v5405, 1
        %v5407 = vadd.f32 %v5405, %v5406
        %v5408 = vsel %vm2911, %v4984, 0.0
        %v5409 = vrot.slane %v5408, 4
        %v5410 = vadd.f32 %v5408, %v5409
        %v5411 = vrot.slane %v5410, 2
        %v5412 = vadd.f32 %v5410, %v5411
        %v5413 = vrot.slane %v5412, 1
        %v5414 = vadd.f32 %v5412, %v5413
        %v5415 = vsel %vm2911, %v4985, 0.0
        %v5416 = vrot.slane %v5415, 4
        %v5417 = vadd.f32 %v5415, %v5416
        %v5418 = vrot.slane %v5417, 2
        %v5419 = vadd.f32 %v5417, %v5418
        %v5420 = vrot.slane %v5419, 1
        %v5421 = vadd.f32 %v5419, %v5420
        %v5422 = vsel %vm2911, %v4986, 0.0
        %v5423 = vrot.slane %v5422, 4
        %v5424 = vadd.f32 %v5422, %v5423
        %v5425 = vrot.slane %v5424, 2
        %v5426 = vadd.f32 %v5424, %v5425
        %v5427 = vrot.slane %v5426, 1
        %v5428 = vadd.f32 %v5426, %v5427
        %v5429 = vsel %vm2911, %v4987, 0.0
        %v5430 = vrot.slane %v5429, 4
        %v5431 = vadd.f32 %v5429, %v5430
        %v5432 = vrot.slane %v5431, 2
        %v5433 = vadd.f32 %v5431, %v5432
        %v5434 = vrot.slane %v5433, 1
        %v5435 = vadd.f32 %v5433, %v5434
        %v5436 = vmul.f32 %v4994, %v1642
        %v5437 = vmul.f32 %v5001, %v1643
        %v5438 = vmul.f32 %v5008, %v1644
        %v5439 = vmul.f32 %v5015, %v1645
        %v5440 = vmul.f32 %v5022, %v1646
        %v5441 = vmul.f32 %v5029, %v1647
        %v5442 = vmul.f32 %v5036, %v1648
        %v5443 = vmul.f32 %v5043, %v1649
        %v5444 = vmul.f32 %v5050, %v1650
        %v5445 = vmul.f32 %v5057, %v1651
        %v5446 = vmul.f32 %v5064, %v1652
        %v5447 = vmul.f32 %v5071, %v1653
        %v5448 = vmul.f32 %v5078, %v1654
        %v5449 = vmul.f32 %v5085, %v1655
        %v5450 = vmul.f32 %v5092, %v1656
        %v5451 = vmul.f32 %v5099, %v1657
        %v5452 = vmul.f32 %v5106, %v1658
        %v5453 = vmul.f32 %v5113, %v1659
        %v5454 = vmul.f32 %v5120, %v1660
        %v5455 = vmul.f32 %v5127, %v1661
        %v5456 = vmul.f32 %v5134, %v1662
        %v5457 = vmul.f32 %v5141, %v1663
        %v5458 = vmul.f32 %v5148, %v1664
        %v5459 = vmul.f32 %v5155, %v1665
        %v5460 = vmul.f32 %v5162, %v1666
        %v5461 = vmul.f32 %v5169, %v1667
        %v5462 = vmul.f32 %v5176, %v1668
        %v5463 = vmul.f32 %v5183, %v1669
        %v5464 = vmul.f32 %v5190, %v1670
        %v5465 = vmul.f32 %v5197, %v1671
        %v5466 = vmul.f32 %v5204, %v1672
        %v5467 = vmul.f32 %v5211, %v1673
        %v5468 = vmul.f32 %v5218, %v1674
        %v5469 = vmul.f32 %v5225, %v1675
        %v5470 = vmul.f32 %v5232, %v1676
        %v5471 = vmul.f32 %v5239, %v1677
        %v5472 = vmul.f32 %v5246, %v1678
        %v5473 = vmul.f32 %v5253, %v1679
        %v5474 = vmul.f32 %v5260, %v1680
        %v5475 = vmul.f32 %v5267, %v1681
        %v5476 = vmul.f32 %v5274, %v1682
        %v5477 = vmul.f32 %v5281, %v1683
        %v5478 = vmul.f32 %v5288, %v1684
        %v5479 = vmul.f32 %v5295, %v1685
        %v5480 = vmul.f32 %v5302, %v1686
        %v5481 = vmul.f32 %v5309, %v1687
        %v5482 = vmul.f32 %v5316, %v1688
        %v5483 = vmul.f32 %v5323, %v1689
        %v5484 = vmul.f32 %v5330, %v1690
        %v5485 = vmul.f32 %v5337, %v1691
        %v5486 = vmul.f32 %v5344, %v1692
        %v5487 = vmul.f32 %v5351, %v1693
        %v5488 = vmul.f32 %v5358, %v1694
        %v5489 = vmul.f32 %v5365, %v1695
        %v5490 = vmul.f32 %v5372, %v1696
        %v5491 = vmul.f32 %v5379, %v1697
        %v5492 = vmul.f32 %v5386, %v1698
        %v5493 = vmul.f32 %v5393, %v1699
        %v5494 = vmul.f32 %v5400, %v1700
        %v5495 = vmul.f32 %v5407, %v1701
        %v5496 = vmul.f32 %v5414, %v1702
        %v5497 = vmul.f32 %v5421, %v1703
        %v5498 = vmul.f32 %v5428, %v1704
        %v5499 = vmul.f32 %v5435, %v1705
        %vm5564 = vcmask 1041409
        %v5565 = vsel %vm5564, %v5437, %v5436
        %vm5566 = vcmask 1042434
        %v5567 = vsel %vm5566, %v5438, %v5565
        %vm5568 = vcmask 1043459
        %v5569 = vsel %vm5568, %v5439, %v5567
        %vm5570 = vcmask 1044484
        %v5571 = vsel %vm5570, %v5440, %v5569
        %vm5572 = vcmask 1045509
        %v5573 = vsel %vm5572, %v5441, %v5571
        %vm5574 = vcmask 1046534
        %v5575 = vsel %vm5574, %v5442, %v5573
        %vm5576 = vcmask 1047559
        %v5577 = vsel %vm5576, %v5443, %v5575
        %v5578 = vsel %vm5564, %v5445, %v5444
        %v5579 = vsel %vm5566, %v5446, %v5578
        %v5580 = vsel %vm5568, %v5447, %v5579
        %v5581 = vsel %vm5570, %v5448, %v5580
        %v5582 = vsel %vm5572, %v5449, %v5581
        %v5583 = vsel %vm5574, %v5450, %v5582
        %v5584 = vsel %vm5576, %v5451, %v5583
        %v5585 = vsel %vm5564, %v5453, %v5452
        %v5586 = vsel %vm5566, %v5454, %v5585
        %v5587 = vsel %vm5568, %v5455, %v5586
        %v5588 = vsel %vm5570, %v5456, %v5587
        %v5589 = vsel %vm5572, %v5457, %v5588
        %v5590 = vsel %vm5574, %v5458, %v5589
        %v5591 = vsel %vm5576, %v5459, %v5590
        %v5592 = vsel %vm5564, %v5461, %v5460
        %v5593 = vsel %vm5566, %v5462, %v5592
        %v5594 = vsel %vm5568, %v5463, %v5593
        %v5595 = vsel %vm5570, %v5464, %v5594
        %v5596 = vsel %vm5572, %v5465, %v5595
        %v5597 = vsel %vm5574, %v5466, %v5596
        %v5598 = vsel %vm5576, %v5467, %v5597
        %v5599 = vsel %vm5564, %v5469, %v5468
        %v5600 = vsel %vm5566, %v5470, %v5599
        %v5601 = vsel %vm5568, %v5471, %v5600
        %v5602 = vsel %vm5570, %v5472, %v5601
        %v5603 = vsel %vm5572, %v5473, %v5602
        %v5604 = vsel %vm5574, %v5474, %v5603
        %v5605 = vsel %vm5576, %v5475, %v5604
        %v5606 = vsel %vm5564, %v5477, %v5476
        %v5607 = vsel %vm5566, %v5478, %v5606
        %v5608 = vsel %vm5568, %v5479, %v5607
        %v5609 = vsel %vm5570, %v5480, %v5608
        %v5610 = vsel %vm5572, %v5481, %v5609
        %v5611 = vsel %vm5574, %v5482, %v5610
        %v5612 = vsel %vm5576, %v5483, %v5611
        %v5613 = vsel %vm5564, %v5485, %v5484
        %v5614 = vsel %vm5566, %v5486, %v5613
        %v5615 = vsel %vm5568, %v5487, %v5614
        %v5616 = vsel %vm5570, %v5488, %v5615
        %v5617 = vsel %vm5572, %v5489, %v5616
        %v5618 = vsel %vm5574, %v5490, %v5617
        %v5619 = vsel %vm5576, %v5491, %v5618
        %v5620 = vsel %vm5564, %v5493, %v5492
        %v5621 = vsel %vm5566, %v5494, %v5620
        %v5622 = vsel %vm5568, %v5495, %v5621
        %v5623 = vsel %vm5570, %v5496, %v5622
        %v5624 = vsel %vm5572, %v5497, %v5623
        %v5625 = vsel %vm5574, %v5498, %v5624
        %v5626 = vsel %vm5576, %v5499, %v5625
        %5635 = vst.msk [vmem:[%s543] sm:$0xff] %vm2911, %v5577
        %5636 = vst.msk [vmem:[%s543 + $0x8] sm:$0xff] %vm2911, %v5584
        %5637 = vst.msk [vmem:[%s543 + $0x10] sm:$0xff] %vm2911, %v5591
        %5638 = vst.msk [vmem:[%s543 + $0x18] sm:$0xff] %vm2911, %v5598
        %5639 = vst.msk [vmem:[%s543 + $0x20] sm:$0xff] %vm2911, %v5605
        %5640 = vst.msk [vmem:[%s543 + $0x28] sm:$0xff] %vm2911, %v5612
        %5641 = vst.msk [vmem:[%s543 + $0x30] sm:$0xff] %vm2911, %v5619
        %5642 = vst.msk [vmem:[%s543 + $0x38] sm:$0xff] %vm2911, %v5626
      $region80: #{weighted_proto_encoder.1} parent=59 // pred_fallthru
        _
      %s5643 = smul.u32 8, %s25
      %p5644 = scmp.lt.s32.totalorder %s5643, 7
      %s5645 = scalar_select %p5644, %s5643, 7
      %s5646 = smul.addr %s5645, 8
      %s5647 = scalar_lea.vmem %s10, %s5646
      // Predicated region
      $region81: #{weighted_proto_encoder.1} parent=59 // pred_check
        %p5648 = pneg %p312
      $region82: #{weighted_proto_encoder.1} parent=59 // pred_check_branch
        %5650 = sbr.rel (%p5648) target = $region84
      $region83: #{weighted_proto_encoder.1} parent=59 // pred_region
        %s5651 = smul.u32 8, %s25
      $region84: #{weighted_proto_encoder.1} parent=59 // pred_fallthru
        _
      // Predicated region
      $region85: #{weighted_proto_encoder.1} parent=59 // pred_check
        %p5652 = pneg %p312
      $region86: #{weighted_proto_encoder.1} parent=59 // pred_check_branch
        %5654 = sbr.rel (%p5652) target = $region88
      $region87: #{weighted_proto_encoder.1} parent=59 // pred_region
        %s5655 = smul.u32 8, %s25
        %p5656 = scmp.lt.s32.totalorder %s5655, 7
        %s5657 = scalar_select %p5656, %s5655, 7
        %s5658 = smul.addr %s5657, 8
        %s5659 = scalar_lea.vmem %s10, %s5658
      $region88: #{weighted_proto_encoder.1} parent=59 // pred_fallthru
        _
    $region60: #{weighted_proto_encoder.1} parent=5 // pred_fallthru
      _
    %p5660 = scmp.le.s32.totalorder 2, %s16
    // Predicated region
    $region89: #{weighted_proto_encoder.1} parent=5 // pred_check
      %p5661 = pneg %p5660
    $region90: #{weighted_proto_encoder.1} parent=5 // pred_check_branch
      %5663 = sbr.rel (%p5661) target = $region92
    $region91: #{weighted_proto_encoder.1} parent=5 // pred_region
      %s5664 = ssub.s32 %s16, 2
    $region92: #{weighted_proto_encoder.1} parent=5 // pred_fallthru
      _
  $region6: #{weighted_proto_encoder.1} parent=0 // loop_footer
    %s20 = sadd.s32 1, %s16
  $region7: #{weighted_proto_encoder.1} parent=0 // loop_footer_branch
    %15 = sbr.rel target = $region3
  $region8: #{weighted_proto_encoder.1} parent=0 // loop_exit
    _

</llo_original>
